<compile_context>
chip_gen: v7x
topology: tpu7x:2x2x1
jax: 0.10.0
libtpu: 0.0.40
codegen_flags: <defaults>
</compile_context>

<pallas_src>
import functools

import jax
import jax.numpy as jnp
import numpy as np
from jax import lax
from jax.experimental import pallas as pl
from jax.experimental.pallas import tpu as pltpu


# ----------------------------------------------------------------------------
# Kernel 1: x-path of the convolution (+ bias) as ONE bf16 MXU matmul.
#   gates_x[(s,b,y), :] = im2col(x)[(s,b,y), :] @ Wx_banded + bias
# ----------------------------------------------------------------------------
def _xconv_kernel(xc_ref, wx_ref, bias_ref, gx_ref):
    # xc_ref  : (S*B*H, K*W*Cin) bf16   row-tap im2col of the H-padded input
    # wx_ref  : (K*W*Cin, L)     bf16   banded x-path weights, L = 4*W*Cf
    # bias_ref: (1, L)           f32
    # gx_ref  : (S*B*H, L)       f32
    gx_ref[...] = (
        jnp.dot(xc_ref[...], wx_ref[...], preferred_element_type=jnp.float32)
        + bias_ref[...])


# ----------------------------------------------------------------------------
# Kernel 2: the sequential ConvLSTM recurrence.  Grid = (S // T_BLK,) over time
# only; the whole batch is processed per step (M = B*H rows on the MXU).
# ----------------------------------------------------------------------------
def _convlstm_kernel(eps, num_groups,
                     gx_ref, whf_ref, gamma_ref, beta_ref,
                     hy_ref, cy_ref,
                     hcat_scr, c_scr):
    # gx_ref    : (T_BLK, B, H, L) f32    precomputed x-gates (+ bias)
    # whf_ref   : (K*G, L)         bf16   fused-tap banded h weights, G = W*Cf
    # gamma/beta: (1, 1, L)        f32    per-lane GroupNorm affine (permuted)
    # hy_ref    : (T_BLK, B, H, G) f32
    # cy_ref    : (B, H, G)        f32    constant block index over time
    # hcat_scr  : (B, H, K*G)      bf16   im2col'd (fused-tap) hidden state
    # c_scr     : (B, H, G)        f32    cell state
    T_BLK, B, H, L = gx_ref.shape
    G = hy_ref.shape[3]
    KG = whf_ref.shape[0]
    K = KG // G
    p = (K - 1) // 2
    m = L // (num_groups * G)            # gate blocks per GroupNorm group
    inv_cnt = 1.0 / float(H * m * G)     # elements per (sample, group)

    # hidden_state=None path of the module: zero (h, c) once per sequence.
    # The never-written boundary rows of hcat_scr stay zero = spatial padding.
    @pl.when(pl.program_id(0) == 0)
    def _init():
        hcat_scr[...] = jnp.zeros_like(hcat_scr)
        c_scr[...] = jnp.zeros_like(c_scr)

    gamma = gamma_ref[...]               # (1, 1, L)
    beta = beta_ref[...]                 # (1, 1, L)

    def step(tt, carry):
        # ---- conv: ONE fused-tap bf16 MXU matmul (h path) + precomputed x path
        lhs = hcat_scr[...].reshape(B * H, KG)                       # (B*H, K*G)
        hg = jnp.dot(lhs, whf_ref[...],
                     preferred_element_type=jnp.float32)             # (B*H, L)
        gates = gx_ref[tt] + hg.reshape(B, H, L)                     # (B, H, L) f32

        # ---- GroupNorm: groups == whole gate blocks -> contiguous lane slices.
        # Centered two-pass variance (no E[x^2]-E[x]^2 cancellation).
        stats = []
        for g in range(num_groups):
            blk = gates[:, :, g * m * G:(g + 1) * m * G]             # (B, H, m*G)
            mean = jnp.sum(blk, axis=(1, 2), keepdims=True) * inv_cnt
            cent = blk - mean
            var = jnp.sum(cent * cent, axis=(1, 2), keepdims=True) * inv_cnt
            stats.append((mean, lax.rsqrt(var + eps)))

        def norm(j):                      # normalized j-th gate block (B, H, G)
            mean, inv = stats[j // m]
            blk = gates[:, :, j * G:(j + 1) * G]
            gam = gamma[:, :, j * G:(j + 1) * G]
            bet = beta[:, :, j * G:(j + 1) * G]
            return (blk - mean) * inv * gam + bet

        # ---- gate nonlinearities + LSTM update (all lane-dense, f32) ---------
        i_g = jax.nn.sigmoid(norm(0))
        f_g = jax.nn.sigmoid(norm(1))
        g_g = jnp.tanh(norm(2))
        o_g = jax.nn.sigmoid(norm(3))

        cy = f_g * c_scr[...] + i_g * g_g                            # (B, H, G)
        hy = o_g * jnp.tanh(cy)

        c_scr[...] = cy
        hy_ref[tt] = hy

        # ---- refresh the fused-tap hidden-state scratch for step t+1 ---------
        # hcat[b, y, kh*G + g] = h[b, y + kh - p, g]; boundary rows stay zero.
        hy16 = hy.astype(hcat_scr.dtype)
        for kh in range(K):
            sh = kh - p
            dlo, dhi = max(0, -sh), min(H, H - sh)
            hcat_scr[:, dlo:dhi, kh * G:(kh + 1) * G] = (
                hy16[:, dlo + sh:dhi + sh, :])
        return carry

    lax.fori_loop(0, T_BLK, step, 0)

    # Written every grid step; block index is constant over time, so only the
    # final value reaches HBM (robust vs. pl.when-on-last-step writeback).
    cy_ref[...] = c_scr[...]


# ----------------------------------------------------------------------------
# Host-side construction of banded weights and fused per-lane params.
# Fused gate-lane index:  col(x, oc) = (oc // Cf)*W*Cf + x*Cf + (oc % Cf)
# so the four gates occupy contiguous, 128-aligned lane blocks of width W*Cf.
# ----------------------------------------------------------------------------
def _build_constants(w, b, gamma, beta, num_groups, W):
    w_np = np.asarray(w, np.float32)                   # (K, K, Cin+Cf, Cout) HWIO
    K = w_np.shape[0]
    C = w_np.shape[2]
    Cout = w_np.shape[3]
    Cf = Cout // 4
    Cin = C - Cf
    p = (K - 1) // 2
    G = W * Cf
    L = W * Cout
    Cg = Cout // num_groups
    assert Cout % num_groups == 0 and Cg % Cf == 0, (
        "GroupNorm groups must cover whole gate blocks in the fused lane layout")
    # TODO(synk): support num_groups > 4 (Cg < Cf) via strided per-sub-block stats.

    def band(wpart):
        # wpart (K, K, Cd, Cout) -> (K, W*Cd, L):
        #   band[kh, xin*Cd + ci, gate*G + x*Cf + cf] = w[kh, xin-x+p, ci, gate*Cf+cf]
        Cd = wpart.shape[2]
        wg = wpart.reshape(K, K, Cd, 4, Cf)
        wb = np.zeros((K, W, Cd, 4, W, Cf), np.float32)
        for kw in range(K):
            for x in range(W):
                xin = x + kw - p
                if 0 <= xin < W:
                    wb[:, xin, :, :, x, :] = wg[:, kw, :, :, :]
        return wb.reshape(K, W * Cd, L)

    whb = band(w_np[:, :, Cin:, :])                    # (K, W*Cf,  L)  h path
    wxb = band(w_np[:, :, :Cin, :])                    # (K, W*Cin, L)  x path

    def fuse(v):                                       # (Cout,) -> (1, 1, L)
        v = np.asarray(v, np.float32).reshape(4, 1, Cf)
        return np.ascontiguousarray(
            np.broadcast_to(v, (4, W, Cf)).reshape(1, 1, L))

    return (jnp.asarray(whb.reshape(K * G, L), jnp.bfloat16),       # fused-tap h weights
            jnp.asarray(wxb.reshape(K * W * Cin, L), jnp.bfloat16),  # im2col x weights
            jnp.asarray(fuse(b).reshape(1, L)),
            jnp.asarray(fuse(gamma)),
            jnp.asarray(fuse(beta)))


def convlstm_cell_forward(x, w, b, gamma, beta, num_groups, eps=1e-5):
    """x: (S, B, H, W, Cin) f32, w: (K, K, Cin+Cf, 4*Cf) HWIO (channels-last).
    Returns (hy_seq, (hy, cy)) like CLSTM_cell.forward, channels-last."""
    S, B, H, W, Cin = x.shape
    K, _, C, Cout = w.shape
    Cf = Cout // 4
    assert C == Cin + Cf
    p = (K - 1) // 2
    G = W * Cf
    L = W * Cout
    Win = W * Cin
    T_BLK = next(t for t in (8, 4, 2, 1) if S % t == 0)

    whf, wxcol, bias_f, gamma_f, beta_f = _build_constants(
        w, b, gamma, beta, num_groups, W)

    # ---- pass 1: x-path conv (+ bias) as a single bf16 MXU matmul -------------
    xpad = jnp.pad(x.reshape(S, B, H, Win),
                   ((0, 0), (0, 0), (p, p), (0, 0)))                # (S,B,H+2p,W*Cin)
    xcol = jnp.concatenate([xpad[:, :, kh:kh + H, :] for kh in range(K)],
                           axis=-1)                                  # (S,B,H,K*Win)
    xcol = xcol.reshape(S * B * H, K * Win).astype(jnp.bfloat16)
    gates_x = pl.pallas_call(
        _xconv_kernel,
        out_shape=jax.ShapeDtypeStruct((S * B * H, L), jnp.float32),
    )(xcol, wxcol, bias_f)
    gates_x = gates_x.reshape(S, B, H, L)

    # ---- pass 2: sequential recurrence; batch folded into matmul M dim --------
    kernel = functools.partial(_convlstm_kernel, float(eps), int(num_groups))
    hy_seq, cy = pl.pallas_call(
        kernel,
        out_shape=(
            jax.ShapeDtypeStruct((S, B, H, G), jnp.float32),
            jax.ShapeDtypeStruct((B, H, G), jnp.float32),
        ),
        grid_spec=pltpu.PrefetchScalarGridSpec(
            num_scalar_prefetch=0,
            grid=(S // T_BLK,),
            in_specs=[
                pl.BlockSpec((T_BLK, B, H, L), lambda t: (t, 0, 0, 0)),
                pl.BlockSpec((K * G, L), lambda t: (0, 0)),
                pl.BlockSpec((1, 1, L), lambda t: (0, 0, 0)),
                pl.BlockSpec((1, 1, L), lambda t: (0, 0, 0)),
            ],
            out_specs=(
                pl.BlockSpec((T_BLK, B, H, G), lambda t: (t, 0, 0, 0)),
                pl.BlockSpec((B, H, G), lambda t: (0, 0, 0)),
            ),
            scratch_shapes=[
                pltpu.VMEM((B, H, K * G), jnp.bfloat16),   # fused-tap hidden state
                pltpu.VMEM((B, H, G), jnp.float32),        # cell state
            ],
        ),
        compiler_params=pltpu.CompilerParams(
            dimension_semantics=("arbitrary",),
            vmem_limit_bytes=32 * 1024 * 1024),   # ~18 MiB used; fits v5e/v6e/v7x
    )(gates_x, whf, gamma_f, beta_f)

    hy_seq = hy_seq.reshape(S, B, H, W, Cf)
    cy = cy.reshape(B, H, W, Cf)
    hy = hy_seq[-1]
    return hy_seq, (hy, cy)


# ----------------------------------------------------------------------------
# Pure-JAX reference (same channels-last layout), full f32.
# ----------------------------------------------------------------------------
def convlstm_cell_reference(x, w, b, gamma, beta, num_groups, eps=1e-5):
    S, B, H, W, Cin = x.shape
    K, _, C, Cout = w.shape
    Cf = Cout // 4
    p = (K - 1) // 2
    h = jnp.zeros((B, H, W, Cf), jnp.float32)
    c = jnp.zeros((B, H, W, Cf), jnp.float32)
    outs = []
    for t in range(S):
        comb = jnp.concatenate([x[t], h], axis=-1)
        gates = lax.conv_general_dilated(
            comb, w, (1, 1), [(p, p), (p, p)],
            dimension_numbers=("NHWC", "HWIO", "NHWC")) + b
        Cg = Cout // num_groups
        g4 = gates.reshape(B, H * W, num_groups, Cg)
        mean = jnp.mean(g4, axis=(1, 3), keepdims=True)
        var = jnp.mean(jnp.square(g4 - mean), axis=(1, 3), keepdims=True)
        gn = ((g4 - mean) * lax.rsqrt(var + eps)).reshape(B, H, W, Cout)
        gn = gn * gamma + beta
        i_g = jax.nn.sigmoid(gn[..., 0:Cf])
        f_g = jax.nn.sigmoid(gn[..., Cf:2 * Cf])
        g_g = jnp.tanh(gn[..., 2 * Cf:3 * Cf])
        o_g = jax.nn.sigmoid(gn[..., 3 * Cf:4 * Cf])
        c = f_g * c + i_g * g_g
        h = o_g * jnp.tanh(c)
        outs.append(h)
    return jnp.stack(outs), (h, c)


if __name__ == "__main__":
    # CLSTM_cell(shape=(16,16), input_channels=4, filter_size=3, num_features=32)
    # TODO(synk): the inputs=None (zero-input) and externally supplied
    # hidden_state branches of forward() are not exercised (zero-init path only).
    H, W = 16, 16
    Cin = 4
    K = 3
    Cf = 32                       # num_features
    Cout = 4 * Cf                 # 128
    num_groups = Cout // 32       # GroupNorm(4*num_features//32, 4*num_features)
    S = 8                         # seq_len
    B = 2                         # batch
    C = Cin + Cf

    key = jax.random.PRNGKey(0)
    kx, kw, kb, kg, kbe = jax.random.split(key, 5)
    x = jax.random.normal(kx, (S, B, H, W, Cin), jnp.float32)
    w = jax.random.normal(kw, (K, K, C, Cout), jnp.float32) * 0.1
    b = jax.random.normal(kb, (Cout,), jnp.float32) * 0.1
    gamma = 1.0 + 0.1 * jax.random.normal(kg, (Cout,), jnp.float32)
    beta = 0.1 * jax.random.normal(kbe, (Cout,), jnp.float32)

    hy_seq, (hy, cy) = convlstm_cell_forward(x, w, b, gamma, beta, num_groups)
    jax.block_until_ready((hy_seq, hy, cy))

    ref_seq, (ref_hy, ref_cy) = convlstm_cell_reference(
        x, w, b, gamma, beta, num_groups)
    # bf16 MXU operands on BOTH conv paths (x path and the recurrent h path)
    # vs a pure-f32 reference => bf16-appropriate tolerance.
    np.testing.assert_allclose(np.asarray(hy_seq), np.asarray(ref_seq),
                               rtol=3e-2, atol=3e-2)
    np.testing.assert_allclose(np.asarray(cy), np.asarray(ref_cy),
                               rtol=3e-2, atol=3e-2)
    assert hy_seq.shape == (S, B, H, W, Cf)
    assert hy.shape == (B, H, W, Cf) and cy.shape == (B, H, W, Cf)

    print("KERNEL_OK")
</pallas_src>

<mosaic_0001>
module attributes {stable_mosaic.version = 11 : i64} {
  func.func @_xconv_kernel(%arg0: memref<256x192xbf16, #tpu.memory_space<vmem>>, %arg1: memref<192x2048xbf16, #tpu.memory_space<vmem>>, %arg2: memref<1x2048xf32, #tpu.memory_space<vmem>>, %arg3: memref<256x2048xf32, #tpu.memory_space<vmem>>) attributes {dimension_semantics = [], scalar_prefetch = 0 : i64, scratch_operands = 0 : i64, tpu.core_type = #tpu.core_type<tc>} {
    %c0 = arith.constant 0 : index
    %c0_0 = arith.constant 0 : index
    %0 = vector.load %arg0[%c0, %c0_0] : memref<256x192xbf16, #tpu.memory_space<vmem>>, vector<256x192xbf16>
    %c0_1 = arith.constant 0 : index
    %c0_2 = arith.constant 0 : index
    %1 = vector.load %arg1[%c0_1, %c0_2] : memref<192x2048xbf16, #tpu.memory_space<vmem>>, vector<192x2048xbf16>
    %cst = arith.constant dense<0.000000e+00> : vector<256x2048xf32>
    %2 = tpu.matmul %0, %1, %cst {dimension_numbers = #tpu.dot_dimension_numbers<[1], [0], [0], [1], [0, 0, 1, 1], [], []>} : vector<256x192xbf16>, vector<192x2048xbf16>, vector<256x2048xf32> -> vector<256x2048xf32>
    %c0_3 = arith.constant 0 : index
    %c0_4 = arith.constant 0 : index
    %3 = vector.load %arg2[%c0_3, %c0_4] : memref<1x2048xf32, #tpu.memory_space<vmem>>, vector<1x2048xf32>
    %4 = vector.broadcast %3 : vector<1x2048xf32> to vector<256x2048xf32>
    %5 = arith.addf %2, %4 : vector<256x2048xf32>
    %c0_5 = arith.constant 0 : index
    %c0_6 = arith.constant 0 : index
    %6 = vector.load %arg3[%c0_5, %c0_6] : memref<256x2048xf32, #tpu.memory_space<vmem>>, vector<256x2048xf32>
    tpu.vector_store %arg3[%c0_5, %c0_6], %5 {strides = array<i32>} : memref<256x2048xf32, #tpu.memory_space<vmem>>, vector<256x2048xf32>,
    return
  }
}

</mosaic_0001>

<llo_original>
// kernel: tpu_custom_call.1
$region0: #{tpu_custom_call.1}
  #allocation0 [shape = 'u32[]', space=smem, size = 0x4, offset = 0x4, fixed_abs, tag = 'smem constant byte address 0x4 - core index']
  #allocation1 [shape = 'u32[144,128]{1,0:T(1,128)}', space=vmem, size = 0x12000, scoped, tag = 'internal scratch']
  %s0 = inlined_call_operand.vmem [shape: bf16[256,192], index: 0, kind: input, shape index: {}]
  %s1 = inlined_call_operand.hbm [shape: bf16[192,2048], index: 1, kind: input, shape index: {}]
  %s2 = inlined_call_operand.hbm [shape: f32[1,2048], index: 2, kind: input, shape index: {}]
  %s3 = inlined_call_operand.hbm [shape: f32[256,2048], index: 3, kind: output, shape index: {}]
  %s4 = sld [smem:[#allocation0]]
  $region30: #{tpu_custom_call.1} parent=0
    _
  %s6 = ssub.s32 1, %s4
  %s7 = scalar_select 0, %s6, %s4
  $region1: #{tpu_custom_call.1} parent=0
    #allocation2 [shape = 'u8[786432]{0}', space=vmem, size = 0xc0000, scoped, tag = 'input window, operand 1, single buffered']
    #allocation3 [shape = 's32[1]{0}', space=sflag, size = 0x4, scoped, tag = 'scoped memory for tpu_custom_call.1']
    #allocation4 [shape = 's32[1]{0}', space=sflag, size = 0x4, scoped, tag = 'scoped memory for tpu_custom_call.1']
    #allocation5 [shape = 'u8[8192]{0}', space=vmem, size = 0x2000, scoped, tag = 'input window, operand 2, single buffered']
    #allocation6 [shape = 's32[1]{0}', space=sflag, size = 0x4, scoped, tag = 'scoped memory for tpu_custom_call.1']
    #allocation7 [shape = 'u8[2097152]{0}', space=vmem, size = 0x200000, scoped, tag = 'output window, operand 0, single buffered']
    %8 = vsyncpa [#allocation3], 0
    %9 = vsyncpa [#allocation6], 0
    %10 = vsyncpa [#allocation4], 0
    // Predicated region
    $region2: #{tpu_custom_call.1} parent=1 // pred_check
      _
    $region3: #{tpu_custom_call.1} parent=1 // pred_check_branch
      %12 = sbr.rel (0) target = $region5
    $region4: #{tpu_custom_call.1} parent=1 // pred_region
      _
    $region5: #{tpu_custom_call.1} parent=1 // pred_fallthru
      _
    // Predicated region
    $region6: #{tpu_custom_call.1} parent=1 // pred_check
      _
    $region7: #{tpu_custom_call.1} parent=1 // pred_check_branch
      %14 = sbr.rel (0) target = $region9
    $region8: #{tpu_custom_call.1} parent=1 // pred_region
      %s16 = ssub.s32 24576, 24576
      %17 = vsyncadd [#allocation3], %s16
      %s18 = sshll.u32 [#allocation2], 4
      %s19 = int_to_ptr.vmem [resolvable:$true] %s18
      %24 = dma.hbm_to_vmem [thread:$0]  %s1, 24576, %s19, [#allocation3], 1024, 1024, 64
    $region9: #{tpu_custom_call.1} parent=1 // pred_fallthru
      _
    // Predicated region
    $region10: #{tpu_custom_call.1} parent=1 // pred_check
      _
    $region11: #{tpu_custom_call.1} parent=1 // pred_check_branch
      %26 = sbr.rel (0) target = $region13
    $region12: #{tpu_custom_call.1} parent=1 // pred_region
      %s28 = ssub.s32 256, 256
      %29 = vsyncadd [#allocation6], %s28
      %s31 = sshll.u32 [#allocation5], 4
      %s32 = int_to_ptr.vmem [resolvable:$true] %s31
      %34 = dma.hbm_to_vmem [thread:$0]  %s2, 256, %s32, [#allocation6]
    $region13: #{tpu_custom_call.1} parent=1 // pred_fallthru
      _
    // Predicated region
    $region14: #{tpu_custom_call.1} parent=1 // pred_check
      _
    $region15: #{tpu_custom_call.1} parent=1 // pred_check_branch
      %36 = sbr.rel (0) target = $region17
    $region16: #{tpu_custom_call.1} parent=1 // pred_region
      %37 = dma.done [#allocation3], 24576
    $region17: #{tpu_custom_call.1} parent=1 // pred_fallthru
      _
    // Predicated region
    $region18: #{tpu_custom_call.1} parent=1 // pred_check
      _
    $region19: #{tpu_custom_call.1} parent=1 // pred_check_branch
      %39 = sbr.rel (0) target = $region21
    $region20: #{tpu_custom_call.1} parent=1 // pred_region
      %40 = dma.done [#allocation6], 256
    $region21: #{tpu_custom_call.1} parent=1 // pred_fallthru
      _
    %v42 = vld [vmem:[%s0] sm:$0xff]
    %v43 = vld [vmem:[%s0 + $0x8] sm:$0xff]
    %v44 = vld [vmem:[%s0 + $0x10] sm:$0xff]
    %v45 = vld [vmem:[%s0 + $0x18] sm:$0xff]
    %v46 = vld [vmem:[%s0 + $0x20] sm:$0xff]
    %v47 = vld [vmem:[%s0 + $0x28] sm:$0xff]
    %v48 = vld [vmem:[%s0 + $0x30] sm:$0xff]
    %v49 = vld [vmem:[%s0 + $0x38] sm:$0xff]
    %v50 = vld [vmem:[%s0 + $0x40] sm:$0xff]
    %v51 = vld [vmem:[%s0 + $0x48] sm:$0xff]
    %v52 = vld [vmem:[%s0 + $0x50] sm:$0xff]
    %v53 = vld [vmem:[%s0 + $0x58] sm:$0xff]
    %v54 = vld [vmem:[%s0 + $0x60] sm:$0xff]
    %v55 = vld [vmem:[%s0 + $0x68] sm:$0xff]
    %v56 = vld [vmem:[%s0 + $0x70] sm:$0xff]
    %v57 = vld [vmem:[%s0 + $0x78] sm:$0xff]
    %v58 = vld [vmem:[%s0 + $0x80] sm:$0xff]
    %v59 = vld [vmem:[%s0 + $0x88] sm:$0xff]
    %v60 = vld [vmem:[%s0 + $0x90] sm:$0xff]
    %v61 = vld [vmem:[%s0 + $0x98] sm:$0xff]
    %v62 = vld [vmem:[%s0 + $0xa0] sm:$0xff]
    %v63 = vld [vmem:[%s0 + $0xa8] sm:$0xff]
    %v64 = vld [vmem:[%s0 + $0xb0] sm:$0xff]
    %v65 = vld [vmem:[%s0 + $0xb8] sm:$0xff]
    %v66 = vld [vmem:[%s0 + $0xc0] sm:$0xff]
    %v67 = vld [vmem:[%s0 + $0xc8] sm:$0xff]
    %v68 = vld [vmem:[%s0 + $0xd0] sm:$0xff]
    %v69 = vld [vmem:[%s0 + $0xd8] sm:$0xff]
    %v70 = vld [vmem:[%s0 + $0xe0] sm:$0xff]
    %v71 = vld [vmem:[%s0 + $0xe8] sm:$0xff]
    %v72 = vld [vmem:[%s0 + $0xf0] sm:$0xff]
    %v73 = vld [vmem:[%s0 + $0xf8] sm:$0xff]
    %v74 = vld [vmem:[#allocation2] sm:$0xff]
    %v75 = vld [vmem:[#allocation2 + $0x8] sm:$0xff]
    %v76 = vld [vmem:[#allocation2 + $0x10] sm:$0xff]
    %v77 = vld [vmem:[#allocation2 + $0x18] sm:$0xff]
    %v78 = vld [vmem:[#allocation2 + $0x20] sm:$0xff]
    %v79 = vld [vmem:[#allocation2 + $0x28] sm:$0xff]
    %v80 = vld [vmem:[#allocation2 + $0x30] sm:$0xff]
    %v81 = vld [vmem:[#allocation2 + $0x38] sm:$0xff]
    %v82 = vld [vmem:[#allocation2 + $0x40] sm:$0xff]
    %v83 = vld [vmem:[#allocation2 + $0x48] sm:$0xff]
    %v84 = vld [vmem:[#allocation2 + $0x50] sm:$0xff]
    %v85 = vld [vmem:[#allocation2 + $0x58] sm:$0xff]
    %v86 = vld [vmem:[#allocation2 + $0x60] sm:$0xff]
    %v87 = vld [vmem:[#allocation2 + $0x68] sm:$0xff]
    %v88 = vld [vmem:[#allocation2 + $0x70] sm:$0xff]
    %v89 = vld [vmem:[#allocation2 + $0x78] sm:$0xff]
    %v90 = vld [vmem:[#allocation2 + $0x80] sm:$0xff]
    %v91 = vld [vmem:[#allocation2 + $0x88] sm:$0xff]
    %v92 = vld [vmem:[#allocation2 + $0x90] sm:$0xff]
    %v93 = vld [vmem:[#allocation2 + $0x98] sm:$0xff]
    %v94 = vld [vmem:[#allocation2 + $0xa0] sm:$0xff]
    %v95 = vld [vmem:[#allocation2 + $0xa8] sm:$0xff]
    %v96 = vld [vmem:[#allocation2 + $0xb0] sm:$0xff]
    %v97 = vld [vmem:[#allocation2 + $0xb8] sm:$0xff]
    %v98 = vld [vmem:[#allocation2 + $0xc0] sm:$0xff]
    %v99 = vld [vmem:[#allocation2 + $0xc8] sm:$0xff]
    %v100 = vld [vmem:[#allocation2 + $0xd0] sm:$0xff]
    %v101 = vld [vmem:[#allocation2 + $0xd8] sm:$0xff]
    %v102 = vld [vmem:[#allocation2 + $0xe0] sm:$0xff]
    %v103 = vld [vmem:[#allocation2 + $0xe8] sm:$0xff]
    %v104 = vld [vmem:[#allocation2 + $0xf0] sm:$0xff]
    %v105 = vld [vmem:[#allocation2 + $0xf8] sm:$0xff]
    %v106 = vld [vmem:[#allocation2 + $0x100] sm:$0xff]
    %v107 = vld [vmem:[#allocation2 + $0x108] sm:$0xff]
    %v108 = vld [vmem:[#allocation2 + $0x110] sm:$0xff]
    %v109 = vld [vmem:[#allocation2 + $0x118] sm:$0xff]
    %v110 = vld [vmem:[#allocation2 + $0x120] sm:$0xff]
    %v111 = vld [vmem:[#allocation2 + $0x128] sm:$0xff]
    %v112 = vld [vmem:[#allocation2 + $0x130] sm:$0xff]
    %v113 = vld [vmem:[#allocation2 + $0x138] sm:$0xff]
    %v114 = vld [vmem:[#allocation2 + $0x140] sm:$0xff]
    %v115 = vld [vmem:[#allocation2 + $0x148] sm:$0xff]
    %v116 = vld [vmem:[#allocation2 + $0x150] sm:$0xff]
    %v117 = vld [vmem:[#allocation2 + $0x158] sm:$0xff]
    %v118 = vld [vmem:[#allocation2 + $0x160] sm:$0xff]
    %v119 = vld [vmem:[#allocation2 + $0x168] sm:$0xff]
    %v120 = vld [vmem:[#allocation2 + $0x170] sm:$0xff]
    %v121 = vld [vmem:[#allocation2 + $0x178] sm:$0xff]
    %v122 = vld [vmem:[#allocation2 + $0x180] sm:$0xff]
    %v123 = vld [vmem:[#allocation2 + $0x188] sm:$0xff]
    %v124 = vld [vmem:[#allocation2 + $0x190] sm:$0xff]
    %v125 = vld [vmem:[#allocation2 + $0x198] sm:$0xff]
    %v126 = vld [vmem:[#allocation2 + $0x1a0] sm:$0xff]
    %v127 = vld [vmem:[#allocation2 + $0x1a8] sm:$0xff]
    %v128 = vld [vmem:[#allocation2 + $0x1b0] sm:$0xff]
    %v129 = vld [vmem:[#allocation2 + $0x1b8] sm:$0xff]
    %v130 = vld [vmem:[#allocation2 + $0x1c0] sm:$0xff]
    %v131 = vld [vmem:[#allocation2 + $0x1c8] sm:$0xff]
    %v132 = vld [vmem:[#allocation2 + $0x1d0] sm:$0xff]
    %v133 = vld [vmem:[#allocation2 + $0x1d8] sm:$0xff]
    %v134 = vld [vmem:[#allocation2 + $0x1e0] sm:$0xff]
    %v135 = vld [vmem:[#allocation2 + $0x1e8] sm:$0xff]
    %v136 = vld [vmem:[#allocation2 + $0x1f0] sm:$0xff]
    %v137 = vld [vmem:[#allocation2 + $0x1f8] sm:$0xff]
    %v138 = vld [vmem:[#allocation2 + $0x200] sm:$0xff]
    %v139 = vld [vmem:[#allocation2 + $0x208] sm:$0xff]
    %v140 = vld [vmem:[#allocation2 + $0x210] sm:$0xff]
    %v141 = vld [vmem:[#allocation2 + $0x218] sm:$0xff]
    %v142 = vld [vmem:[#allocation2 + $0x220] sm:$0xff]
    %v143 = vld [vmem:[#allocation2 + $0x228] sm:$0xff]
    %v144 = vld [vmem:[#allocation2 + $0x230] sm:$0xff]
    %v145 = vld [vmem:[#allocation2 + $0x238] sm:$0xff]
    %v146 = vld [vmem:[#allocation2 + $0x240] sm:$0xff]
    %v147 = vld [vmem:[#allocation2 + $0x248] sm:$0xff]
    %v148 = vld [vmem:[#allocation2 + $0x250] sm:$0xff]
    %v149 = vld [vmem:[#allocation2 + $0x258] sm:$0xff]
    %v150 = vld [vmem:[#allocation2 + $0x260] sm:$0xff]
    %v151 = vld [vmem:[#allocation2 + $0x268] sm:$0xff]
    %v152 = vld [vmem:[#allocation2 + $0x270] sm:$0xff]
    %v153 = vld [vmem:[#allocation2 + $0x278] sm:$0xff]
    %v154 = vld [vmem:[#allocation2 + $0x280] sm:$0xff]
    %v155 = vld [vmem:[#allocation2 + $0x288] sm:$0xff]
    %v156 = vld [vmem:[#allocation2 + $0x290] sm:$0xff]
    %v157 = vld [vmem:[#allocation2 + $0x298] sm:$0xff]
    %v158 = vld [vmem:[#allocation2 + $0x2a0] sm:$0xff]
    %v159 = vld [vmem:[#allocation2 + $0x2a8] sm:$0xff]
    %v160 = vld [vmem:[#allocation2 + $0x2b0] sm:$0xff]
    %v161 = vld [vmem:[#allocation2 + $0x2b8] sm:$0xff]
    %v162 = vld [vmem:[#allocation2 + $0x2c0] sm:$0xff]
    %v163 = vld [vmem:[#allocation2 + $0x2c8] sm:$0xff]
    %v164 = vld [vmem:[#allocation2 + $0x2d0] sm:$0xff]
    %v165 = vld [vmem:[#allocation2 + $0x2d8] sm:$0xff]
    %v166 = vld [vmem:[#allocation2 + $0x2e0] sm:$0xff]
    %v167 = vld [vmem:[#allocation2 + $0x2e8] sm:$0xff]
    %v168 = vld [vmem:[#allocation2 + $0x2f0] sm:$0xff]
    %v169 = vld [vmem:[#allocation2 + $0x2f8] sm:$0xff]
    %v170 = vld [vmem:[#allocation2 + $0x300] sm:$0xff]
    %v171 = vld [vmem:[#allocation2 + $0x308] sm:$0xff]
    %v172 = vld [vmem:[#allocation2 + $0x310] sm:$0xff]
    %v173 = vld [vmem:[#allocation2 + $0x318] sm:$0xff]
    %v174 = vld [vmem:[#allocation2 + $0x320] sm:$0xff]
    %v175 = vld [vmem:[#allocation2 + $0x328] sm:$0xff]
    %v176 = vld [vmem:[#allocation2 + $0x330] sm:$0xff]
    %v177 = vld [vmem:[#allocation2 + $0x338] sm:$0xff]
    %v178 = vld [vmem:[#allocation2 + $0x340] sm:$0xff]
    %v179 = vld [vmem:[#allocation2 + $0x348] sm:$0xff]
    %v180 = vld [vmem:[#allocation2 + $0x350] sm:$0xff]
    %v181 = vld [vmem:[#allocation2 + $0x358] sm:$0xff]
    %v182 = vld [vmem:[#allocation2 + $0x360] sm:$0xff]
    %v183 = vld [vmem:[#allocation2 + $0x368] sm:$0xff]
    %v184 = vld [vmem:[#allocation2 + $0x370] sm:$0xff]
    %v185 = vld [vmem:[#allocation2 + $0x378] sm:$0xff]
    %v186 = vld [vmem:[#allocation2 + $0x380] sm:$0xff]
    %v187 = vld [vmem:[#allocation2 + $0x388] sm:$0xff]
    %v188 = vld [vmem:[#allocation2 + $0x390] sm:$0xff]
    %v189 = vld [vmem:[#allocation2 + $0x398] sm:$0xff]
    %v190 = vld [vmem:[#allocation2 + $0x3a0] sm:$0xff]
    %v191 = vld [vmem:[#allocation2 + $0x3a8] sm:$0xff]
    %v192 = vld [vmem:[#allocation2 + $0x3b0] sm:$0xff]
    %v193 = vld [vmem:[#allocation2 + $0x3b8] sm:$0xff]
    %v194 = vld [vmem:[#allocation2 + $0x3c0] sm:$0xff]
    %v195 = vld [vmem:[#allocation2 + $0x3c8] sm:$0xff]
    %v196 = vld [vmem:[#allocation2 + $0x3d0] sm:$0xff]
    %v197 = vld [vmem:[#allocation2 + $0x3d8] sm:$0xff]
    %v198 = vld [vmem:[#allocation2 + $0x3e0] sm:$0xff]
    %v199 = vld [vmem:[#allocation2 + $0x3e8] sm:$0xff]
    %v200 = vld [vmem:[#allocation2 + $0x3f0] sm:$0xff]
    %v201 = vld [vmem:[#allocation2 + $0x3f8] sm:$0xff]
    %v202 = vld [vmem:[#allocation2 + $0x400] sm:$0xff]
    %v203 = vld [vmem:[#allocation2 + $0x408] sm:$0xff]
    %v204 = vld [vmem:[#allocation2 + $0x410] sm:$0xff]
    %v205 = vld [vmem:[#allocation2 + $0x418] sm:$0xff]
    %v206 = vld [vmem:[#allocation2 + $0x420] sm:$0xff]
    %v207 = vld [vmem:[#allocation2 + $0x428] sm:$0xff]
    %v208 = vld [vmem:[#allocation2 + $0x430] sm:$0xff]
    %v209 = vld [vmem:[#allocation2 + $0x438] sm:$0xff]
    %v210 = vld [vmem:[#allocation2 + $0x440] sm:$0xff]
    %v211 = vld [vmem:[#allocation2 + $0x448] sm:$0xff]
    %v212 = vld [vmem:[#allocation2 + $0x450] sm:$0xff]
    %v213 = vld [vmem:[#allocation2 + $0x458] sm:$0xff]
    %v214 = vld [vmem:[#allocation2 + $0x460] sm:$0xff]
    %v215 = vld [vmem:[#allocation2 + $0x468] sm:$0xff]
    %v216 = vld [vmem:[#allocation2 + $0x470] sm:$0xff]
    %v217 = vld [vmem:[#allocation2 + $0x478] sm:$0xff]
    %v218 = vld [vmem:[#allocation2 + $0x480] sm:$0xff]
    %v219 = vld [vmem:[#allocation2 + $0x488] sm:$0xff]
    %v220 = vld [vmem:[#allocation2 + $0x490] sm:$0xff]
    %v221 = vld [vmem:[#allocation2 + $0x498] sm:$0xff]
    %v222 = vld [vmem:[#allocation2 + $0x4a0] sm:$0xff]
    %v223 = vld [vmem:[#allocation2 + $0x4a8] sm:$0xff]
    %v224 = vld [vmem:[#allocation2 + $0x4b0] sm:$0xff]
    %v225 = vld [vmem:[#allocation2 + $0x4b8] sm:$0xff]
    %v226 = vld [vmem:[#allocation2 + $0x4c0] sm:$0xff]
    %v227 = vld [vmem:[#allocation2 + $0x4c8] sm:$0xff]
    %v228 = vld [vmem:[#allocation2 + $0x4d0] sm:$0xff]
    %v229 = vld [vmem:[#allocation2 + $0x4d8] sm:$0xff]
    %v230 = vld [vmem:[#allocation2 + $0x4e0] sm:$0xff]
    %v231 = vld [vmem:[#allocation2 + $0x4e8] sm:$0xff]
    %v232 = vld [vmem:[#allocation2 + $0x4f0] sm:$0xff]
    %v233 = vld [vmem:[#allocation2 + $0x4f8] sm:$0xff]
    %v234 = vld [vmem:[#allocation2 + $0x500] sm:$0xff]
    %v235 = vld [vmem:[#allocation2 + $0x508] sm:$0xff]
    %v236 = vld [vmem:[#allocation2 + $0x510] sm:$0xff]
    %v237 = vld [vmem:[#allocation2 + $0x518] sm:$0xff]
    %v238 = vld [vmem:[#allocation2 + $0x520] sm:$0xff]
    %v239 = vld [vmem:[#allocation2 + $0x528] sm:$0xff]
    %v240 = vld [vmem:[#allocation2 + $0x530] sm:$0xff]
    %v241 = vld [vmem:[#allocation2 + $0x538] sm:$0xff]
    %v242 = vld [vmem:[#allocation2 + $0x540] sm:$0xff]
    %v243 = vld [vmem:[#allocation2 + $0x548] sm:$0xff]
    %v244 = vld [vmem:[#allocation2 + $0x550] sm:$0xff]
    %v245 = vld [vmem:[#allocation2 + $0x558] sm:$0xff]
    %v246 = vld [vmem:[#allocation2 + $0x560] sm:$0xff]
    %v247 = vld [vmem:[#allocation2 + $0x568] sm:$0xff]
    %v248 = vld [vmem:[#allocation2 + $0x570] sm:$0xff]
    %v249 = vld [vmem:[#allocation2 + $0x578] sm:$0xff]
    %v250 = vld [vmem:[#allocation2 + $0x580] sm:$0xff]
    %v251 = vld [vmem:[#allocation2 + $0x588] sm:$0xff]
    %v252 = vld [vmem:[#allocation2 + $0x590] sm:$0xff]
    %v253 = vld [vmem:[#allocation2 + $0x598] sm:$0xff]
    %v254 = vld [vmem:[#allocation2 + $0x5a0] sm:$0xff]
    %v255 = vld [vmem:[#allocation2 + $0x5a8] sm:$0xff]
    %v256 = vld [vmem:[#allocation2 + $0x5b0] sm:$0xff]
    %v257 = vld [vmem:[#allocation2 + $0x5b8] sm:$0xff]
    %v258 = vld [vmem:[#allocation2 + $0x5c0] sm:$0xff]
    %v259 = vld [vmem:[#allocation2 + $0x5c8] sm:$0xff]
    %v260 = vld [vmem:[#allocation2 + $0x5d0] sm:$0xff]
    %v261 = vld [vmem:[#allocation2 + $0x5d8] sm:$0xff]
    %v262 = vld [vmem:[#allocation2 + $0x5e0] sm:$0xff]
    %v263 = vld [vmem:[#allocation2 + $0x5e8] sm:$0xff]
    %v264 = vld [vmem:[#allocation2 + $0x5f0] sm:$0xff]
    %v265 = vld [vmem:[#allocation2 + $0x5f8] sm:$0xff]
    %v266 = vld [vmem:[#allocation5] sm:$0xff]
    %v267 = vld [vmem:[#allocation5 + $0x8] sm:$0xff]
    %v270 = vlaneseq
    %v271 = vshrl.u32 %v270, 7
    %v272 = vsub.s32 0, %v271
    %v273 = vrot.slane %v266, %v272
    %v274 = vlaneseq
    %v275 = vshrl.u32 %v274, 7
    %v276 = vsub.s32 1, %v275
    %v277 = vrot.slane %v266, %v276
    %v278 = vlaneseq
    %v279 = vshrl.u32 %v278, 7
    %v280 = vsub.s32 2, %v279
    %v281 = vrot.slane %v266, %v280
    %v282 = vlaneseq
    %v283 = vshrl.u32 %v282, 7
    %v284 = vsub.s32 3, %v283
    %v285 = vrot.slane %v266, %v284
    %v286 = vlaneseq
    %v287 = vshrl.u32 %v286, 7
    %v288 = vsub.s32 4, %v287
    %v289 = vrot.slane %v266, %v288
    %v290 = vlaneseq
    %v291 = vshrl.u32 %v290, 7
    %v292 = vsub.s32 5, %v291
    %v293 = vrot.slane %v266, %v292
    %v294 = vlaneseq
    %v295 = vshrl.u32 %v294, 7
    %v296 = vsub.s32 6, %v295
    %v297 = vrot.slane %v266, %v296
    %v298 = vlaneseq
    %v299 = vshrl.u32 %v298, 7
    %v300 = vsub.s32 7, %v299
    %v301 = vrot.slane %v266, %v300
    %v302 = vlaneseq
    %v303 = vshrl.u32 %v302, 7
    %v304 = vsub.s32 0, %v303
    %v305 = vrot.slane %v267, %v304
    %v306 = vlaneseq
    %v307 = vshrl.u32 %v306, 7
    %v308 = vsub.s32 1, %v307
    %v309 = vrot.slane %v267, %v308
    %v310 = vlaneseq
    %v311 = vshrl.u32 %v310, 7
    %v312 = vsub.s32 2, %v311
    %v313 = vrot.slane %v267, %v312
    %v314 = vlaneseq
    %v315 = vshrl.u32 %v314, 7
    %v316 = vsub.s32 3, %v315
    %v317 = vrot.slane %v267, %v316
    %v318 = vlaneseq
    %v319 = vshrl.u32 %v318, 7
    %v320 = vsub.s32 4, %v319
    %v321 = vrot.slane %v267, %v320
    %v322 = vlaneseq
    %v323 = vshrl.u32 %v322, 7
    %v324 = vsub.s32 5, %v323
    %v325 = vrot.slane %v267, %v324
    %v326 = vlaneseq
    %v327 = vshrl.u32 %v326, 7
    %v328 = vsub.s32 6, %v327
    %v329 = vrot.slane %v267, %v328
    %v330 = vlaneseq
    %v331 = vshrl.u32 %v330, 7
    %v332 = vsub.s32 7, %v331
    %v333 = vrot.slane %v267, %v332
    %v382 = vunpack.c.l.b16 %v42
    %v383 = vunpack.c.h.b16 %v42
    %v384 = vunpack.c.l.b16 %v43
    %v385 = vunpack.c.h.b16 %v43
    %v386 = vunpack.c.l.b16 %v44
    %v387 = vunpack.c.h.b16 %v44
    %v388 = vunpack.c.l.b16 %v45
    %v389 = vunpack.c.h.b16 %v45
    %v390 = vunpack.c.l.b16 %v46
    %v391 = vunpack.c.h.b16 %v46
    %v392 = vunpack.c.l.b16 %v47
    %v393 = vunpack.c.h.b16 %v47
    %v394 = vunpack.c.l.b16 %v48
    %v395 = vunpack.c.h.b16 %v48
    %v396 = vunpack.c.l.b16 %v49
    %v397 = vunpack.c.h.b16 %v49
    %v398 = vunpack.c.l.b16 %v50
    %v399 = vunpack.c.h.b16 %v50
    %v400 = vunpack.c.l.b16 %v51
    %v401 = vunpack.c.h.b16 %v51
    %v402 = vunpack.c.l.b16 %v52
    %v403 = vunpack.c.h.b16 %v52
    %v404 = vunpack.c.l.b16 %v53
    %v405 = vunpack.c.h.b16 %v53
    %v406 = vunpack.c.l.b16 %v54
    %v407 = vunpack.c.h.b16 %v54
    %v408 = vunpack.c.l.b16 %v55
    %v409 = vunpack.c.h.b16 %v55
    %v410 = vunpack.c.l.b16 %v56
    %v411 = vunpack.c.h.b16 %v56
    %v412 = vunpack.c.l.b16 %v57
    %v413 = vunpack.c.h.b16 %v57
    %v414 = vunpack.c.l.b16 %v58
    %v415 = vunpack.c.h.b16 %v58
    %v416 = vunpack.c.l.b16 %v59
    %v417 = vunpack.c.h.b16 %v59
    %v418 = vunpack.c.l.b16 %v60
    %v419 = vunpack.c.h.b16 %v60
    %v420 = vunpack.c.l.b16 %v61
    %v421 = vunpack.c.h.b16 %v61
    %v422 = vunpack.c.l.b16 %v62
    %v423 = vunpack.c.h.b16 %v62
    %v424 = vunpack.c.l.b16 %v63
    %v425 = vunpack.c.h.b16 %v63
    %v426 = vunpack.c.l.b16 %v64
    %v427 = vunpack.c.h.b16 %v64
    %v428 = vunpack.c.l.b16 %v65
    %v429 = vunpack.c.h.b16 %v65
    %v430 = vunpack.c.l.b16 %v66
    %v431 = vunpack.c.h.b16 %v66
    %v432 = vunpack.c.l.b16 %v67
    %v433 = vunpack.c.h.b16 %v67
    %v434 = vunpack.c.l.b16 %v68
    %v435 = vunpack.c.h.b16 %v68
    %v436 = vunpack.c.l.b16 %v69
    %v437 = vunpack.c.h.b16 %v69
    %v438 = vunpack.c.l.b16 %v70
    %v439 = vunpack.c.h.b16 %v70
    %v440 = vunpack.c.l.b16 %v71
    %v441 = vunpack.c.h.b16 %v71
    %v442 = vunpack.c.l.b16 %v72
    %v443 = vunpack.c.h.b16 %v72
    %v444 = vunpack.c.l.b16 %v73
    %v445 = vunpack.c.h.b16 %v73
    %v446 = vpack.c.b16 %v384, %v382
    %v447 = vpack.c.b16 %v385, %v383
    %v448 = vpack.c.b16 %v388, %v386
    %v449 = vpack.c.b16 %v389, %v387
    %v450 = vpack.c.b16 %v392, %v390
    %v451 = vpack.c.b16 %v393, %v391
    %v452 = vpack.c.b16 %v396, %v394
    %v453 = vpack.c.b16 %v397, %v395
    %v454 = vpack.c.b16 %v400, %v398
    %v455 = vpack.c.b16 %v401, %v399
    %v456 = vpack.c.b16 %v404, %v402
    %v457 = vpack.c.b16 %v405, %v403
    %v458 = vpack.c.b16 %v408, %v406
    %v459 = vpack.c.b16 %v409, %v407
    %v460 = vpack.c.b16 %v412, %v410
    %v461 = vpack.c.b16 %v413, %v411
    %v462 = vpack.c.b16 %v416, %v414
    %v463 = vpack.c.b16 %v417, %v415
    %v464 = vpack.c.b16 %v420, %v418
    %v465 = vpack.c.b16 %v421, %v419
    %v466 = vpack.c.b16 %v424, %v422
    %v467 = vpack.c.b16 %v425, %v423
    %v468 = vpack.c.b16 %v428, %v426
    %v469 = vpack.c.b16 %v429, %v427
    %v470 = vpack.c.b16 %v432, %v430
    %v471 = vpack.c.b16 %v433, %v431
    %v472 = vpack.c.b16 %v436, %v434
    %v473 = vpack.c.b16 %v437, %v435
    %v474 = vpack.c.b16 %v440, %v438
    %v475 = vpack.c.b16 %v441, %v439
    %v476 = vpack.c.b16 %v444, %v442
    %v477 = vpack.c.b16 %v445, %v443
    %v686 = vunpack.c.l.b16 %v74
    %v687 = vunpack.c.h.b16 %v74
    %v688 = vunpack.c.l.b16 %v75
    %v689 = vunpack.c.h.b16 %v75
    %v690 = vunpack.c.l.b16 %v76
    %v691 = vunpack.c.h.b16 %v76
    %v692 = vunpack.c.l.b16 %v77
    %v693 = vunpack.c.h.b16 %v77
    %v694 = vunpack.c.l.b16 %v78
    %v695 = vunpack.c.h.b16 %v78
    %v696 = vunpack.c.l.b16 %v79
    %v697 = vunpack.c.h.b16 %v79
    %v698 = vunpack.c.l.b16 %v80
    %v699 = vunpack.c.h.b16 %v80
    %v700 = vunpack.c.l.b16 %v81
    %v701 = vunpack.c.h.b16 %v81
    %v702 = vunpack.c.l.b16 %v82
    %v703 = vunpack.c.h.b16 %v82
    %v704 = vunpack.c.l.b16 %v83
    %v705 = vunpack.c.h.b16 %v83
    %v706 = vunpack.c.l.b16 %v84
    %v707 = vunpack.c.h.b16 %v84
    %v708 = vunpack.c.l.b16 %v85
    %v709 = vunpack.c.h.b16 %v85
    %v710 = vunpack.c.l.b16 %v86
    %v711 = vunpack.c.h.b16 %v86
    %v712 = vunpack.c.l.b16 %v87
    %v713 = vunpack.c.h.b16 %v87
    %v714 = vunpack.c.l.b16 %v88
    %v715 = vunpack.c.h.b16 %v88
    %v716 = vunpack.c.l.b16 %v89
    %v717 = vunpack.c.h.b16 %v89
    %v718 = vunpack.c.l.b16 %v90
    %v719 = vunpack.c.h.b16 %v90
    %v720 = vunpack.c.l.b16 %v91
    %v721 = vunpack.c.h.b16 %v91
    %v722 = vunpack.c.l.b16 %v92
    %v723 = vunpack.c.h.b16 %v92
    %v724 = vunpack.c.l.b16 %v93
    %v725 = vunpack.c.h.b16 %v93
    %v726 = vunpack.c.l.b16 %v94
    %v727 = vunpack.c.h.b16 %v94
    %v728 = vunpack.c.l.b16 %v95
    %v729 = vunpack.c.h.b16 %v95
    %v730 = vunpack.c.l.b16 %v96
    %v731 = vunpack.c.h.b16 %v96
    %v732 = vunpack.c.l.b16 %v97
    %v733 = vunpack.c.h.b16 %v97
    %v734 = vunpack.c.l.b16 %v98
    %v735 = vunpack.c.h.b16 %v98
    %v736 = vunpack.c.l.b16 %v99
    %v737 = vunpack.c.h.b16 %v99
    %v738 = vunpack.c.l.b16 %v100
    %v739 = vunpack.c.h.b16 %v100
    %v740 = vunpack.c.l.b16 %v101
    %v741 = vunpack.c.h.b16 %v101
    %v742 = vunpack.c.l.b16 %v102
    %v743 = vunpack.c.h.b16 %v102
    %v744 = vunpack.c.l.b16 %v103
    %v745 = vunpack.c.h.b16 %v103
    %v746 = vunpack.c.l.b16 %v104
    %v747 = vunpack.c.h.b16 %v104
    %v748 = vunpack.c.l.b16 %v105
    %v749 = vunpack.c.h.b16 %v105
    %v750 = vunpack.c.l.b16 %v106
    %v751 = vunpack.c.h.b16 %v106
    %v752 = vunpack.c.l.b16 %v107
    %v753 = vunpack.c.h.b16 %v107
    %v754 = vunpack.c.l.b16 %v108
    %v755 = vunpack.c.h.b16 %v108
    %v756 = vunpack.c.l.b16 %v109
    %v757 = vunpack.c.h.b16 %v109
    %v758 = vunpack.c.l.b16 %v110
    %v759 = vunpack.c.h.b16 %v110
    %v760 = vunpack.c.l.b16 %v111
    %v761 = vunpack.c.h.b16 %v111
    %v762 = vunpack.c.l.b16 %v112
    %v763 = vunpack.c.h.b16 %v112
    %v764 = vunpack.c.l.b16 %v113
    %v765 = vunpack.c.h.b16 %v113
    %v766 = vunpack.c.l.b16 %v114
    %v767 = vunpack.c.h.b16 %v114
    %v768 = vunpack.c.l.b16 %v115
    %v769 = vunpack.c.h.b16 %v115
    %v770 = vunpack.c.l.b16 %v116
    %v771 = vunpack.c.h.b16 %v116
    %v772 = vunpack.c.l.b16 %v117
    %v773 = vunpack.c.h.b16 %v117
    %v774 = vunpack.c.l.b16 %v118
    %v775 = vunpack.c.h.b16 %v118
    %v776 = vunpack.c.l.b16 %v119
    %v777 = vunpack.c.h.b16 %v119
    %v778 = vunpack.c.l.b16 %v120
    %v779 = vunpack.c.h.b16 %v120
    %v780 = vunpack.c.l.b16 %v121
    %v781 = vunpack.c.h.b16 %v121
    %v782 = vunpack.c.l.b16 %v122
    %v783 = vunpack.c.h.b16 %v122
    %v784 = vunpack.c.l.b16 %v123
    %v785 = vunpack.c.h.b16 %v123
    %v786 = vunpack.c.l.b16 %v124
    %v787 = vunpack.c.h.b16 %v124
    %v788 = vunpack.c.l.b16 %v125
    %v789 = vunpack.c.h.b16 %v125
    %v790 = vunpack.c.l.b16 %v126
    %v791 = vunpack.c.h.b16 %v126
    %v792 = vunpack.c.l.b16 %v127
    %v793 = vunpack.c.h.b16 %v127
    %v794 = vunpack.c.l.b16 %v128
    %v795 = vunpack.c.h.b16 %v128
    %v796 = vunpack.c.l.b16 %v129
    %v797 = vunpack.c.h.b16 %v129
    %v798 = vunpack.c.l.b16 %v130
    %v799 = vunpack.c.h.b16 %v130
    %v800 = vunpack.c.l.b16 %v131
    %v801 = vunpack.c.h.b16 %v131
    %v802 = vunpack.c.l.b16 %v132
    %v803 = vunpack.c.h.b16 %v132
    %v804 = vunpack.c.l.b16 %v133
    %v805 = vunpack.c.h.b16 %v133
    %v806 = vunpack.c.l.b16 %v134
    %v807 = vunpack.c.h.b16 %v134
    %v808 = vunpack.c.l.b16 %v135
    %v809 = vunpack.c.h.b16 %v135
    %v810 = vunpack.c.l.b16 %v136
    %v811 = vunpack.c.h.b16 %v136
    %v812 = vunpack.c.l.b16 %v137
    %v813 = vunpack.c.h.b16 %v137
    %v814 = vunpack.c.l.b16 %v138
    %v815 = vunpack.c.h.b16 %v138
    %v816 = vunpack.c.l.b16 %v139
    %v817 = vunpack.c.h.b16 %v139
    %v818 = vunpack.c.l.b16 %v140
    %v819 = vunpack.c.h.b16 %v140
    %v820 = vunpack.c.l.b16 %v141
    %v821 = vunpack.c.h.b16 %v141
    %v822 = vunpack.c.l.b16 %v142
    %v823 = vunpack.c.h.b16 %v142
    %v824 = vunpack.c.l.b16 %v143
    %v825 = vunpack.c.h.b16 %v143
    %v826 = vunpack.c.l.b16 %v144
    %v827 = vunpack.c.h.b16 %v144
    %v828 = vunpack.c.l.b16 %v145
    %v829 = vunpack.c.h.b16 %v145
    %v830 = vunpack.c.l.b16 %v146
    %v831 = vunpack.c.h.b16 %v146
    %v832 = vunpack.c.l.b16 %v147
    %v833 = vunpack.c.h.b16 %v147
    %v834 = vunpack.c.l.b16 %v148
    %v835 = vunpack.c.h.b16 %v148
    %v836 = vunpack.c.l.b16 %v149
    %v837 = vunpack.c.h.b16 %v149
    %v838 = vunpack.c.l.b16 %v150
    %v839 = vunpack.c.h.b16 %v150
    %v840 = vunpack.c.l.b16 %v151
    %v841 = vunpack.c.h.b16 %v151
    %v842 = vunpack.c.l.b16 %v152
    %v843 = vunpack.c.h.b16 %v152
    %v844 = vunpack.c.l.b16 %v153
    %v845 = vunpack.c.h.b16 %v153
    %v846 = vunpack.c.l.b16 %v154
    %v847 = vunpack.c.h.b16 %v154
    %v848 = vunpack.c.l.b16 %v155
    %v849 = vunpack.c.h.b16 %v155
    %v850 = vunpack.c.l.b16 %v156
    %v851 = vunpack.c.h.b16 %v156
    %v852 = vunpack.c.l.b16 %v157
    %v853 = vunpack.c.h.b16 %v157
    %v854 = vunpack.c.l.b16 %v158
    %v855 = vunpack.c.h.b16 %v158
    %v856 = vunpack.c.l.b16 %v159
    %v857 = vunpack.c.h.b16 %v159
    %v858 = vunpack.c.l.b16 %v160
    %v859 = vunpack.c.h.b16 %v160
    %v860 = vunpack.c.l.b16 %v161
    %v861 = vunpack.c.h.b16 %v161
    %v862 = vunpack.c.l.b16 %v162
    %v863 = vunpack.c.h.b16 %v162
    %v864 = vunpack.c.l.b16 %v163
    %v865 = vunpack.c.h.b16 %v163
    %v866 = vunpack.c.l.b16 %v164
    %v867 = vunpack.c.h.b16 %v164
    %v868 = vunpack.c.l.b16 %v165
    %v869 = vunpack.c.h.b16 %v165
    %v870 = vunpack.c.l.b16 %v166
    %v871 = vunpack.c.h.b16 %v166
    %v872 = vunpack.c.l.b16 %v167
    %v873 = vunpack.c.h.b16 %v167
    %v874 = vunpack.c.l.b16 %v168
    %v875 = vunpack.c.h.b16 %v168
    %v876 = vunpack.c.l.b16 %v169
    %v877 = vunpack.c.h.b16 %v169
    %v878 = vunpack.c.l.b16 %v170
    %v879 = vunpack.c.h.b16 %v170
    %v880 = vunpack.c.l.b16 %v171
    %v881 = vunpack.c.h.b16 %v171
    %v882 = vunpack.c.l.b16 %v172
    %v883 = vunpack.c.h.b16 %v172
    %v884 = vunpack.c.l.b16 %v173
    %v885 = vunpack.c.h.b16 %v173
    %v886 = vunpack.c.l.b16 %v174
    %v887 = vunpack.c.h.b16 %v174
    %v888 = vunpack.c.l.b16 %v175
    %v889 = vunpack.c.h.b16 %v175
    %v890 = vunpack.c.l.b16 %v176
    %v891 = vunpack.c.h.b16 %v176
    %v892 = vunpack.c.l.b16 %v177
    %v893 = vunpack.c.h.b16 %v177
    %v894 = vunpack.c.l.b16 %v178
    %v895 = vunpack.c.h.b16 %v178
    %v896 = vunpack.c.l.b16 %v179
    %v897 = vunpack.c.h.b16 %v179
    %v898 = vunpack.c.l.b16 %v180
    %v899 = vunpack.c.h.b16 %v180
    %v900 = vunpack.c.l.b16 %v181
    %v901 = vunpack.c.h.b16 %v181
    %v902 = vunpack.c.l.b16 %v182
    %v903 = vunpack.c.h.b16 %v182
    %v904 = vunpack.c.l.b16 %v183
    %v905 = vunpack.c.h.b16 %v183
    %v906 = vunpack.c.l.b16 %v184
    %v907 = vunpack.c.h.b16 %v184
    %v908 = vunpack.c.l.b16 %v185
    %v909 = vunpack.c.h.b16 %v185
    %v910 = vunpack.c.l.b16 %v186
    %v911 = vunpack.c.h.b16 %v186
    %v912 = vunpack.c.l.b16 %v187
    %v913 = vunpack.c.h.b16 %v187
    %v914 = vunpack.c.l.b16 %v188
    %v915 = vunpack.c.h.b16 %v188
    %v916 = vunpack.c.l.b16 %v189
    %v917 = vunpack.c.h.b16 %v189
    %v918 = vunpack.c.l.b16 %v190
    %v919 = vunpack.c.h.b16 %v190
    %v920 = vunpack.c.l.b16 %v191
    %v921 = vunpack.c.h.b16 %v191
    %v922 = vunpack.c.l.b16 %v192
    %v923 = vunpack.c.h.b16 %v192
    %v924 = vunpack.c.l.b16 %v193
    %v925 = vunpack.c.h.b16 %v193
    %v926 = vunpack.c.l.b16 %v194
    %v927 = vunpack.c.h.b16 %v194
    %v928 = vunpack.c.l.b16 %v195
    %v929 = vunpack.c.h.b16 %v195
    %v930 = vunpack.c.l.b16 %v196
    %v931 = vunpack.c.h.b16 %v196
    %v932 = vunpack.c.l.b16 %v197
    %v933 = vunpack.c.h.b16 %v197
    %v934 = vunpack.c.l.b16 %v198
    %v935 = vunpack.c.h.b16 %v198
    %v936 = vunpack.c.l.b16 %v199
    %v937 = vunpack.c.h.b16 %v199
    %v938 = vunpack.c.l.b16 %v200
    %v939 = vunpack.c.h.b16 %v200
    %v940 = vunpack.c.l.b16 %v201
    %v941 = vunpack.c.h.b16 %v201
    %v942 = vunpack.c.l.b16 %v202
    %v943 = vunpack.c.h.b16 %v202
    %v944 = vunpack.c.l.b16 %v203
    %v945 = vunpack.c.h.b16 %v203
    %v946 = vunpack.c.l.b16 %v204
    %v947 = vunpack.c.h.b16 %v204
    %v948 = vunpack.c.l.b16 %v205
    %v949 = vunpack.c.h.b16 %v205
    %v950 = vunpack.c.l.b16 %v206
    %v951 = vunpack.c.h.b16 %v206
    %v952 = vunpack.c.l.b16 %v207
    %v953 = vunpack.c.h.b16 %v207
    %v954 = vunpack.c.l.b16 %v208
    %v955 = vunpack.c.h.b16 %v208
    %v956 = vunpack.c.l.b16 %v209
    %v957 = vunpack.c.h.b16 %v209
    %v958 = vunpack.c.l.b16 %v210
    %v959 = vunpack.c.h.b16 %v210
    %v960 = vunpack.c.l.b16 %v211
    %v961 = vunpack.c.h.b16 %v211
    %v962 = vunpack.c.l.b16 %v212
    %v963 = vunpack.c.h.b16 %v212
    %v964 = vunpack.c.l.b16 %v213
    %v965 = vunpack.c.h.b16 %v213
    %v966 = vunpack.c.l.b16 %v214
    %v967 = vunpack.c.h.b16 %v214
    %v968 = vunpack.c.l.b16 %v215
    %v969 = vunpack.c.h.b16 %v215
    %v970 = vunpack.c.l.b16 %v216
    %v971 = vunpack.c.h.b16 %v216
    %v972 = vunpack.c.l.b16 %v217
    %v973 = vunpack.c.h.b16 %v217
    %v974 = vunpack.c.l.b16 %v218
    %v975 = vunpack.c.h.b16 %v218
    %v976 = vunpack.c.l.b16 %v219
    %v977 = vunpack.c.h.b16 %v219
    %v978 = vunpack.c.l.b16 %v220
    %v979 = vunpack.c.h.b16 %v220
    %v980 = vunpack.c.l.b16 %v221
    %v981 = vunpack.c.h.b16 %v221
    %v982 = vunpack.c.l.b16 %v222
    %v983 = vunpack.c.h.b16 %v222
    %v984 = vunpack.c.l.b16 %v223
    %v985 = vunpack.c.h.b16 %v223
    %v986 = vunpack.c.l.b16 %v224
    %v987 = vunpack.c.h.b16 %v224
    %v988 = vunpack.c.l.b16 %v225
    %v989 = vunpack.c.h.b16 %v225
    %v990 = vunpack.c.l.b16 %v226
    %v991 = vunpack.c.h.b16 %v226
    %v992 = vunpack.c.l.b16 %v227
    %v993 = vunpack.c.h.b16 %v227
    %v994 = vunpack.c.l.b16 %v228
    %v995 = vunpack.c.h.b16 %v228
    %v996 = vunpack.c.l.b16 %v229
    %v997 = vunpack.c.h.b16 %v229
    %v998 = vunpack.c.l.b16 %v230
    %v999 = vunpack.c.h.b16 %v230
    %v1000 = vunpack.c.l.b16 %v231
    %v1001 = vunpack.c.h.b16 %v231
    %v1002 = vunpack.c.l.b16 %v232
    %v1003 = vunpack.c.h.b16 %v232
    %v1004 = vunpack.c.l.b16 %v233
    %v1005 = vunpack.c.h.b16 %v233
    %v1006 = vunpack.c.l.b16 %v234
    %v1007 = vunpack.c.h.b16 %v234
    %v1008 = vunpack.c.l.b16 %v235
    %v1009 = vunpack.c.h.b16 %v235
    %v1010 = vunpack.c.l.b16 %v236
    %v1011 = vunpack.c.h.b16 %v236
    %v1012 = vunpack.c.l.b16 %v237
    %v1013 = vunpack.c.h.b16 %v237
    %v1014 = vunpack.c.l.b16 %v238
    %v1015 = vunpack.c.h.b16 %v238
    %v1016 = vunpack.c.l.b16 %v239
    %v1017 = vunpack.c.h.b16 %v239
    %v1018 = vunpack.c.l.b16 %v240
    %v1019 = vunpack.c.h.b16 %v240
    %v1020 = vunpack.c.l.b16 %v241
    %v1021 = vunpack.c.h.b16 %v241
    %v1022 = vunpack.c.l.b16 %v242
    %v1023 = vunpack.c.h.b16 %v242
    %v1024 = vunpack.c.l.b16 %v243
    %v1025 = vunpack.c.h.b16 %v243
    %v1026 = vunpack.c.l.b16 %v244
    %v1027 = vunpack.c.h.b16 %v244
    %v1028 = vunpack.c.l.b16 %v245
    %v1029 = vunpack.c.h.b16 %v245
    %v1030 = vunpack.c.l.b16 %v246
    %v1031 = vunpack.c.h.b16 %v246
    %v1032 = vunpack.c.l.b16 %v247
    %v1033 = vunpack.c.h.b16 %v247
    %v1034 = vunpack.c.l.b16 %v248
    %v1035 = vunpack.c.h.b16 %v248
    %v1036 = vunpack.c.l.b16 %v249
    %v1037 = vunpack.c.h.b16 %v249
    %v1038 = vunpack.c.l.b16 %v250
    %v1039 = vunpack.c.h.b16 %v250
    %v1040 = vunpack.c.l.b16 %v251
    %v1041 = vunpack.c.h.b16 %v251
    %v1042 = vunpack.c.l.b16 %v252
    %v1043 = vunpack.c.h.b16 %v252
    %v1044 = vunpack.c.l.b16 %v253
    %v1045 = vunpack.c.h.b16 %v253
    %v1046 = vunpack.c.l.b16 %v254
    %v1047 = vunpack.c.h.b16 %v254
    %v1048 = vunpack.c.l.b16 %v255
    %v1049 = vunpack.c.h.b16 %v255
    %v1050 = vunpack.c.l.b16 %v256
    %v1051 = vunpack.c.h.b16 %v256
    %v1052 = vunpack.c.l.b16 %v257
    %v1053 = vunpack.c.h.b16 %v257
    %v1054 = vunpack.c.l.b16 %v258
    %v1055 = vunpack.c.h.b16 %v258
    %v1056 = vunpack.c.l.b16 %v259
    %v1057 = vunpack.c.h.b16 %v259
    %v1058 = vunpack.c.l.b16 %v260
    %v1059 = vunpack.c.h.b16 %v260
    %v1060 = vunpack.c.l.b16 %v261
    %v1061 = vunpack.c.h.b16 %v261
    %v1062 = vunpack.c.l.b16 %v262
    %v1063 = vunpack.c.h.b16 %v262
    %v1064 = vunpack.c.l.b16 %v263
    %v1065 = vunpack.c.h.b16 %v263
    %v1066 = vunpack.c.l.b16 %v264
    %v1067 = vunpack.c.h.b16 %v264
    %v1068 = vunpack.c.l.b16 %v265
    %v1069 = vunpack.c.h.b16 %v265
    %v1070 = vpack.c.b16 %v702, %v686
    %v1071 = vpack.c.b16 %v703, %v687
    %v1072 = vpack.c.b16 %v704, %v688
    %v1073 = vpack.c.b16 %v705, %v689
    %v1074 = vpack.c.b16 %v706, %v690
    %v1075 = vpack.c.b16 %v707, %v691
    %v1076 = vpack.c.b16 %v708, %v692
    %v1077 = vpack.c.b16 %v709, %v693
    %v1078 = vpack.c.b16 %v710, %v694
    %v1079 = vpack.c.b16 %v711, %v695
    %v1080 = vpack.c.b16 %v712, %v696
    %v1081 = vpack.c.b16 %v713, %v697
    %v1082 = vpack.c.b16 %v714, %v698
    %v1083 = vpack.c.b16 %v715, %v699
    %v1084 = vpack.c.b16 %v716, %v700
    %v1085 = vpack.c.b16 %v717, %v701
    %v1086 = vpack.c.b16 %v734, %v718
    %v1087 = vpack.c.b16 %v735, %v719
    %v1088 = vpack.c.b16 %v736, %v720
    %v1089 = vpack.c.b16 %v737, %v721
    %v1090 = vpack.c.b16 %v738, %v722
    %v1091 = vpack.c.b16 %v739, %v723
    %v1092 = vpack.c.b16 %v740, %v724
    %v1093 = vpack.c.b16 %v741, %v725
    %v1094 = vpack.c.b16 %v742, %v726
    %v1095 = vpack.c.b16 %v743, %v727
    %v1096 = vpack.c.b16 %v744, %v728
    %v1097 = vpack.c.b16 %v745, %v729
    %v1098 = vpack.c.b16 %v746, %v730
    %v1099 = vpack.c.b16 %v747, %v731
    %v1100 = vpack.c.b16 %v748, %v732
    %v1101 = vpack.c.b16 %v749, %v733
    %v1102 = vpack.c.b16 %v766, %v750
    %v1103 = vpack.c.b16 %v767, %v751
    %v1104 = vpack.c.b16 %v768, %v752
    %v1105 = vpack.c.b16 %v769, %v753
    %v1106 = vpack.c.b16 %v770, %v754
    %v1107 = vpack.c.b16 %v771, %v755
    %v1108 = vpack.c.b16 %v772, %v756
    %v1109 = vpack.c.b16 %v773, %v757
    %v1110 = vpack.c.b16 %v774, %v758
    %v1111 = vpack.c.b16 %v775, %v759
    %v1112 = vpack.c.b16 %v776, %v760
    %v1113 = vpack.c.b16 %v777, %v761
    %v1114 = vpack.c.b16 %v778, %v762
    %v1115 = vpack.c.b16 %v779, %v763
    %v1116 = vpack.c.b16 %v780, %v764
    %v1117 = vpack.c.b16 %v781, %v765
    %v1118 = vpack.c.b16 %v798, %v782
    %v1119 = vpack.c.b16 %v799, %v783
    %v1120 = vpack.c.b16 %v800, %v784
    %v1121 = vpack.c.b16 %v801, %v785
    %v1122 = vpack.c.b16 %v802, %v786
    %v1123 = vpack.c.b16 %v803, %v787
    %v1124 = vpack.c.b16 %v804, %v788
    %v1125 = vpack.c.b16 %v805, %v789
    %v1126 = vpack.c.b16 %v806, %v790
    %v1127 = vpack.c.b16 %v807, %v791
    %v1128 = vpack.c.b16 %v808, %v792
    %v1129 = vpack.c.b16 %v809, %v793
    %v1130 = vpack.c.b16 %v810, %v794
    %v1131 = vpack.c.b16 %v811, %v795
    %v1132 = vpack.c.b16 %v812, %v796
    %v1133 = vpack.c.b16 %v813, %v797
    %v1134 = vpack.c.b16 %v830, %v814
    %v1135 = vpack.c.b16 %v831, %v815
    %v1136 = vpack.c.b16 %v832, %v816
    %v1137 = vpack.c.b16 %v833, %v817
    %v1138 = vpack.c.b16 %v834, %v818
    %v1139 = vpack.c.b16 %v835, %v819
    %v1140 = vpack.c.b16 %v836, %v820
    %v1141 = vpack.c.b16 %v837, %v821
    %v1142 = vpack.c.b16 %v838, %v822
    %v1143 = vpack.c.b16 %v839, %v823
    %v1144 = vpack.c.b16 %v840, %v824
    %v1145 = vpack.c.b16 %v841, %v825
    %v1146 = vpack.c.b16 %v842, %v826
    %v1147 = vpack.c.b16 %v843, %v827
    %v1148 = vpack.c.b16 %v844, %v828
    %v1149 = vpack.c.b16 %v845, %v829
    %v1150 = vpack.c.b16 %v862, %v846
    %v1151 = vpack.c.b16 %v863, %v847
    %v1152 = vpack.c.b16 %v864, %v848
    %v1153 = vpack.c.b16 %v865, %v849
    %v1154 = vpack.c.b16 %v866, %v850
    %v1155 = vpack.c.b16 %v867, %v851
    %v1156 = vpack.c.b16 %v868, %v852
    %v1157 = vpack.c.b16 %v869, %v853
    %v1158 = vpack.c.b16 %v870, %v854
    %v1159 = vpack.c.b16 %v871, %v855
    %v1160 = vpack.c.b16 %v872, %v856
    %v1161 = vpack.c.b16 %v873, %v857
    %v1162 = vpack.c.b16 %v874, %v858
    %v1163 = vpack.c.b16 %v875, %v859
    %v1164 = vpack.c.b16 %v876, %v860
    %v1165 = vpack.c.b16 %v877, %v861
    %v1166 = vpack.c.b16 %v894, %v878
    %v1167 = vpack.c.b16 %v895, %v879
    %v1168 = vpack.c.b16 %v896, %v880
    %v1169 = vpack.c.b16 %v897, %v881
    %v1170 = vpack.c.b16 %v898, %v882
    %v1171 = vpack.c.b16 %v899, %v883
    %v1172 = vpack.c.b16 %v900, %v884
    %v1173 = vpack.c.b16 %v901, %v885
    %v1174 = vpack.c.b16 %v902, %v886
    %v1175 = vpack.c.b16 %v903, %v887
    %v1176 = vpack.c.b16 %v904, %v888
    %v1177 = vpack.c.b16 %v905, %v889
    %v1178 = vpack.c.b16 %v906, %v890
    %v1179 = vpack.c.b16 %v907, %v891
    %v1180 = vpack.c.b16 %v908, %v892
    %v1181 = vpack.c.b16 %v909, %v893
    %v1182 = vpack.c.b16 %v926, %v910
    %v1183 = vpack.c.b16 %v927, %v911
    %v1184 = vpack.c.b16 %v928, %v912
    %v1185 = vpack.c.b16 %v929, %v913
    %v1186 = vpack.c.b16 %v930, %v914
    %v1187 = vpack.c.b16 %v931, %v915
    %v1188 = vpack.c.b16 %v932, %v916
    %v1189 = vpack.c.b16 %v933, %v917
    %v1190 = vpack.c.b16 %v934, %v918
    %v1191 = vpack.c.b16 %v935, %v919
    %v1192 = vpack.c.b16 %v936, %v920
    %v1193 = vpack.c.b16 %v937, %v921
    %v1194 = vpack.c.b16 %v938, %v922
    %v1195 = vpack.c.b16 %v939, %v923
    %v1196 = vpack.c.b16 %v940, %v924
    %v1197 = vpack.c.b16 %v941, %v925
    %v1198 = vpack.c.b16 %v958, %v942
    %v1199 = vpack.c.b16 %v959, %v943
    %v1200 = vpack.c.b16 %v960, %v944
    %v1201 = vpack.c.b16 %v961, %v945
    %v1202 = vpack.c.b16 %v962, %v946
    %v1203 = vpack.c.b16 %v963, %v947
    %v1204 = vpack.c.b16 %v964, %v948
    %v1205 = vpack.c.b16 %v965, %v949
    %v1206 = vpack.c.b16 %v966, %v950
    %v1207 = vpack.c.b16 %v967, %v951
    %v1208 = vpack.c.b16 %v968, %v952
    %v1209 = vpack.c.b16 %v969, %v953
    %v1210 = vpack.c.b16 %v970, %v954
    %v1211 = vpack.c.b16 %v971, %v955
    %v1212 = vpack.c.b16 %v972, %v956
    %v1213 = vpack.c.b16 %v973, %v957
    %v1214 = vpack.c.b16 %v990, %v974
    %v1215 = vpack.c.b16 %v991, %v975
    %v1216 = vpack.c.b16 %v992, %v976
    %v1217 = vpack.c.b16 %v993, %v977
    %v1218 = vpack.c.b16 %v994, %v978
    %v1219 = vpack.c.b16 %v995, %v979
    %v1220 = vpack.c.b16 %v996, %v980
    %v1221 = vpack.c.b16 %v997, %v981
    %v1222 = vpack.c.b16 %v998, %v982
    %v1223 = vpack.c.b16 %v999, %v983
    %v1224 = vpack.c.b16 %v1000, %v984
    %v1225 = vpack.c.b16 %v1001, %v985
    %v1226 = vpack.c.b16 %v1002, %v986
    %v1227 = vpack.c.b16 %v1003, %v987
    %v1228 = vpack.c.b16 %v1004, %v988
    %v1229 = vpack.c.b16 %v1005, %v989
    %v1230 = vpack.c.b16 %v1022, %v1006
    %v1231 = vpack.c.b16 %v1023, %v1007
    %v1232 = vpack.c.b16 %v1024, %v1008
    %v1233 = vpack.c.b16 %v1025, %v1009
    %v1234 = vpack.c.b16 %v1026, %v1010
    %v1235 = vpack.c.b16 %v1027, %v1011
    %v1236 = vpack.c.b16 %v1028, %v1012
    %v1237 = vpack.c.b16 %v1029, %v1013
    %v1238 = vpack.c.b16 %v1030, %v1014
    %v1239 = vpack.c.b16 %v1031, %v1015
    %v1240 = vpack.c.b16 %v1032, %v1016
    %v1241 = vpack.c.b16 %v1033, %v1017
    %v1242 = vpack.c.b16 %v1034, %v1018
    %v1243 = vpack.c.b16 %v1035, %v1019
    %v1244 = vpack.c.b16 %v1036, %v1020
    %v1245 = vpack.c.b16 %v1037, %v1021
    %v1246 = vpack.c.b16 %v1054, %v1038
    %v1247 = vpack.c.b16 %v1055, %v1039
    %v1248 = vpack.c.b16 %v1056, %v1040
    %v1249 = vpack.c.b16 %v1057, %v1041
    %v1250 = vpack.c.b16 %v1058, %v1042
    %v1251 = vpack.c.b16 %v1059, %v1043
    %v1252 = vpack.c.b16 %v1060, %v1044
    %v1253 = vpack.c.b16 %v1061, %v1045
    %v1254 = vpack.c.b16 %v1062, %v1046
    %v1255 = vpack.c.b16 %v1063, %v1047
    %v1256 = vpack.c.b16 %v1064, %v1048
    %v1257 = vpack.c.b16 %v1065, %v1049
    %v1258 = vpack.c.b16 %v1066, %v1050
    %v1259 = vpack.c.b16 %v1067, %v1051
    %v1260 = vpack.c.b16 %v1068, %v1052
    %v1261 = vpack.c.b16 %v1069, %v1053
    %vm1454 = vcmask 523264
    %v1456 = vsel %vm1454, %v447, 0
    %v1459 = vsel %vm1454, %v449, 0
    %v1462 = vsel %vm1454, %v451, 0
    %v1465 = vsel %vm1454, %v453, 0
    %v1468 = vsel %vm1454, %v455, 0
    %v1471 = vsel %vm1454, %v457, 0
    %v1474 = vsel %vm1454, %v459, 0
    %v1477 = vsel %vm1454, %v461, 0
    %v1480 = vsel %vm1454, %v463, 0
    %v1483 = vsel %vm1454, %v465, 0
    %v1486 = vsel %vm1454, %v467, 0
    %v1489 = vsel %vm1454, %v469, 0
    %v1492 = vsel %vm1454, %v471, 0
    %v1495 = vsel %vm1454, %v473, 0
    %v1498 = vsel %vm1454, %v475, 0
    %v1501 = vsel %vm1454, %v477, 0
    %1503 = vmatprep.subr.bf16.mxu0 %v1071
    %1504 = vmatpush1.bf16.msra.mxu0 %v1070
    %1505 = vmatprep.subr.bf16.mxu0 %v1087
    %1506 = vmatpush1.bf16.msra.mxu0 %v1086
    %1507 = vmatprep.subr.bf16.mxu0 %v1103
    %1508 = vmatpush1.bf16.msra.mxu0 %v1102
    %1509 = vmatprep.subr.bf16.mxu0 %v1119
    %1510 = vmatpush1.bf16.msra.mxu0 %v1118
    %1511 = vmatprep.subr.bf16.mxu0 %v1135
    %1512 = vmatpush1.bf16.msra.mxu0 %v1134
    %1513 = vmatprep.subr.bf16.mxu0 %v1151
    %1514 = vmatpush1.bf16.msra.mxu0 %v1150
    %1515 = vmatprep.subr.bf16.mxu0 %v1167
    %1516 = vmatpush1.bf16.msra.mxu0 %v1166
    %1517 = vmatprep.subr.bf16.mxu0 %v1183
    %1518 = vmatpush1.bf16.msra.mxu0 %v1182
    %1519 = vmatprep.subr.bf16.mxu0 %v1199
    %1520 = vmatpush1.bf16.msra.mxu0 %v1198
    %1521 = vmatprep.subr.bf16.mxu0 %v1215
    %1522 = vmatpush1.bf16.msra.mxu0 %v1214
    %1523 = vmatprep.subr.bf16.mxu0 %v1231
    %1524 = vmatpush1.bf16.msra.mxu0 %v1230
    %1525 = vmatprep.subr.bf16.mxu0 %v1247
    %1526 = vmatpush1.bf16.msra.mxu0 %v1246
    %1527 = vmatprep.subr.bf16.mxu0 0
    %1528 = vmatpush1.bf16.msra.mxu0 0
    %1529 = vmatprep.subr.bf16.mxu0 0
    %1530 = vmatpush1.bf16.msra.mxu0 0
    %1531 = vmatprep.subr.bf16.mxu0 0
    %1532 = vmatpush1.bf16.msra.mxu0 0
    %1533 = vmatprep.subr.bf16.mxu0 0
    %1534 = vmatpush1.bf16.msra.mxu0 0
    %1535 = vmatprep.mubr.bf16.mxu0 %v1456
    %1536 = vmatmul.mubr.bf16.gmra.mrb[0].mxu0 %v446
    %v1537 = vpop.f32.mrb[0].mxu0
    %v1538 = vadd.f32 %v273, %v1537
    %v1539 = vpop.f32.mrb[0].mxu0
    %v1540 = vadd.f32 %v277, %v1539
    %v1541 = vpop.f32.mrb[0].mxu0
    %v1542 = vadd.f32 %v273, %v1541
    %v1543 = vpop.f32.mrb[0].mxu0
    %v1544 = vadd.f32 %v277, %v1543
    %1545 = vmatprep.mubr.bf16.mxu0 %v1459
    %1546 = vmatmul.mubr.bf16.gmra.mrb[0].mxu0 %v448
    %v1547 = vpop.f32.mrb[0].mxu0
    %v1548 = vadd.f32 %v273, %v1547
    %v1549 = vpop.f32.mrb[0].mxu0
    %v1550 = vadd.f32 %v277, %v1549
    %v1551 = vpop.f32.mrb[0].mxu0
    %v1552 = vadd.f32 %v273, %v1551
    %v1553 = vpop.f32.mrb[0].mxu0
    %v1554 = vadd.f32 %v277, %v1553
    %1555 = vmatprep.mubr.bf16.mxu0 %v1462
    %1556 = vmatmul.mubr.bf16.gmra.mrb[0].mxu0 %v450
    %v1557 = vpop.f32.mrb[0].mxu0
    %v1558 = vadd.f32 %v273, %v1557
    %v1559 = vpop.f32.mrb[0].mxu0
    %v1560 = vadd.f32 %v277, %v1559
    %v1561 = vpop.f32.mrb[0].mxu0
    %v1562 = vadd.f32 %v273, %v1561
    %v1563 = vpop.f32.mrb[0].mxu0
    %v1564 = vadd.f32 %v277, %v1563
    %1565 = vmatprep.mubr.bf16.mxu0 %v1465
    %1566 = vmatmul.mubr.bf16.gmra.mrb[0].mxu0 %v452
    %v1567 = vpop.f32.mrb[0].mxu0
    %v1568 = vadd.f32 %v273, %v1567
    %v1569 = vpop.f32.mrb[0].mxu0
    %v1570 = vadd.f32 %v277, %v1569
    %v1571 = vpop.f32.mrb[0].mxu0
    %v1572 = vadd.f32 %v273, %v1571
    %v1573 = vpop.f32.mrb[0].mxu0
    %v1574 = vadd.f32 %v277, %v1573
    %1575 = vmatprep.mubr.bf16.mxu0 %v1468
    %1576 = vmatmul.mubr.bf16.gmra.mrb[0].mxu0 %v454
    %v1577 = vpop.f32.mrb[0].mxu0
    %v1578 = vadd.f32 %v273, %v1577
    %v1579 = vpop.f32.mrb[0].mxu0
    %v1580 = vadd.f32 %v277, %v1579
    %v1581 = vpop.f32.mrb[0].mxu0
    %v1582 = vadd.f32 %v273, %v1581
    %v1583 = vpop.f32.mrb[0].mxu0
    %v1584 = vadd.f32 %v277, %v1583
    %1585 = vmatprep.mubr.bf16.mxu0 %v1471
    %1586 = vmatmul.mubr.bf16.gmra.mrb[0].mxu0 %v456
    %v1587 = vpop.f32.mrb[0].mxu0
    %v1588 = vadd.f32 %v273, %v1587
    %v1589 = vpop.f32.mrb[0].mxu0
    %v1590 = vadd.f32 %v277, %v1589
    %v1591 = vpop.f32.mrb[0].mxu0
    %v1592 = vadd.f32 %v273, %v1591
    %v1593 = vpop.f32.mrb[0].mxu0
    %v1594 = vadd.f32 %v277, %v1593
    %1595 = vmatprep.mubr.bf16.mxu0 %v1474
    %1596 = vmatmul.mubr.bf16.gmra.mrb[0].mxu0 %v458
    %v1597 = vpop.f32.mrb[0].mxu0
    %v1598 = vadd.f32 %v273, %v1597
    %v1599 = vpop.f32.mrb[0].mxu0
    %v1600 = vadd.f32 %v277, %v1599
    %v1601 = vpop.f32.mrb[0].mxu0
    %v1602 = vadd.f32 %v273, %v1601
    %v1603 = vpop.f32.mrb[0].mxu0
    %v1604 = vadd.f32 %v277, %v1603
    %1605 = vmatprep.mubr.bf16.mxu0 %v1477
    %1606 = vmatmul.mubr.bf16.gmra.mrb[0].mxu0 %v460
    %v1607 = vpop.f32.mrb[0].mxu0
    %v1608 = vadd.f32 %v273, %v1607
    %v1609 = vpop.f32.mrb[0].mxu0
    %v1610 = vadd.f32 %v277, %v1609
    %v1611 = vpop.f32.mrb[0].mxu0
    %v1612 = vadd.f32 %v273, %v1611
    %v1613 = vpop.f32.mrb[0].mxu0
    %v1614 = vadd.f32 %v277, %v1613
    %1615 = vmatprep.mubr.bf16.mxu0 %v1480
    %1616 = vmatmul.mubr.bf16.gmra.mrb[0].mxu0 %v462
    %v1617 = vpop.f32.mrb[0].mxu0
    %v1618 = vadd.f32 %v273, %v1617
    %v1619 = vpop.f32.mrb[0].mxu0
    %v1620 = vadd.f32 %v277, %v1619
    %v1621 = vpop.f32.mrb[0].mxu0
    %v1622 = vadd.f32 %v273, %v1621
    %v1623 = vpop.f32.mrb[0].mxu0
    %v1624 = vadd.f32 %v277, %v1623
    %1625 = vmatprep.mubr.bf16.mxu0 %v1483
    %1626 = vmatmul.mubr.bf16.gmra.mrb[0].mxu0 %v464
    %v1627 = vpop.f32.mrb[0].mxu0
    %v1628 = vadd.f32 %v273, %v1627
    %v1629 = vpop.f32.mrb[0].mxu0
    %v1630 = vadd.f32 %v277, %v1629
    %v1631 = vpop.f32.mrb[0].mxu0
    %v1632 = vadd.f32 %v273, %v1631
    %v1633 = vpop.f32.mrb[0].mxu0
    %v1634 = vadd.f32 %v277, %v1633
    %1635 = vmatprep.mubr.bf16.mxu0 %v1486
    %1636 = vmatmul.mubr.bf16.gmra.mrb[0].mxu0 %v466
    %v1637 = vpop.f32.mrb[0].mxu0
    %v1638 = vadd.f32 %v273, %v1637
    %v1639 = vpop.f32.mrb[0].mxu0
    %v1640 = vadd.f32 %v277, %v1639
    %v1641 = vpop.f32.mrb[0].mxu0
    %v1642 = vadd.f32 %v273, %v1641
    %v1643 = vpop.f32.mrb[0].mxu0
    %v1644 = vadd.f32 %v277, %v1643
    %1645 = vmatprep.mubr.bf16.mxu0 %v1489
    %1646 = vmatmul.mubr.bf16.gmra.mrb[0].mxu0 %v468
    %v1647 = vpop.f32.mrb[0].mxu0
    %v1648 = vadd.f32 %v273, %v1647
    %v1649 = vpop.f32.mrb[0].mxu0
    %v1650 = vadd.f32 %v277, %v1649
    %v1651 = vpop.f32.mrb[0].mxu0
    %v1652 = vadd.f32 %v273, %v1651
    %v1653 = vpop.f32.mrb[0].mxu0
    %v1654 = vadd.f32 %v277, %v1653
    %1655 = vmatprep.mubr.bf16.mxu0 %v1492
    %1656 = vmatmul.mubr.bf16.gmra.mrb[0].mxu0 %v470
    %v1657 = vpop.f32.mrb[0].mxu0
    %v1658 = vadd.f32 %v273, %v1657
    %v1659 = vpop.f32.mrb[0].mxu0
    %v1660 = vadd.f32 %v277, %v1659
    %v1661 = vpop.f32.mrb[0].mxu0
    %v1662 = vadd.f32 %v273, %v1661
    %v1663 = vpop.f32.mrb[0].mxu0
    %v1664 = vadd.f32 %v277, %v1663
    %1665 = vmatprep.mubr.bf16.mxu0 %v1495
    %1666 = vmatmul.mubr.bf16.gmra.mrb[0].mxu0 %v472
    %v1667 = vpop.f32.mrb[0].mxu0
    %v1668 = vadd.f32 %v273, %v1667
    %v1669 = vpop.f32.mrb[0].mxu0
    %v1670 = vadd.f32 %v277, %v1669
    %v1671 = vpop.f32.mrb[0].mxu0
    %v1672 = vadd.f32 %v273, %v1671
    %v1673 = vpop.f32.mrb[0].mxu0
    %v1674 = vadd.f32 %v277, %v1673
    %1675 = vmatprep.mubr.bf16.mxu0 %v1498
    %1676 = vmatmul.mubr.bf16.gmra.mrb[0].mxu0 %v474
    %v1677 = vpop.f32.mrb[0].mxu0
    %v1678 = vadd.f32 %v273, %v1677
    %v1679 = vpop.f32.mrb[0].mxu0
    %v1680 = vadd.f32 %v277, %v1679
    %v1681 = vpop.f32.mrb[0].mxu0
    %v1682 = vadd.f32 %v273, %v1681
    %v1683 = vpop.f32.mrb[0].mxu0
    %v1684 = vadd.f32 %v277, %v1683
    %1685 = vmatprep.mubr.bf16.mxu0 %v1501
    %1686 = vmatmul.mubr.bf16.gmra.mrb[0].mxu0 %v476
    %v1687 = vpop.f32.mrb[0].mxu0
    %v1688 = vadd.f32 %v273, %v1687
    %v1689 = vpop.f32.mrb[0].mxu0
    %v1690 = vadd.f32 %v277, %v1689
    %v1691 = vpop.f32.mrb[0].mxu0
    %v1692 = vadd.f32 %v273, %v1691
    %v1693 = vpop.f32.mrb[0].mxu0
    %v1694 = vadd.f32 %v277, %v1693
    %1695 = vdwg.mxu0
    %1696 = vmatprep.subr.bf16.mxu0 %v1073
    %1697 = vmatpush1.bf16.msra.mxu0 %v1072
    %1698 = vmatprep.subr.bf16.mxu0 %v1089
    %1699 = vmatpush1.bf16.msra.mxu0 %v1088
    %1700 = vmatprep.subr.bf16.mxu0 %v1105
    %1701 = vmatpush1.bf16.msra.mxu0 %v1104
    %1702 = vmatprep.subr.bf16.mxu0 %v1121
    %1703 = vmatpush1.bf16.msra.mxu0 %v1120
    %1704 = vmatprep.subr.bf16.mxu0 %v1137
    %1705 = vmatpush1.bf16.msra.mxu0 %v1136
    %1706 = vmatprep.subr.bf16.mxu0 %v1153
    %1707 = vmatpush1.bf16.msra.mxu0 %v1152
    %1708 = vmatprep.subr.bf16.mxu0 %v1169
    %1709 = vmatpush1.bf16.msra.mxu0 %v1168
    %1710 = vmatprep.subr.bf16.mxu0 %v1185
    %1711 = vmatpush1.bf16.msra.mxu0 %v1184
    %1712 = vmatprep.subr.bf16.mxu0 %v1201
    %1713 = vmatpush1.bf16.msra.mxu0 %v1200
    %1714 = vmatprep.subr.bf16.mxu0 %v1217
    %1715 = vmatpush1.bf16.msra.mxu0 %v1216
    %1716 = vmatprep.subr.bf16.mxu0 %v1233
    %1717 = vmatpush1.bf16.msra.mxu0 %v1232
    %1718 = vmatprep.subr.bf16.mxu0 %v1249
    %1719 = vmatpush1.bf16.msra.mxu0 %v1248
    %1720 = vmatprep.subr.bf16.mxu0 0
    %1721 = vmatpush1.bf16.msra.mxu0 0
    %1722 = vmatprep.subr.bf16.mxu0 0
    %1723 = vmatpush1.bf16.msra.mxu0 0
    %1724 = vmatprep.subr.bf16.mxu0 0
    %1725 = vmatpush1.bf16.msra.mxu0 0
    %1726 = vmatprep.subr.bf16.mxu0 0
    %1727 = vmatpush1.bf16.msra.mxu0 0
    %1728 = vmatprep.mubr.bf16.mxu0 %v1456
    %1729 = vmatmul.mubr.bf16.gmra.mrb[0].mxu0 %v446
    %v1730 = vpop.f32.mrb[0].mxu0
    %v1731 = vadd.f32 %v281, %v1730
    %v1732 = vpop.f32.mrb[0].mxu0
    %v1733 = vadd.f32 %v285, %v1732
    %v1734 = vpop.f32.mrb[0].mxu0
    %v1735 = vadd.f32 %v281, %v1734
    %v1736 = vpop.f32.mrb[0].mxu0
    %v1737 = vadd.f32 %v285, %v1736
    %1738 = vmatprep.mubr.bf16.mxu0 %v1459
    %1739 = vmatmul.mubr.bf16.gmra.mrb[0].mxu0 %v448
    %v1740 = vpop.f32.mrb[0].mxu0
    %v1741 = vadd.f32 %v281, %v1740
    %v1742 = vpop.f32.mrb[0].mxu0
    %v1743 = vadd.f32 %v285, %v1742
    %v1744 = vpop.f32.mrb[0].mxu0
    %v1745 = vadd.f32 %v281, %v1744
    %v1746 = vpop.f32.mrb[0].mxu0
    %v1747 = vadd.f32 %v285, %v1746
    %1748 = vmatprep.mubr.bf16.mxu0 %v1462
    %1749 = vmatmul.mubr.bf16.gmra.mrb[0].mxu0 %v450
    %v1750 = vpop.f32.mrb[0].mxu0
    %v1751 = vadd.f32 %v281, %v1750
    %v1752 = vpop.f32.mrb[0].mxu0
    %v1753 = vadd.f32 %v285, %v1752
    %v1754 = vpop.f32.mrb[0].mxu0
    %v1755 = vadd.f32 %v281, %v1754
    %v1756 = vpop.f32.mrb[0].mxu0
    %v1757 = vadd.f32 %v285, %v1756
    %1758 = vmatprep.mubr.bf16.mxu0 %v1465
    %1759 = vmatmul.mubr.bf16.gmra.mrb[0].mxu0 %v452
    %v1760 = vpop.f32.mrb[0].mxu0
    %v1761 = vadd.f32 %v281, %v1760
    %v1762 = vpop.f32.mrb[0].mxu0
    %v1763 = vadd.f32 %v285, %v1762
    %v1764 = vpop.f32.mrb[0].mxu0
    %v1765 = vadd.f32 %v281, %v1764
    %v1766 = vpop.f32.mrb[0].mxu0
    %v1767 = vadd.f32 %v285, %v1766
    %1768 = vmatprep.mubr.bf16.mxu0 %v1468
    %1769 = vmatmul.mubr.bf16.gmra.mrb[0].mxu0 %v454
    %v1770 = vpop.f32.mrb[0].mxu0
    %v1771 = vadd.f32 %v281, %v1770
    %v1772 = vpop.f32.mrb[0].mxu0
    %v1773 = vadd.f32 %v285, %v1772
    %v1774 = vpop.f32.mrb[0].mxu0
    %v1775 = vadd.f32 %v281, %v1774
    %v1776 = vpop.f32.mrb[0].mxu0
    %v1777 = vadd.f32 %v285, %v1776
    %1778 = vmatprep.mubr.bf16.mxu0 %v1471
    %1779 = vmatmul.mubr.bf16.gmra.mrb[0].mxu0 %v456
    %v1780 = vpop.f32.mrb[0].mxu0
    %v1781 = vadd.f32 %v281, %v1780
    %v1782 = vpop.f32.mrb[0].mxu0
    %v1783 = vadd.f32 %v285, %v1782
    %v1784 = vpop.f32.mrb[0].mxu0
    %v1785 = vadd.f32 %v281, %v1784
    %v1786 = vpop.f32.mrb[0].mxu0
    %v1787 = vadd.f32 %v285, %v1786
    %1788 = vmatprep.mubr.bf16.mxu0 %v1474
    %1789 = vmatmul.mubr.bf16.gmra.mrb[0].mxu0 %v458
    %v1790 = vpop.f32.mrb[0].mxu0
    %v1791 = vadd.f32 %v281, %v1790
    %v1792 = vpop.f32.mrb[0].mxu0
    %v1793 = vadd.f32 %v285, %v1792
    %v1794 = vpop.f32.mrb[0].mxu0
    %v1795 = vadd.f32 %v281, %v1794
    %v1796 = vpop.f32.mrb[0].mxu0
    %v1797 = vadd.f32 %v285, %v1796
    %1798 = vmatprep.mubr.bf16.mxu0 %v1477
    %1799 = vmatmul.mubr.bf16.gmra.mrb[0].mxu0 %v460
    %v1800 = vpop.f32.mrb[0].mxu0
    %v1801 = vadd.f32 %v281, %v1800
    %v1802 = vpop.f32.mrb[0].mxu0
    %v1803 = vadd.f32 %v285, %v1802
    %v1804 = vpop.f32.mrb[0].mxu0
    %v1805 = vadd.f32 %v281, %v1804
    %v1806 = vpop.f32.mrb[0].mxu0
    %v1807 = vadd.f32 %v285, %v1806
    %1808 = vmatprep.mubr.bf16.mxu0 %v1480
    %1809 = vmatmul.mubr.bf16.gmra.mrb[0].mxu0 %v462
    %v1810 = vpop.f32.mrb[0].mxu0
    %v1811 = vadd.f32 %v281, %v1810
    %v1812 = vpop.f32.mrb[0].mxu0
    %v1813 = vadd.f32 %v285, %v1812
    %v1814 = vpop.f32.mrb[0].mxu0
    %v1815 = vadd.f32 %v281, %v1814
    %v1816 = vpop.f32.mrb[0].mxu0
    %v1817 = vadd.f32 %v285, %v1816
    %1818 = vmatprep.mubr.bf16.mxu0 %v1483
    %1819 = vmatmul.mubr.bf16.gmra.mrb[0].mxu0 %v464
    %v1820 = vpop.f32.mrb[0].mxu0
    %v1821 = vadd.f32 %v281, %v1820
    %v1822 = vpop.f32.mrb[0].mxu0
    %v1823 = vadd.f32 %v285, %v1822
    %v1824 = vpop.f32.mrb[0].mxu0
    %v1825 = vadd.f32 %v281, %v1824
    %v1826 = vpop.f32.mrb[0].mxu0
    %v1827 = vadd.f32 %v285, %v1826
    %1828 = vmatprep.mubr.bf16.mxu0 %v1486
    %1829 = vmatmul.mubr.bf16.gmra.mrb[0].mxu0 %v466
    %v1830 = vpop.f32.mrb[0].mxu0
    %v1831 = vadd.f32 %v281, %v1830
    %v1832 = vpop.f32.mrb[0].mxu0
    %v1833 = vadd.f32 %v285, %v1832
    %v1834 = vpop.f32.mrb[0].mxu0
    %v1835 = vadd.f32 %v281, %v1834
    %v1836 = vpop.f32.mrb[0].mxu0
    %v1837 = vadd.f32 %v285, %v1836
    %1838 = vmatprep.mubr.bf16.mxu0 %v1489
    %1839 = vmatmul.mubr.bf16.gmra.mrb[0].mxu0 %v468
    %v1840 = vpop.f32.mrb[0].mxu0
    %v1841 = vadd.f32 %v281, %v1840
    %v1842 = vpop.f32.mrb[0].mxu0
    %v1843 = vadd.f32 %v285, %v1842
    %v1844 = vpop.f32.mrb[0].mxu0
    %v1845 = vadd.f32 %v281, %v1844
    %v1846 = vpop.f32.mrb[0].mxu0
    %v1847 = vadd.f32 %v285, %v1846
    %1848 = vmatprep.mubr.bf16.mxu0 %v1492
    %1849 = vmatmul.mubr.bf16.gmra.mrb[0].mxu0 %v470
    %v1850 = vpop.f32.mrb[0].mxu0
    %v1851 = vadd.f32 %v281, %v1850
    %v1852 = vpop.f32.mrb[0].mxu0
    %v1853 = vadd.f32 %v285, %v1852
    %v1854 = vpop.f32.mrb[0].mxu0
    %v1855 = vadd.f32 %v281, %v1854
    %v1856 = vpop.f32.mrb[0].mxu0
    %v1857 = vadd.f32 %v285, %v1856
    %1858 = vmatprep.mubr.bf16.mxu0 %v1495
    %1859 = vmatmul.mubr.bf16.gmra.mrb[0].mxu0 %v472
    %v1860 = vpop.f32.mrb[0].mxu0
    %v1861 = vadd.f32 %v281, %v1860
    %v1862 = vpop.f32.mrb[0].mxu0
    %v1863 = vadd.f32 %v285, %v1862
    %v1864 = vpop.f32.mrb[0].mxu0
    %v1865 = vadd.f32 %v281, %v1864
    %v1866 = vpop.f32.mrb[0].mxu0
    %v1867 = vadd.f32 %v285, %v1866
    %1868 = vmatprep.mubr.bf16.mxu0 %v1498
    %1869 = vmatmul.mubr.bf16.gmra.mrb[0].mxu0 %v474
    %v1870 = vpop.f32.mrb[0].mxu0
    %v1871 = vadd.f32 %v281, %v1870
    %v1872 = vpop.f32.mrb[0].mxu0
    %v1873 = vadd.f32 %v285, %v1872
    %v1874 = vpop.f32.mrb[0].mxu0
    %v1875 = vadd.f32 %v281, %v1874
    %v1876 = vpop.f32.mrb[0].mxu0
    %v1877 = vadd.f32 %v285, %v1876
    %1878 = vmatprep.mubr.bf16.mxu0 %v1501
    %1879 = vmatmul.mubr.bf16.gmra.mrb[0].mxu0 %v476
    %v1880 = vpop.f32.mrb[0].mxu0
    %v1881 = vadd.f32 %v281, %v1880
    %v1882 = vpop.f32.mrb[0].mxu0
    %v1883 = vadd.f32 %v285, %v1882
    %v1884 = vpop.f32.mrb[0].mxu0
    %v1885 = vadd.f32 %v281, %v1884
    %v1886 = vpop.f32.mrb[0].mxu0
    %v1887 = vadd.f32 %v285, %v1886
    %1888 = vdwg.mxu0
    %1889 = vmatprep.subr.bf16.mxu0 %v1075
    %1890 = vmatpush1.bf16.msra.mxu0 %v1074
    %1891 = vmatprep.subr.bf16.mxu0 %v1091
    %1892 = vmatpush1.bf16.msra.mxu0 %v1090
    %1893 = vmatprep.subr.bf16.mxu0 %v1107
    %1894 = vmatpush1.bf16.msra.mxu0 %v1106
    %1895 = vmatprep.subr.bf16.mxu0 %v1123
    %1896 = vmatpush1.bf16.msra.mxu0 %v1122
    %1897 = vmatprep.subr.bf16.mxu0 %v1139
    %1898 = vmatpush1.bf16.msra.mxu0 %v1138
    %1899 = vmatprep.subr.bf16.mxu0 %v1155
    %1900 = vmatpush1.bf16.msra.mxu0 %v1154
    %1901 = vmatprep.subr.bf16.mxu0 %v1171
    %1902 = vmatpush1.bf16.msra.mxu0 %v1170
    %1903 = vmatprep.subr.bf16.mxu0 %v1187
    %1904 = vmatpush1.bf16.msra.mxu0 %v1186
    %1905 = vmatprep.subr.bf16.mxu0 %v1203
    %1906 = vmatpush1.bf16.msra.mxu0 %v1202
    %1907 = vmatprep.subr.bf16.mxu0 %v1219
    %1908 = vmatpush1.bf16.msra.mxu0 %v1218
    %1909 = vmatprep.subr.bf16.mxu0 %v1235
    %1910 = vmatpush1.bf16.msra.mxu0 %v1234
    %1911 = vmatprep.subr.bf16.mxu0 %v1251
    %1912 = vmatpush1.bf16.msra.mxu0 %v1250
    %1913 = vmatprep.subr.bf16.mxu0 0
    %1914 = vmatpush1.bf16.msra.mxu0 0
    %1915 = vmatprep.subr.bf16.mxu0 0
    %1916 = vmatpush1.bf16.msra.mxu0 0
    %1917 = vmatprep.subr.bf16.mxu0 0
    %1918 = vmatpush1.bf16.msra.mxu0 0
    %1919 = vmatprep.subr.bf16.mxu0 0
    %1920 = vmatpush1.bf16.msra.mxu0 0
    %1921 = vmatprep.mubr.bf16.mxu0 %v1456
    %1922 = vmatmul.mubr.bf16.gmra.mrb[0].mxu0 %v446
    %v1923 = vpop.f32.mrb[0].mxu0
    %v1924 = vadd.f32 %v289, %v1923
    %v1925 = vpop.f32.mrb[0].mxu0
    %v1926 = vadd.f32 %v293, %v1925
    %v1927 = vpop.f32.mrb[0].mxu0
    %v1928 = vadd.f32 %v289, %v1927
    %v1929 = vpop.f32.mrb[0].mxu0
    %v1930 = vadd.f32 %v293, %v1929
    %1931 = vmatprep.mubr.bf16.mxu0 %v1459
    %1932 = vmatmul.mubr.bf16.gmra.mrb[0].mxu0 %v448
    %v1933 = vpop.f32.mrb[0].mxu0
    %v1934 = vadd.f32 %v289, %v1933
    %v1935 = vpop.f32.mrb[0].mxu0
    %v1936 = vadd.f32 %v293, %v1935
    %v1937 = vpop.f32.mrb[0].mxu0
    %v1938 = vadd.f32 %v289, %v1937
    %v1939 = vpop.f32.mrb[0].mxu0
    %v1940 = vadd.f32 %v293, %v1939
    %1941 = vmatprep.mubr.bf16.mxu0 %v1462
    %1942 = vmatmul.mubr.bf16.gmra.mrb[0].mxu0 %v450
    %v1943 = vpop.f32.mrb[0].mxu0
    %v1944 = vadd.f32 %v289, %v1943
    %v1945 = vpop.f32.mrb[0].mxu0
    %v1946 = vadd.f32 %v293, %v1945
    %v1947 = vpop.f32.mrb[0].mxu0
    %v1948 = vadd.f32 %v289, %v1947
    %v1949 = vpop.f32.mrb[0].mxu0
    %v1950 = vadd.f32 %v293, %v1949
    %1951 = vmatprep.mubr.bf16.mxu0 %v1465
    %1952 = vmatmul.mubr.bf16.gmra.mrb[0].mxu0 %v452
    %v1953 = vpop.f32.mrb[0].mxu0
    %v1954 = vadd.f32 %v289, %v1953
    %v1955 = vpop.f32.mrb[0].mxu0
    %v1956 = vadd.f32 %v293, %v1955
    %v1957 = vpop.f32.mrb[0].mxu0
    %v1958 = vadd.f32 %v289, %v1957
    %v1959 = vpop.f32.mrb[0].mxu0
    %v1960 = vadd.f32 %v293, %v1959
    %1961 = vmatprep.mubr.bf16.mxu0 %v1468
    %1962 = vmatmul.mubr.bf16.gmra.mrb[0].mxu0 %v454
    %v1963 = vpop.f32.mrb[0].mxu0
    %v1964 = vadd.f32 %v289, %v1963
    %v1965 = vpop.f32.mrb[0].mxu0
    %v1966 = vadd.f32 %v293, %v1965
    %v1967 = vpop.f32.mrb[0].mxu0
    %v1968 = vadd.f32 %v289, %v1967
    %v1969 = vpop.f32.mrb[0].mxu0
    %v1970 = vadd.f32 %v293, %v1969
    %1971 = vmatprep.mubr.bf16.mxu0 %v1471
    %1972 = vmatmul.mubr.bf16.gmra.mrb[0].mxu0 %v456
    %v1973 = vpop.f32.mrb[0].mxu0
    %v1974 = vadd.f32 %v289, %v1973
    %v1975 = vpop.f32.mrb[0].mxu0
    %v1976 = vadd.f32 %v293, %v1975
    %v1977 = vpop.f32.mrb[0].mxu0
    %v1978 = vadd.f32 %v289, %v1977
    %v1979 = vpop.f32.mrb[0].mxu0
    %v1980 = vadd.f32 %v293, %v1979
    %1981 = vmatprep.mubr.bf16.mxu0 %v1474
    %1982 = vmatmul.mubr.bf16.gmra.mrb[0].mxu0 %v458
    %v1983 = vpop.f32.mrb[0].mxu0
    %v1984 = vadd.f32 %v289, %v1983
    %v1985 = vpop.f32.mrb[0].mxu0
    %v1986 = vadd.f32 %v293, %v1985
    %v1987 = vpop.f32.mrb[0].mxu0
    %v1988 = vadd.f32 %v289, %v1987
    %v1989 = vpop.f32.mrb[0].mxu0
    %v1990 = vadd.f32 %v293, %v1989
    %1991 = vmatprep.mubr.bf16.mxu0 %v1477
    %1992 = vmatmul.mubr.bf16.gmra.mrb[0].mxu0 %v460
    %v1993 = vpop.f32.mrb[0].mxu0
    %v1994 = vadd.f32 %v289, %v1993
    %v1995 = vpop.f32.mrb[0].mxu0
    %v1996 = vadd.f32 %v293, %v1995
    %v1997 = vpop.f32.mrb[0].mxu0
    %v1998 = vadd.f32 %v289, %v1997
    %v1999 = vpop.f32.mrb[0].mxu0
    %v2000 = vadd.f32 %v293, %v1999
    %2001 = vmatprep.mubr.bf16.mxu0 %v1480
    %2002 = vmatmul.mubr.bf16.gmra.mrb[0].mxu0 %v462
    %v2003 = vpop.f32.mrb[0].mxu0
    %v2004 = vadd.f32 %v289, %v2003
    %v2005 = vpop.f32.mrb[0].mxu0
    %v2006 = vadd.f32 %v293, %v2005
    %v2007 = vpop.f32.mrb[0].mxu0
    %v2008 = vadd.f32 %v289, %v2007
    %v2009 = vpop.f32.mrb[0].mxu0
    %v2010 = vadd.f32 %v293, %v2009
    %2011 = vmatprep.mubr.bf16.mxu0 %v1483
    %2012 = vmatmul.mubr.bf16.gmra.mrb[0].mxu0 %v464
    %v2013 = vpop.f32.mrb[0].mxu0
    %v2014 = vadd.f32 %v289, %v2013
    %v2015 = vpop.f32.mrb[0].mxu0
    %v2016 = vadd.f32 %v293, %v2015
    %v2017 = vpop.f32.mrb[0].mxu0
    %v2018 = vadd.f32 %v289, %v2017
    %v2019 = vpop.f32.mrb[0].mxu0
    %v2020 = vadd.f32 %v293, %v2019
    %2021 = vmatprep.mubr.bf16.mxu0 %v1486
    %2022 = vmatmul.mubr.bf16.gmra.mrb[0].mxu0 %v466
    %v2023 = vpop.f32.mrb[0].mxu0
    %v2024 = vadd.f32 %v289, %v2023
    %v2025 = vpop.f32.mrb[0].mxu0
    %v2026 = vadd.f32 %v293, %v2025
    %v2027 = vpop.f32.mrb[0].mxu0
    %v2028 = vadd.f32 %v289, %v2027
    %v2029 = vpop.f32.mrb[0].mxu0
    %v2030 = vadd.f32 %v293, %v2029
    %2031 = vmatprep.mubr.bf16.mxu0 %v1489
    %2032 = vmatmul.mubr.bf16.gmra.mrb[0].mxu0 %v468
    %v2033 = vpop.f32.mrb[0].mxu0
    %v2034 = vadd.f32 %v289, %v2033
    %v2035 = vpop.f32.mrb[0].mxu0
    %v2036 = vadd.f32 %v293, %v2035
    %v2037 = vpop.f32.mrb[0].mxu0
    %v2038 = vadd.f32 %v289, %v2037
    %v2039 = vpop.f32.mrb[0].mxu0
    %v2040 = vadd.f32 %v293, %v2039
    %2041 = vmatprep.mubr.bf16.mxu0 %v1492
    %2042 = vmatmul.mubr.bf16.gmra.mrb[0].mxu0 %v470
    %v2043 = vpop.f32.mrb[0].mxu0
    %v2044 = vadd.f32 %v289, %v2043
    %v2045 = vpop.f32.mrb[0].mxu0
    %v2046 = vadd.f32 %v293, %v2045
    %v2047 = vpop.f32.mrb[0].mxu0
    %v2048 = vadd.f32 %v289, %v2047
    %v2049 = vpop.f32.mrb[0].mxu0
    %v2050 = vadd.f32 %v293, %v2049
    %2051 = vmatprep.mubr.bf16.mxu0 %v1495
    %2052 = vmatmul.mubr.bf16.gmra.mrb[0].mxu0 %v472
    %v2053 = vpop.f32.mrb[0].mxu0
    %v2054 = vadd.f32 %v289, %v2053
    %v2055 = vpop.f32.mrb[0].mxu0
    %v2056 = vadd.f32 %v293, %v2055
    %v2057 = vpop.f32.mrb[0].mxu0
    %v2058 = vadd.f32 %v289, %v2057
    %v2059 = vpop.f32.mrb[0].mxu0
    %v2060 = vadd.f32 %v293, %v2059
    %2061 = vmatprep.mubr.bf16.mxu0 %v1498
    %2062 = vmatmul.mubr.bf16.gmra.mrb[0].mxu0 %v474
    %v2063 = vpop.f32.mrb[0].mxu0
    %v2064 = vadd.f32 %v289, %v2063
    %v2065 = vpop.f32.mrb[0].mxu0
    %v2066 = vadd.f32 %v293, %v2065
    %v2067 = vpop.f32.mrb[0].mxu0
    %v2068 = vadd.f32 %v289, %v2067
    %v2069 = vpop.f32.mrb[0].mxu0
    %v2070 = vadd.f32 %v293, %v2069
    %2071 = vmatprep.mubr.bf16.mxu0 %v1501
    %2072 = vmatmul.mubr.bf16.gmra.mrb[0].mxu0 %v476
    %v2073 = vpop.f32.mrb[0].mxu0
    %v2074 = vadd.f32 %v289, %v2073
    %v2075 = vpop.f32.mrb[0].mxu0
    %v2076 = vadd.f32 %v293, %v2075
    %v2077 = vpop.f32.mrb[0].mxu0
    %v2078 = vadd.f32 %v289, %v2077
    %v2079 = vpop.f32.mrb[0].mxu0
    %v2080 = vadd.f32 %v293, %v2079
    %2081 = vdwg.mxu0
    %2082 = vmatprep.subr.bf16.mxu0 %v1077
    %2083 = vmatpush1.bf16.msra.mxu0 %v1076
    %2084 = vmatprep.subr.bf16.mxu0 %v1093
    %2085 = vmatpush1.bf16.msra.mxu0 %v1092
    %2086 = vmatprep.subr.bf16.mxu0 %v1109
    %2087 = vmatpush1.bf16.msra.mxu0 %v1108
    %2088 = vmatprep.subr.bf16.mxu0 %v1125
    %2089 = vmatpush1.bf16.msra.mxu0 %v1124
    %2090 = vmatprep.subr.bf16.mxu0 %v1141
    %2091 = vmatpush1.bf16.msra.mxu0 %v1140
    %2092 = vmatprep.subr.bf16.mxu0 %v1157
    %2093 = vmatpush1.bf16.msra.mxu0 %v1156
    %2094 = vmatprep.subr.bf16.mxu0 %v1173
    %2095 = vmatpush1.bf16.msra.mxu0 %v1172
    %2096 = vmatprep.subr.bf16.mxu0 %v1189
    %2097 = vmatpush1.bf16.msra.mxu0 %v1188
    %2098 = vmatprep.subr.bf16.mxu0 %v1205
    %2099 = vmatpush1.bf16.msra.mxu0 %v1204
    %2100 = vmatprep.subr.bf16.mxu0 %v1221
    %2101 = vmatpush1.bf16.msra.mxu0 %v1220
    %2102 = vmatprep.subr.bf16.mxu0 %v1237
    %2103 = vmatpush1.bf16.msra.mxu0 %v1236
    %2104 = vmatprep.subr.bf16.mxu0 %v1253
    %2105 = vmatpush1.bf16.msra.mxu0 %v1252
    %2106 = vmatprep.subr.bf16.mxu0 0
    %2107 = vmatpush1.bf16.msra.mxu0 0
    %2108 = vmatprep.subr.bf16.mxu0 0
    %2109 = vmatpush1.bf16.msra.mxu0 0
    %2110 = vmatprep.subr.bf16.mxu0 0
    %2111 = vmatpush1.bf16.msra.mxu0 0
    %2112 = vmatprep.subr.bf16.mxu0 0
    %2113 = vmatpush1.bf16.msra.mxu0 0
    %2114 = vmatprep.mubr.bf16.mxu0 %v1456
    %2115 = vmatmul.mubr.bf16.gmra.mrb[0].mxu0 %v446
    %v2116 = vpop.f32.mrb[0].mxu0
    %v2117 = vadd.f32 %v297, %v2116
    %v2118 = vpop.f32.mrb[0].mxu0
    %v2119 = vadd.f32 %v301, %v2118
    %v2120 = vpop.f32.mrb[0].mxu0
    %v2121 = vadd.f32 %v297, %v2120
    %v2122 = vpop.f32.mrb[0].mxu0
    %v2123 = vadd.f32 %v301, %v2122
    %2124 = vmatprep.mubr.bf16.mxu0 %v1459
    %2125 = vmatmul.mubr.bf16.gmra.mrb[0].mxu0 %v448
    %v2126 = vpop.f32.mrb[0].mxu0
    %v2127 = vadd.f32 %v297, %v2126
    %v2128 = vpop.f32.mrb[0].mxu0
    %v2129 = vadd.f32 %v301, %v2128
    %v2130 = vpop.f32.mrb[0].mxu0
    %v2131 = vadd.f32 %v297, %v2130
    %v2132 = vpop.f32.mrb[0].mxu0
    %v2133 = vadd.f32 %v301, %v2132
    %2134 = vmatprep.mubr.bf16.mxu0 %v1462
    %2135 = vmatmul.mubr.bf16.gmra.mrb[0].mxu0 %v450
    %v2136 = vpop.f32.mrb[0].mxu0
    %v2137 = vadd.f32 %v297, %v2136
    %v2138 = vpop.f32.mrb[0].mxu0
    %v2139 = vadd.f32 %v301, %v2138
    %v2140 = vpop.f32.mrb[0].mxu0
    %v2141 = vadd.f32 %v297, %v2140
    %v2142 = vpop.f32.mrb[0].mxu0
    %v2143 = vadd.f32 %v301, %v2142
    %2144 = vmatprep.mubr.bf16.mxu0 %v1465
    %2145 = vmatmul.mubr.bf16.gmra.mrb[0].mxu0 %v452
    %v2146 = vpop.f32.mrb[0].mxu0
    %v2147 = vadd.f32 %v297, %v2146
    %v2148 = vpop.f32.mrb[0].mxu0
    %v2149 = vadd.f32 %v301, %v2148
    %v2150 = vpop.f32.mrb[0].mxu0
    %v2151 = vadd.f32 %v297, %v2150
    %v2152 = vpop.f32.mrb[0].mxu0
    %v2153 = vadd.f32 %v301, %v2152
    %2154 = vmatprep.mubr.bf16.mxu0 %v1468
    %2155 = vmatmul.mubr.bf16.gmra.mrb[0].mxu0 %v454
    %v2156 = vpop.f32.mrb[0].mxu0
    %v2157 = vadd.f32 %v297, %v2156
    %v2158 = vpop.f32.mrb[0].mxu0
    %v2159 = vadd.f32 %v301, %v2158
    %v2160 = vpop.f32.mrb[0].mxu0
    %v2161 = vadd.f32 %v297, %v2160
    %v2162 = vpop.f32.mrb[0].mxu0
    %v2163 = vadd.f32 %v301, %v2162
    %2164 = vmatprep.mubr.bf16.mxu0 %v1471
    %2165 = vmatmul.mubr.bf16.gmra.mrb[0].mxu0 %v456
    %v2166 = vpop.f32.mrb[0].mxu0
    %v2167 = vadd.f32 %v297, %v2166
    %v2168 = vpop.f32.mrb[0].mxu0
    %v2169 = vadd.f32 %v301, %v2168
    %v2170 = vpop.f32.mrb[0].mxu0
    %v2171 = vadd.f32 %v297, %v2170
    %v2172 = vpop.f32.mrb[0].mxu0
    %v2173 = vadd.f32 %v301, %v2172
    %2174 = vmatprep.mubr.bf16.mxu0 %v1474
    %2175 = vmatmul.mubr.bf16.gmra.mrb[0].mxu0 %v458
    %v2176 = vpop.f32.mrb[0].mxu0
    %v2177 = vadd.f32 %v297, %v2176
    %v2178 = vpop.f32.mrb[0].mxu0
    %v2179 = vadd.f32 %v301, %v2178
    %v2180 = vpop.f32.mrb[0].mxu0
    %v2181 = vadd.f32 %v297, %v2180
    %v2182 = vpop.f32.mrb[0].mxu0
    %v2183 = vadd.f32 %v301, %v2182
    %2184 = vmatprep.mubr.bf16.mxu0 %v1477
    %2185 = vmatmul.mubr.bf16.gmra.mrb[0].mxu0 %v460
    %v2186 = vpop.f32.mrb[0].mxu0
    %v2187 = vadd.f32 %v297, %v2186
    %v2188 = vpop.f32.mrb[0].mxu0
    %v2189 = vadd.f32 %v301, %v2188
    %v2190 = vpop.f32.mrb[0].mxu0
    %v2191 = vadd.f32 %v297, %v2190
    %v2192 = vpop.f32.mrb[0].mxu0
    %v2193 = vadd.f32 %v301, %v2192
    %2194 = vmatprep.mubr.bf16.mxu0 %v1480
    %2195 = vmatmul.mubr.bf16.gmra.mrb[0].mxu0 %v462
    %v2196 = vpop.f32.mrb[0].mxu0
    %v2197 = vadd.f32 %v297, %v2196
    %v2198 = vpop.f32.mrb[0].mxu0
    %v2199 = vadd.f32 %v301, %v2198
    %v2200 = vpop.f32.mrb[0].mxu0
    %v2201 = vadd.f32 %v297, %v2200
    %v2202 = vpop.f32.mrb[0].mxu0
    %v2203 = vadd.f32 %v301, %v2202
    %2204 = vmatprep.mubr.bf16.mxu0 %v1483
    %2205 = vmatmul.mubr.bf16.gmra.mrb[0].mxu0 %v464
    %v2206 = vpop.f32.mrb[0].mxu0
    %v2207 = vadd.f32 %v297, %v2206
    %v2208 = vpop.f32.mrb[0].mxu0
    %v2209 = vadd.f32 %v301, %v2208
    %v2210 = vpop.f32.mrb[0].mxu0
    %v2211 = vadd.f32 %v297, %v2210
    %v2212 = vpop.f32.mrb[0].mxu0
    %v2213 = vadd.f32 %v301, %v2212
    %2214 = vmatprep.mubr.bf16.mxu0 %v1486
    %2215 = vmatmul.mubr.bf16.gmra.mrb[0].mxu0 %v466
    %v2216 = vpop.f32.mrb[0].mxu0
    %v2217 = vadd.f32 %v297, %v2216
    %v2218 = vpop.f32.mrb[0].mxu0
    %v2219 = vadd.f32 %v301, %v2218
    %v2220 = vpop.f32.mrb[0].mxu0
    %v2221 = vadd.f32 %v297, %v2220
    %v2222 = vpop.f32.mrb[0].mxu0
    %v2223 = vadd.f32 %v301, %v2222
    %2224 = vmatprep.mubr.bf16.mxu0 %v1489
    %2225 = vmatmul.mubr.bf16.gmra.mrb[0].mxu0 %v468
    %v2226 = vpop.f32.mrb[0].mxu0
    %v2227 = vadd.f32 %v297, %v2226
    %v2228 = vpop.f32.mrb[0].mxu0
    %v2229 = vadd.f32 %v301, %v2228
    %v2230 = vpop.f32.mrb[0].mxu0
    %v2231 = vadd.f32 %v297, %v2230
    %v2232 = vpop.f32.mrb[0].mxu0
    %v2233 = vadd.f32 %v301, %v2232
    %2234 = vmatprep.mubr.bf16.mxu0 %v1492
    %2235 = vmatmul.mubr.bf16.gmra.mrb[0].mxu0 %v470
    %v2236 = vpop.f32.mrb[0].mxu0
    %v2237 = vadd.f32 %v297, %v2236
    %v2238 = vpop.f32.mrb[0].mxu0
    %v2239 = vadd.f32 %v301, %v2238
    %v2240 = vpop.f32.mrb[0].mxu0
    %v2241 = vadd.f32 %v297, %v2240
    %v2242 = vpop.f32.mrb[0].mxu0
    %v2243 = vadd.f32 %v301, %v2242
    %2244 = vmatprep.mubr.bf16.mxu0 %v1495
    %2245 = vmatmul.mubr.bf16.gmra.mrb[0].mxu0 %v472
    %v2246 = vpop.f32.mrb[0].mxu0
    %v2247 = vadd.f32 %v297, %v2246
    %v2248 = vpop.f32.mrb[0].mxu0
    %v2249 = vadd.f32 %v301, %v2248
    %v2250 = vpop.f32.mrb[0].mxu0
    %v2251 = vadd.f32 %v297, %v2250
    %v2252 = vpop.f32.mrb[0].mxu0
    %v2253 = vadd.f32 %v301, %v2252
    %2254 = vmatprep.mubr.bf16.mxu0 %v1498
    %2255 = vmatmul.mubr.bf16.gmra.mrb[0].mxu0 %v474
    %v2256 = vpop.f32.mrb[0].mxu0
    %v2257 = vadd.f32 %v297, %v2256
    %v2258 = vpop.f32.mrb[0].mxu0
    %v2259 = vadd.f32 %v301, %v2258
    %v2260 = vpop.f32.mrb[0].mxu0
    %v2261 = vadd.f32 %v297, %v2260
    %v2262 = vpop.f32.mrb[0].mxu0
    %v2263 = vadd.f32 %v301, %v2262
    %2264 = vmatprep.mubr.bf16.mxu0 %v1501
    %2265 = vmatmul.mubr.bf16.gmra.mrb[0].mxu0 %v476
    %v2266 = vpop.f32.mrb[0].mxu0
    %v2267 = vadd.f32 %v297, %v2266
    %v2268 = vpop.f32.mrb[0].mxu0
    %v2269 = vadd.f32 %v301, %v2268
    %v2270 = vpop.f32.mrb[0].mxu0
    %v2271 = vadd.f32 %v297, %v2270
    %v2272 = vpop.f32.mrb[0].mxu0
    %v2273 = vadd.f32 %v301, %v2272
    %2274 = vdwg.mxu0
    %2275 = vmatprep.subr.bf16.mxu0 %v1079
    %2276 = vmatpush1.bf16.msra.mxu0 %v1078
    %2277 = vmatprep.subr.bf16.mxu0 %v1095
    %2278 = vmatpush1.bf16.msra.mxu0 %v1094
    %2279 = vmatprep.subr.bf16.mxu0 %v1111
    %2280 = vmatpush1.bf16.msra.mxu0 %v1110
    %2281 = vmatprep.subr.bf16.mxu0 %v1127
    %2282 = vmatpush1.bf16.msra.mxu0 %v1126
    %2283 = vmatprep.subr.bf16.mxu0 %v1143
    %2284 = vmatpush1.bf16.msra.mxu0 %v1142
    %2285 = vmatprep.subr.bf16.mxu0 %v1159
    %2286 = vmatpush1.bf16.msra.mxu0 %v1158
    %2287 = vmatprep.subr.bf16.mxu0 %v1175
    %2288 = vmatpush1.bf16.msra.mxu0 %v1174
    %2289 = vmatprep.subr.bf16.mxu0 %v1191
    %2290 = vmatpush1.bf16.msra.mxu0 %v1190
    %2291 = vmatprep.subr.bf16.mxu0 %v1207
    %2292 = vmatpush1.bf16.msra.mxu0 %v1206
    %2293 = vmatprep.subr.bf16.mxu0 %v1223
    %2294 = vmatpush1.bf16.msra.mxu0 %v1222
    %2295 = vmatprep.subr.bf16.mxu0 %v1239
    %2296 = vmatpush1.bf16.msra.mxu0 %v1238
    %2297 = vmatprep.subr.bf16.mxu0 %v1255
    %2298 = vmatpush1.bf16.msra.mxu0 %v1254
    %2299 = vmatprep.subr.bf16.mxu0 0
    %2300 = vmatpush1.bf16.msra.mxu0 0
    %2301 = vmatprep.subr.bf16.mxu0 0
    %2302 = vmatpush1.bf16.msra.mxu0 0
    %2303 = vmatprep.subr.bf16.mxu0 0
    %2304 = vmatpush1.bf16.msra.mxu0 0
    %2305 = vmatprep.subr.bf16.mxu0 0
    %2306 = vmatpush1.bf16.msra.mxu0 0
    %2307 = vmatprep.mubr.bf16.mxu0 %v1456
    %2308 = vmatmul.mubr.bf16.gmra.mrb[0].mxu0 %v446
    %v2309 = vpop.f32.mrb[0].mxu0
    %v2310 = vadd.f32 %v305, %v2309
    %v2311 = vpop.f32.mrb[0].mxu0
    %v2312 = vadd.f32 %v309, %v2311
    %v2313 = vpop.f32.mrb[0].mxu0
    %v2314 = vadd.f32 %v305, %v2313
    %v2315 = vpop.f32.mrb[0].mxu0
    %v2316 = vadd.f32 %v309, %v2315
    %2317 = vmatprep.mubr.bf16.mxu0 %v1459
    %2318 = vmatmul.mubr.bf16.gmra.mrb[0].mxu0 %v448
    %v2319 = vpop.f32.mrb[0].mxu0
    %v2320 = vadd.f32 %v305, %v2319
    %v2321 = vpop.f32.mrb[0].mxu0
    %v2322 = vadd.f32 %v309, %v2321
    %v2323 = vpop.f32.mrb[0].mxu0
    %v2324 = vadd.f32 %v305, %v2323
    %v2325 = vpop.f32.mrb[0].mxu0
    %v2326 = vadd.f32 %v309, %v2325
    %2327 = vmatprep.mubr.bf16.mxu0 %v1462
    %2328 = vmatmul.mubr.bf16.gmra.mrb[0].mxu0 %v450
    %v2329 = vpop.f32.mrb[0].mxu0
    %v2330 = vadd.f32 %v305, %v2329
    %v2331 = vpop.f32.mrb[0].mxu0
    %v2332 = vadd.f32 %v309, %v2331
    %v2333 = vpop.f32.mrb[0].mxu0
    %v2334 = vadd.f32 %v305, %v2333
    %v2335 = vpop.f32.mrb[0].mxu0
    %v2336 = vadd.f32 %v309, %v2335
    %2337 = vmatprep.mubr.bf16.mxu0 %v1465
    %2338 = vmatmul.mubr.bf16.gmra.mrb[0].mxu0 %v452
    %v2339 = vpop.f32.mrb[0].mxu0
    %v2340 = vadd.f32 %v305, %v2339
    %v2341 = vpop.f32.mrb[0].mxu0
    %v2342 = vadd.f32 %v309, %v2341
    %v2343 = vpop.f32.mrb[0].mxu0
    %v2344 = vadd.f32 %v305, %v2343
    %v2345 = vpop.f32.mrb[0].mxu0
    %v2346 = vadd.f32 %v309, %v2345
    %2347 = vmatprep.mubr.bf16.mxu0 %v1468
    %2348 = vmatmul.mubr.bf16.gmra.mrb[0].mxu0 %v454
    %v2349 = vpop.f32.mrb[0].mxu0
    %v2350 = vadd.f32 %v305, %v2349
    %v2351 = vpop.f32.mrb[0].mxu0
    %v2352 = vadd.f32 %v309, %v2351
    %v2353 = vpop.f32.mrb[0].mxu0
    %v2354 = vadd.f32 %v305, %v2353
    %v2355 = vpop.f32.mrb[0].mxu0
    %v2356 = vadd.f32 %v309, %v2355
    %2357 = vmatprep.mubr.bf16.mxu0 %v1471
    %2358 = vmatmul.mubr.bf16.gmra.mrb[0].mxu0 %v456
    %v2359 = vpop.f32.mrb[0].mxu0
    %v2360 = vadd.f32 %v305, %v2359
    %v2361 = vpop.f32.mrb[0].mxu0
    %v2362 = vadd.f32 %v309, %v2361
    %v2363 = vpop.f32.mrb[0].mxu0
    %v2364 = vadd.f32 %v305, %v2363
    %v2365 = vpop.f32.mrb[0].mxu0
    %v2366 = vadd.f32 %v309, %v2365
    %2367 = vmatprep.mubr.bf16.mxu0 %v1474
    %2368 = vmatmul.mubr.bf16.gmra.mrb[0].mxu0 %v458
    %v2369 = vpop.f32.mrb[0].mxu0
    %v2370 = vadd.f32 %v305, %v2369
    %v2371 = vpop.f32.mrb[0].mxu0
    %v2372 = vadd.f32 %v309, %v2371
    %v2373 = vpop.f32.mrb[0].mxu0
    %v2374 = vadd.f32 %v305, %v2373
    %v2375 = vpop.f32.mrb[0].mxu0
    %v2376 = vadd.f32 %v309, %v2375
    %2377 = vmatprep.mubr.bf16.mxu0 %v1477
    %2378 = vmatmul.mubr.bf16.gmra.mrb[0].mxu0 %v460
    %v2379 = vpop.f32.mrb[0].mxu0
    %v2380 = vadd.f32 %v305, %v2379
    %v2381 = vpop.f32.mrb[0].mxu0
    %v2382 = vadd.f32 %v309, %v2381
    %v2383 = vpop.f32.mrb[0].mxu0
    %v2384 = vadd.f32 %v305, %v2383
    %v2385 = vpop.f32.mrb[0].mxu0
    %v2386 = vadd.f32 %v309, %v2385
    %2387 = vmatprep.mubr.bf16.mxu0 %v1480
    %2388 = vmatmul.mubr.bf16.gmra.mrb[0].mxu0 %v462
    %v2389 = vpop.f32.mrb[0].mxu0
    %v2390 = vadd.f32 %v305, %v2389
    %v2391 = vpop.f32.mrb[0].mxu0
    %v2392 = vadd.f32 %v309, %v2391
    %v2393 = vpop.f32.mrb[0].mxu0
    %v2394 = vadd.f32 %v305, %v2393
    %v2395 = vpop.f32.mrb[0].mxu0
    %v2396 = vadd.f32 %v309, %v2395
    %2397 = vmatprep.mubr.bf16.mxu0 %v1483
    %2398 = vmatmul.mubr.bf16.gmra.mrb[0].mxu0 %v464
    %v2399 = vpop.f32.mrb[0].mxu0
    %v2400 = vadd.f32 %v305, %v2399
    %v2401 = vpop.f32.mrb[0].mxu0
    %v2402 = vadd.f32 %v309, %v2401
    %v2403 = vpop.f32.mrb[0].mxu0
    %v2404 = vadd.f32 %v305, %v2403
    %v2405 = vpop.f32.mrb[0].mxu0
    %v2406 = vadd.f32 %v309, %v2405
    %2407 = vmatprep.mubr.bf16.mxu0 %v1486
    %2408 = vmatmul.mubr.bf16.gmra.mrb[0].mxu0 %v466
    %v2409 = vpop.f32.mrb[0].mxu0
    %v2410 = vadd.f32 %v305, %v2409
    %v2411 = vpop.f32.mrb[0].mxu0
    %v2412 = vadd.f32 %v309, %v2411
    %v2413 = vpop.f32.mrb[0].mxu0
    %v2414 = vadd.f32 %v305, %v2413
    %v2415 = vpop.f32.mrb[0].mxu0
    %v2416 = vadd.f32 %v309, %v2415
    %2417 = vmatprep.mubr.bf16.mxu0 %v1489
    %2418 = vmatmul.mubr.bf16.gmra.mrb[0].mxu0 %v468
    %v2419 = vpop.f32.mrb[0].mxu0
    %v2420 = vadd.f32 %v305, %v2419
    %v2421 = vpop.f32.mrb[0].mxu0
    %v2422 = vadd.f32 %v309, %v2421
    %v2423 = vpop.f32.mrb[0].mxu0
    %v2424 = vadd.f32 %v305, %v2423
    %v2425 = vpop.f32.mrb[0].mxu0
    %v2426 = vadd.f32 %v309, %v2425
    %2427 = vmatprep.mubr.bf16.mxu0 %v1492
    %2428 = vmatmul.mubr.bf16.gmra.mrb[0].mxu0 %v470
    %v2429 = vpop.f32.mrb[0].mxu0
    %v2430 = vadd.f32 %v305, %v2429
    %v2431 = vpop.f32.mrb[0].mxu0
    %v2432 = vadd.f32 %v309, %v2431
    %v2433 = vpop.f32.mrb[0].mxu0
    %v2434 = vadd.f32 %v305, %v2433
    %v2435 = vpop.f32.mrb[0].mxu0
    %v2436 = vadd.f32 %v309, %v2435
    %2437 = vmatprep.mubr.bf16.mxu0 %v1495
    %2438 = vmatmul.mubr.bf16.gmra.mrb[0].mxu0 %v472
    %v2439 = vpop.f32.mrb[0].mxu0
    %v2440 = vadd.f32 %v305, %v2439
    %v2441 = vpop.f32.mrb[0].mxu0
    %v2442 = vadd.f32 %v309, %v2441
    %v2443 = vpop.f32.mrb[0].mxu0
    %v2444 = vadd.f32 %v305, %v2443
    %v2445 = vpop.f32.mrb[0].mxu0
    %v2446 = vadd.f32 %v309, %v2445
    %2447 = vmatprep.mubr.bf16.mxu0 %v1498
    %2448 = vmatmul.mubr.bf16.gmra.mrb[0].mxu0 %v474
    %v2449 = vpop.f32.mrb[0].mxu0
    %v2450 = vadd.f32 %v305, %v2449
    %v2451 = vpop.f32.mrb[0].mxu0
    %v2452 = vadd.f32 %v309, %v2451
    %v2453 = vpop.f32.mrb[0].mxu0
    %v2454 = vadd.f32 %v305, %v2453
    %v2455 = vpop.f32.mrb[0].mxu0
    %v2456 = vadd.f32 %v309, %v2455
    %2457 = vmatprep.mubr.bf16.mxu0 %v1501
    %2458 = vmatmul.mubr.bf16.gmra.mrb[0].mxu0 %v476
    %v2459 = vpop.f32.mrb[0].mxu0
    %v2460 = vadd.f32 %v305, %v2459
    %v2461 = vpop.f32.mrb[0].mxu0
    %v2462 = vadd.f32 %v309, %v2461
    %v2463 = vpop.f32.mrb[0].mxu0
    %v2464 = vadd.f32 %v305, %v2463
    %v2465 = vpop.f32.mrb[0].mxu0
    %v2466 = vadd.f32 %v309, %v2465
    %2467 = vdwg.mxu0
    %2468 = vmatprep.subr.bf16.mxu0 %v1081
    %2469 = vmatpush1.bf16.msra.mxu0 %v1080
    %2470 = vmatprep.subr.bf16.mxu0 %v1097
    %2471 = vmatpush1.bf16.msra.mxu0 %v1096
    %2472 = vmatprep.subr.bf16.mxu0 %v1113
    %2473 = vmatpush1.bf16.msra.mxu0 %v1112
    %2474 = vmatprep.subr.bf16.mxu0 %v1129
    %2475 = vmatpush1.bf16.msra.mxu0 %v1128
    %2476 = vmatprep.subr.bf16.mxu0 %v1145
    %2477 = vmatpush1.bf16.msra.mxu0 %v1144
    %2478 = vmatprep.subr.bf16.mxu0 %v1161
    %2479 = vmatpush1.bf16.msra.mxu0 %v1160
    %2480 = vmatprep.subr.bf16.mxu0 %v1177
    %2481 = vmatpush1.bf16.msra.mxu0 %v1176
    %2482 = vmatprep.subr.bf16.mxu0 %v1193
    %2483 = vmatpush1.bf16.msra.mxu0 %v1192
    %2484 = vmatprep.subr.bf16.mxu0 %v1209
    %2485 = vmatpush1.bf16.msra.mxu0 %v1208
    %2486 = vmatprep.subr.bf16.mxu0 %v1225
    %2487 = vmatpush1.bf16.msra.mxu0 %v1224
    %2488 = vmatprep.subr.bf16.mxu0 %v1241
    %2489 = vmatpush1.bf16.msra.mxu0 %v1240
    %2490 = vmatprep.subr.bf16.mxu0 %v1257
    %2491 = vmatpush1.bf16.msra.mxu0 %v1256
    %2492 = vmatprep.subr.bf16.mxu0 0
    %2493 = vmatpush1.bf16.msra.mxu0 0
    %2494 = vmatprep.subr.bf16.mxu0 0
    %2495 = vmatpush1.bf16.msra.mxu0 0
    %2496 = vmatprep.subr.bf16.mxu0 0
    %2497 = vmatpush1.bf16.msra.mxu0 0
    %2498 = vmatprep.subr.bf16.mxu0 0
    %2499 = vmatpush1.bf16.msra.mxu0 0
    %2500 = vmatprep.mubr.bf16.mxu0 %v1456
    %2501 = vmatmul.mubr.bf16.gmra.mrb[0].mxu0 %v446
    %v2502 = vpop.f32.mrb[0].mxu0
    %v2503 = vadd.f32 %v313, %v2502
    %v2504 = vpop.f32.mrb[0].mxu0
    %v2505 = vadd.f32 %v317, %v2504
    %v2506 = vpop.f32.mrb[0].mxu0
    %v2507 = vadd.f32 %v313, %v2506
    %v2508 = vpop.f32.mrb[0].mxu0
    %v2509 = vadd.f32 %v317, %v2508
    %2510 = vmatprep.mubr.bf16.mxu0 %v1459
    %2511 = vmatmul.mubr.bf16.gmra.mrb[0].mxu0 %v448
    %v2512 = vpop.f32.mrb[0].mxu0
    %v2513 = vadd.f32 %v313, %v2512
    %v2514 = vpop.f32.mrb[0].mxu0
    %v2515 = vadd.f32 %v317, %v2514
    %v2516 = vpop.f32.mrb[0].mxu0
    %v2517 = vadd.f32 %v313, %v2516
    %v2518 = vpop.f32.mrb[0].mxu0
    %v2519 = vadd.f32 %v317, %v2518
    %2520 = vmatprep.mubr.bf16.mxu0 %v1462
    %2521 = vmatmul.mubr.bf16.gmra.mrb[0].mxu0 %v450
    %v2522 = vpop.f32.mrb[0].mxu0
    %v2523 = vadd.f32 %v313, %v2522
    %v2524 = vpop.f32.mrb[0].mxu0
    %v2525 = vadd.f32 %v317, %v2524
    %v2526 = vpop.f32.mrb[0].mxu0
    %v2527 = vadd.f32 %v313, %v2526
    %v2528 = vpop.f32.mrb[0].mxu0
    %v2529 = vadd.f32 %v317, %v2528
    %2530 = vmatprep.mubr.bf16.mxu0 %v1465
    %2531 = vmatmul.mubr.bf16.gmra.mrb[0].mxu0 %v452
    %v2532 = vpop.f32.mrb[0].mxu0
    %v2533 = vadd.f32 %v313, %v2532
    %v2534 = vpop.f32.mrb[0].mxu0
    %v2535 = vadd.f32 %v317, %v2534
    %v2536 = vpop.f32.mrb[0].mxu0
    %v2537 = vadd.f32 %v313, %v2536
    %v2538 = vpop.f32.mrb[0].mxu0
    %v2539 = vadd.f32 %v317, %v2538
    %2540 = vmatprep.mubr.bf16.mxu0 %v1468
    %2541 = vmatmul.mubr.bf16.gmra.mrb[0].mxu0 %v454
    %v2542 = vpop.f32.mrb[0].mxu0
    %v2543 = vadd.f32 %v313, %v2542
    %v2544 = vpop.f32.mrb[0].mxu0
    %v2545 = vadd.f32 %v317, %v2544
    %v2546 = vpop.f32.mrb[0].mxu0
    %v2547 = vadd.f32 %v313, %v2546
    %v2548 = vpop.f32.mrb[0].mxu0
    %v2549 = vadd.f32 %v317, %v2548
    %2550 = vmatprep.mubr.bf16.mxu0 %v1471
    %2551 = vmatmul.mubr.bf16.gmra.mrb[0].mxu0 %v456
    %v2552 = vpop.f32.mrb[0].mxu0
    %v2553 = vadd.f32 %v313, %v2552
    %v2554 = vpop.f32.mrb[0].mxu0
    %v2555 = vadd.f32 %v317, %v2554
    %v2556 = vpop.f32.mrb[0].mxu0
    %v2557 = vadd.f32 %v313, %v2556
    %v2558 = vpop.f32.mrb[0].mxu0
    %v2559 = vadd.f32 %v317, %v2558
    %2560 = vmatprep.mubr.bf16.mxu0 %v1474
    %2561 = vmatmul.mubr.bf16.gmra.mrb[0].mxu0 %v458
    %v2562 = vpop.f32.mrb[0].mxu0
    %v2563 = vadd.f32 %v313, %v2562
    %v2564 = vpop.f32.mrb[0].mxu0
    %v2565 = vadd.f32 %v317, %v2564
    %v2566 = vpop.f32.mrb[0].mxu0
    %v2567 = vadd.f32 %v313, %v2566
    %v2568 = vpop.f32.mrb[0].mxu0
    %v2569 = vadd.f32 %v317, %v2568
    %2570 = vmatprep.mubr.bf16.mxu0 %v1477
    %2571 = vmatmul.mubr.bf16.gmra.mrb[0].mxu0 %v460
    %v2572 = vpop.f32.mrb[0].mxu0
    %v2573 = vadd.f32 %v313, %v2572
    %v2574 = vpop.f32.mrb[0].mxu0
    %v2575 = vadd.f32 %v317, %v2574
    %v2576 = vpop.f32.mrb[0].mxu0
    %v2577 = vadd.f32 %v313, %v2576
    %v2578 = vpop.f32.mrb[0].mxu0
    %v2579 = vadd.f32 %v317, %v2578
    %2580 = vmatprep.mubr.bf16.mxu0 %v1480
    %2581 = vmatmul.mubr.bf16.gmra.mrb[0].mxu0 %v462
    %v2582 = vpop.f32.mrb[0].mxu0
    %v2583 = vadd.f32 %v313, %v2582
    %v2584 = vpop.f32.mrb[0].mxu0
    %v2585 = vadd.f32 %v317, %v2584
    %v2586 = vpop.f32.mrb[0].mxu0
    %v2587 = vadd.f32 %v313, %v2586
    %v2588 = vpop.f32.mrb[0].mxu0
    %v2589 = vadd.f32 %v317, %v2588
    %2590 = vmatprep.mubr.bf16.mxu0 %v1483
    %2591 = vmatmul.mubr.bf16.gmra.mrb[0].mxu0 %v464
    %v2592 = vpop.f32.mrb[0].mxu0
    %v2593 = vadd.f32 %v313, %v2592
    %v2594 = vpop.f32.mrb[0].mxu0
    %v2595 = vadd.f32 %v317, %v2594
    %v2596 = vpop.f32.mrb[0].mxu0
    %v2597 = vadd.f32 %v313, %v2596
    %v2598 = vpop.f32.mrb[0].mxu0
    %v2599 = vadd.f32 %v317, %v2598
    %2600 = vmatprep.mubr.bf16.mxu0 %v1486
    %2601 = vmatmul.mubr.bf16.gmra.mrb[0].mxu0 %v466
    %v2602 = vpop.f32.mrb[0].mxu0
    %v2603 = vadd.f32 %v313, %v2602
    %v2604 = vpop.f32.mrb[0].mxu0
    %v2605 = vadd.f32 %v317, %v2604
    %v2606 = vpop.f32.mrb[0].mxu0
    %v2607 = vadd.f32 %v313, %v2606
    %v2608 = vpop.f32.mrb[0].mxu0
    %v2609 = vadd.f32 %v317, %v2608
    %2610 = vmatprep.mubr.bf16.mxu0 %v1489
    %2611 = vmatmul.mubr.bf16.gmra.mrb[0].mxu0 %v468
    %v2612 = vpop.f32.mrb[0].mxu0
    %v2613 = vadd.f32 %v313, %v2612
    %v2614 = vpop.f32.mrb[0].mxu0
    %v2615 = vadd.f32 %v317, %v2614
    %v2616 = vpop.f32.mrb[0].mxu0
    %v2617 = vadd.f32 %v313, %v2616
    %v2618 = vpop.f32.mrb[0].mxu0
    %v2619 = vadd.f32 %v317, %v2618
    %2620 = vmatprep.mubr.bf16.mxu0 %v1492
    %2621 = vmatmul.mubr.bf16.gmra.mrb[0].mxu0 %v470
    %v2622 = vpop.f32.mrb[0].mxu0
    %v2623 = vadd.f32 %v313, %v2622
    %v2624 = vpop.f32.mrb[0].mxu0
    %v2625 = vadd.f32 %v317, %v2624
    %v2626 = vpop.f32.mrb[0].mxu0
    %v2627 = vadd.f32 %v313, %v2626
    %v2628 = vpop.f32.mrb[0].mxu0
    %v2629 = vadd.f32 %v317, %v2628
    %2630 = vmatprep.mubr.bf16.mxu0 %v1495
    %2631 = vmatmul.mubr.bf16.gmra.mrb[0].mxu0 %v472
    %v2632 = vpop.f32.mrb[0].mxu0
    %v2633 = vadd.f32 %v313, %v2632
    %v2634 = vpop.f32.mrb[0].mxu0
    %v2635 = vadd.f32 %v317, %v2634
    %v2636 = vpop.f32.mrb[0].mxu0
    %v2637 = vadd.f32 %v313, %v2636
    %v2638 = vpop.f32.mrb[0].mxu0
    %v2639 = vadd.f32 %v317, %v2638
    %2640 = vmatprep.mubr.bf16.mxu0 %v1498
    %2641 = vmatmul.mubr.bf16.gmra.mrb[0].mxu0 %v474
    %v2642 = vpop.f32.mrb[0].mxu0
    %v2643 = vadd.f32 %v313, %v2642
    %v2644 = vpop.f32.mrb[0].mxu0
    %v2645 = vadd.f32 %v317, %v2644
    %v2646 = vpop.f32.mrb[0].mxu0
    %v2647 = vadd.f32 %v313, %v2646
    %v2648 = vpop.f32.mrb[0].mxu0
    %v2649 = vadd.f32 %v317, %v2648
    %2650 = vmatprep.mubr.bf16.mxu0 %v1501
    %2651 = vmatmul.mubr.bf16.gmra.mrb[0].mxu0 %v476
    %v2652 = vpop.f32.mrb[0].mxu0
    %v2653 = vadd.f32 %v313, %v2652
    %v2654 = vpop.f32.mrb[0].mxu0
    %v2655 = vadd.f32 %v317, %v2654
    %v2656 = vpop.f32.mrb[0].mxu0
    %v2657 = vadd.f32 %v313, %v2656
    %v2658 = vpop.f32.mrb[0].mxu0
    %v2659 = vadd.f32 %v317, %v2658
    %2660 = vdwg.mxu0
    %2661 = vmatprep.subr.bf16.mxu0 %v1083
    %2662 = vmatpush1.bf16.msra.mxu0 %v1082
    %2663 = vmatprep.subr.bf16.mxu0 %v1099
    %2664 = vmatpush1.bf16.msra.mxu0 %v1098
    %2665 = vmatprep.subr.bf16.mxu0 %v1115
    %2666 = vmatpush1.bf16.msra.mxu0 %v1114
    %2667 = vmatprep.subr.bf16.mxu0 %v1131
    %2668 = vmatpush1.bf16.msra.mxu0 %v1130
    %2669 = vmatprep.subr.bf16.mxu0 %v1147
    %2670 = vmatpush1.bf16.msra.mxu0 %v1146
    %2671 = vmatprep.subr.bf16.mxu0 %v1163
    %2672 = vmatpush1.bf16.msra.mxu0 %v1162
    %2673 = vmatprep.subr.bf16.mxu0 %v1179
    %2674 = vmatpush1.bf16.msra.mxu0 %v1178
    %2675 = vmatprep.subr.bf16.mxu0 %v1195
    %2676 = vmatpush1.bf16.msra.mxu0 %v1194
    %2677 = vmatprep.subr.bf16.mxu0 %v1211
    %2678 = vmatpush1.bf16.msra.mxu0 %v1210
    %2679 = vmatprep.subr.bf16.mxu0 %v1227
    %2680 = vmatpush1.bf16.msra.mxu0 %v1226
    %2681 = vmatprep.subr.bf16.mxu0 %v1243
    %2682 = vmatpush1.bf16.msra.mxu0 %v1242
    %2683 = vmatprep.subr.bf16.mxu0 %v1259
    %2684 = vmatpush1.bf16.msra.mxu0 %v1258
    %2685 = vmatprep.subr.bf16.mxu0 0
    %2686 = vmatpush1.bf16.msra.mxu0 0
    %2687 = vmatprep.subr.bf16.mxu0 0
    %2688 = vmatpush1.bf16.msra.mxu0 0
    %2689 = vmatprep.subr.bf16.mxu0 0
    %2690 = vmatpush1.bf16.msra.mxu0 0
    %2691 = vmatprep.subr.bf16.mxu0 0
    %2692 = vmatpush1.bf16.msra.mxu0 0
    %2693 = vmatprep.mubr.bf16.mxu0 %v1456
    %2694 = vmatmul.mubr.bf16.gmra.mrb[0].mxu0 %v446
    %v2695 = vpop.f32.mrb[0].mxu0
    %v2696 = vadd.f32 %v321, %v2695
    %v2697 = vpop.f32.mrb[0].mxu0
    %v2698 = vadd.f32 %v325, %v2697
    %v2699 = vpop.f32.mrb[0].mxu0
    %v2700 = vadd.f32 %v321, %v2699
    %v2701 = vpop.f32.mrb[0].mxu0
    %v2702 = vadd.f32 %v325, %v2701
    %2703 = vmatprep.mubr.bf16.mxu0 %v1459
    %2704 = vmatmul.mubr.bf16.gmra.mrb[0].mxu0 %v448
    %v2705 = vpop.f32.mrb[0].mxu0
    %v2706 = vadd.f32 %v321, %v2705
    %v2707 = vpop.f32.mrb[0].mxu0
    %v2708 = vadd.f32 %v325, %v2707
    %v2709 = vpop.f32.mrb[0].mxu0
    %v2710 = vadd.f32 %v321, %v2709
    %v2711 = vpop.f32.mrb[0].mxu0
    %v2712 = vadd.f32 %v325, %v2711
    %2713 = vmatprep.mubr.bf16.mxu0 %v1462
    %2714 = vmatmul.mubr.bf16.gmra.mrb[0].mxu0 %v450
    %v2715 = vpop.f32.mrb[0].mxu0
    %v2716 = vadd.f32 %v321, %v2715
    %v2717 = vpop.f32.mrb[0].mxu0
    %v2718 = vadd.f32 %v325, %v2717
    %v2719 = vpop.f32.mrb[0].mxu0
    %v2720 = vadd.f32 %v321, %v2719
    %v2721 = vpop.f32.mrb[0].mxu0
    %v2722 = vadd.f32 %v325, %v2721
    %2723 = vmatprep.mubr.bf16.mxu0 %v1465
    %2724 = vmatmul.mubr.bf16.gmra.mrb[0].mxu0 %v452
    %v2725 = vpop.f32.mrb[0].mxu0
    %v2726 = vadd.f32 %v321, %v2725
    %v2727 = vpop.f32.mrb[0].mxu0
    %v2728 = vadd.f32 %v325, %v2727
    %v2729 = vpop.f32.mrb[0].mxu0
    %v2730 = vadd.f32 %v321, %v2729
    %v2731 = vpop.f32.mrb[0].mxu0
    %v2732 = vadd.f32 %v325, %v2731
    %2733 = vmatprep.mubr.bf16.mxu0 %v1468
    %2734 = vmatmul.mubr.bf16.gmra.mrb[0].mxu0 %v454
    %v2735 = vpop.f32.mrb[0].mxu0
    %v2736 = vadd.f32 %v321, %v2735
    %v2737 = vpop.f32.mrb[0].mxu0
    %v2738 = vadd.f32 %v325, %v2737
    %v2739 = vpop.f32.mrb[0].mxu0
    %v2740 = vadd.f32 %v321, %v2739
    %v2741 = vpop.f32.mrb[0].mxu0
    %v2742 = vadd.f32 %v325, %v2741
    %2743 = vmatprep.mubr.bf16.mxu0 %v1471
    %2744 = vmatmul.mubr.bf16.gmra.mrb[0].mxu0 %v456
    %v2745 = vpop.f32.mrb[0].mxu0
    %v2746 = vadd.f32 %v321, %v2745
    %v2747 = vpop.f32.mrb[0].mxu0
    %v2748 = vadd.f32 %v325, %v2747
    %v2749 = vpop.f32.mrb[0].mxu0
    %v2750 = vadd.f32 %v321, %v2749
    %v2751 = vpop.f32.mrb[0].mxu0
    %v2752 = vadd.f32 %v325, %v2751
    %2753 = vmatprep.mubr.bf16.mxu0 %v1474
    %2754 = vmatmul.mubr.bf16.gmra.mrb[0].mxu0 %v458
    %v2755 = vpop.f32.mrb[0].mxu0
    %v2756 = vadd.f32 %v321, %v2755
    %v2757 = vpop.f32.mrb[0].mxu0
    %v2758 = vadd.f32 %v325, %v2757
    %v2759 = vpop.f32.mrb[0].mxu0
    %v2760 = vadd.f32 %v321, %v2759
    %v2761 = vpop.f32.mrb[0].mxu0
    %v2762 = vadd.f32 %v325, %v2761
    %2763 = vmatprep.mubr.bf16.mxu0 %v1477
    %2764 = vmatmul.mubr.bf16.gmra.mrb[0].mxu0 %v460
    %v2765 = vpop.f32.mrb[0].mxu0
    %v2766 = vadd.f32 %v321, %v2765
    %v2767 = vpop.f32.mrb[0].mxu0
    %v2768 = vadd.f32 %v325, %v2767
    %v2769 = vpop.f32.mrb[0].mxu0
    %v2770 = vadd.f32 %v321, %v2769
    %v2771 = vpop.f32.mrb[0].mxu0
    %v2772 = vadd.f32 %v325, %v2771
    %2773 = vmatprep.mubr.bf16.mxu0 %v1480
    %2774 = vmatmul.mubr.bf16.gmra.mrb[0].mxu0 %v462
    %v2775 = vpop.f32.mrb[0].mxu0
    %v2776 = vadd.f32 %v321, %v2775
    %v2777 = vpop.f32.mrb[0].mxu0
    %v2778 = vadd.f32 %v325, %v2777
    %v2779 = vpop.f32.mrb[0].mxu0
    %v2780 = vadd.f32 %v321, %v2779
    %v2781 = vpop.f32.mrb[0].mxu0
    %v2782 = vadd.f32 %v325, %v2781
    %2783 = vmatprep.mubr.bf16.mxu0 %v1483
    %2784 = vmatmul.mubr.bf16.gmra.mrb[0].mxu0 %v464
    %v2785 = vpop.f32.mrb[0].mxu0
    %v2786 = vadd.f32 %v321, %v2785
    %v2787 = vpop.f32.mrb[0].mxu0
    %v2788 = vadd.f32 %v325, %v2787
    %v2789 = vpop.f32.mrb[0].mxu0
    %v2790 = vadd.f32 %v321, %v2789
    %v2791 = vpop.f32.mrb[0].mxu0
    %v2792 = vadd.f32 %v325, %v2791
    %2793 = vmatprep.mubr.bf16.mxu0 %v1486
    %2794 = vmatmul.mubr.bf16.gmra.mrb[0].mxu0 %v466
    %v2795 = vpop.f32.mrb[0].mxu0
    %v2796 = vadd.f32 %v321, %v2795
    %v2797 = vpop.f32.mrb[0].mxu0
    %v2798 = vadd.f32 %v325, %v2797
    %v2799 = vpop.f32.mrb[0].mxu0
    %v2800 = vadd.f32 %v321, %v2799
    %v2801 = vpop.f32.mrb[0].mxu0
    %v2802 = vadd.f32 %v325, %v2801
    %2803 = vmatprep.mubr.bf16.mxu0 %v1489
    %2804 = vmatmul.mubr.bf16.gmra.mrb[0].mxu0 %v468
    %v2805 = vpop.f32.mrb[0].mxu0
    %v2806 = vadd.f32 %v321, %v2805
    %v2807 = vpop.f32.mrb[0].mxu0
    %v2808 = vadd.f32 %v325, %v2807
    %v2809 = vpop.f32.mrb[0].mxu0
    %v2810 = vadd.f32 %v321, %v2809
    %v2811 = vpop.f32.mrb[0].mxu0
    %v2812 = vadd.f32 %v325, %v2811
    %2813 = vmatprep.mubr.bf16.mxu0 %v1492
    %2814 = vmatmul.mubr.bf16.gmra.mrb[0].mxu0 %v470
    %v2815 = vpop.f32.mrb[0].mxu0
    %v2816 = vadd.f32 %v321, %v2815
    %v2817 = vpop.f32.mrb[0].mxu0
    %v2818 = vadd.f32 %v325, %v2817
    %v2819 = vpop.f32.mrb[0].mxu0
    %v2820 = vadd.f32 %v321, %v2819
    %v2821 = vpop.f32.mrb[0].mxu0
    %v2822 = vadd.f32 %v325, %v2821
    %2823 = vmatprep.mubr.bf16.mxu0 %v1495
    %2824 = vmatmul.mubr.bf16.gmra.mrb[0].mxu0 %v472
    %v2825 = vpop.f32.mrb[0].mxu0
    %v2826 = vadd.f32 %v321, %v2825
    %v2827 = vpop.f32.mrb[0].mxu0
    %v2828 = vadd.f32 %v325, %v2827
    %v2829 = vpop.f32.mrb[0].mxu0
    %v2830 = vadd.f32 %v321, %v2829
    %v2831 = vpop.f32.mrb[0].mxu0
    %v2832 = vadd.f32 %v325, %v2831
    %2833 = vmatprep.mubr.bf16.mxu0 %v1498
    %2834 = vmatmul.mubr.bf16.gmra.mrb[0].mxu0 %v474
    %v2835 = vpop.f32.mrb[0].mxu0
    %v2836 = vadd.f32 %v321, %v2835
    %v2837 = vpop.f32.mrb[0].mxu0
    %v2838 = vadd.f32 %v325, %v2837
    %v2839 = vpop.f32.mrb[0].mxu0
    %v2840 = vadd.f32 %v321, %v2839
    %v2841 = vpop.f32.mrb[0].mxu0
    %v2842 = vadd.f32 %v325, %v2841
    %2843 = vmatprep.mubr.bf16.mxu0 %v1501
    %2844 = vmatmul.mubr.bf16.gmra.mrb[0].mxu0 %v476
    %v2845 = vpop.f32.mrb[0].mxu0
    %v2846 = vadd.f32 %v321, %v2845
    %v2847 = vpop.f32.mrb[0].mxu0
    %v2848 = vadd.f32 %v325, %v2847
    %v2849 = vpop.f32.mrb[0].mxu0
    %v2850 = vadd.f32 %v321, %v2849
    %v2851 = vpop.f32.mrb[0].mxu0
    %v2852 = vadd.f32 %v325, %v2851
    %2853 = vdwg.mxu0
    %2854 = vmatprep.subr.bf16.mxu0 %v1085
    %2855 = vmatpush1.bf16.msra.mxu0 %v1084
    %2856 = vmatprep.subr.bf16.mxu0 %v1101
    %2857 = vmatpush1.bf16.msra.mxu0 %v1100
    %2858 = vmatprep.subr.bf16.mxu0 %v1117
    %2859 = vmatpush1.bf16.msra.mxu0 %v1116
    %2860 = vmatprep.subr.bf16.mxu0 %v1133
    %2861 = vmatpush1.bf16.msra.mxu0 %v1132
    %2862 = vmatprep.subr.bf16.mxu0 %v1149
    %2863 = vmatpush1.bf16.msra.mxu0 %v1148
    %2864 = vmatprep.subr.bf16.mxu0 %v1165
    %2865 = vmatpush1.bf16.msra.mxu0 %v1164
    %2866 = vmatprep.subr.bf16.mxu0 %v1181
    %2867 = vmatpush1.bf16.msra.mxu0 %v1180
    %2868 = vmatprep.subr.bf16.mxu0 %v1197
    %2869 = vmatpush1.bf16.msra.mxu0 %v1196
    %2870 = vmatprep.subr.bf16.mxu0 %v1213
    %2871 = vmatpush1.bf16.msra.mxu0 %v1212
    %2872 = vmatprep.subr.bf16.mxu0 %v1229
    %2873 = vmatpush1.bf16.msra.mxu0 %v1228
    %2874 = vmatprep.subr.bf16.mxu0 %v1245
    %2875 = vmatpush1.bf16.msra.mxu0 %v1244
    %2876 = vmatprep.subr.bf16.mxu0 %v1261
    %2877 = vmatpush1.bf16.msra.mxu0 %v1260
    %2878 = vmatprep.subr.bf16.mxu0 0
    %2879 = vmatpush1.bf16.msra.mxu0 0
    %2880 = vmatprep.subr.bf16.mxu0 0
    %2881 = vmatpush1.bf16.msra.mxu0 0
    %2882 = vmatprep.subr.bf16.mxu0 0
    %2883 = vmatpush1.bf16.msra.mxu0 0
    %2884 = vmatprep.subr.bf16.mxu0 0
    %2885 = vmatpush1.bf16.msra.mxu0 0
    %2886 = vmatprep.mubr.bf16.mxu0 %v1456
    %2887 = vmatmul.mubr.bf16.gmra.mrb[0].mxu0 %v446
    %v2888 = vpop.f32.mrb[0].mxu0
    %v2889 = vadd.f32 %v329, %v2888
    %v2890 = vpop.f32.mrb[0].mxu0
    %v2891 = vadd.f32 %v333, %v2890
    %v2892 = vpop.f32.mrb[0].mxu0
    %v2893 = vadd.f32 %v329, %v2892
    %v2894 = vpop.f32.mrb[0].mxu0
    %v2895 = vadd.f32 %v333, %v2894
    %2896 = vmatprep.mubr.bf16.mxu0 %v1459
    %2897 = vmatmul.mubr.bf16.gmra.mrb[0].mxu0 %v448
    %v2898 = vpop.f32.mrb[0].mxu0
    %v2899 = vadd.f32 %v329, %v2898
    %v2900 = vpop.f32.mrb[0].mxu0
    %v2901 = vadd.f32 %v333, %v2900
    %v2902 = vpop.f32.mrb[0].mxu0
    %v2903 = vadd.f32 %v329, %v2902
    %v2904 = vpop.f32.mrb[0].mxu0
    %v2905 = vadd.f32 %v333, %v2904
    %2906 = vmatprep.mubr.bf16.mxu0 %v1462
    %2907 = vmatmul.mubr.bf16.gmra.mrb[0].mxu0 %v450
    %v2908 = vpop.f32.mrb[0].mxu0
    %v2909 = vadd.f32 %v329, %v2908
    %v2910 = vpop.f32.mrb[0].mxu0
    %v2911 = vadd.f32 %v333, %v2910
    %v2912 = vpop.f32.mrb[0].mxu0
    %v2913 = vadd.f32 %v329, %v2912
    %v2914 = vpop.f32.mrb[0].mxu0
    %v2915 = vadd.f32 %v333, %v2914
    %2916 = vmatprep.mubr.bf16.mxu0 %v1465
    %2917 = vmatmul.mubr.bf16.gmra.mrb[0].mxu0 %v452
    %v2918 = vpop.f32.mrb[0].mxu0
    %v2919 = vadd.f32 %v329, %v2918
    %v2920 = vpop.f32.mrb[0].mxu0
    %v2921 = vadd.f32 %v333, %v2920
    %v2922 = vpop.f32.mrb[0].mxu0
    %v2923 = vadd.f32 %v329, %v2922
    %v2924 = vpop.f32.mrb[0].mxu0
    %v2925 = vadd.f32 %v333, %v2924
    %2926 = vmatprep.mubr.bf16.mxu0 %v1468
    %2927 = vmatmul.mubr.bf16.gmra.mrb[0].mxu0 %v454
    %v2928 = vpop.f32.mrb[0].mxu0
    %v2929 = vadd.f32 %v329, %v2928
    %v2930 = vpop.f32.mrb[0].mxu0
    %v2931 = vadd.f32 %v333, %v2930
    %v2932 = vpop.f32.mrb[0].mxu0
    %v2933 = vadd.f32 %v329, %v2932
    %v2934 = vpop.f32.mrb[0].mxu0
    %v2935 = vadd.f32 %v333, %v2934
    %2936 = vmatprep.mubr.bf16.mxu0 %v1471
    %2937 = vmatmul.mubr.bf16.gmra.mrb[0].mxu0 %v456
    %v2938 = vpop.f32.mrb[0].mxu0
    %v2939 = vadd.f32 %v329, %v2938
    %v2940 = vpop.f32.mrb[0].mxu0
    %v2941 = vadd.f32 %v333, %v2940
    %v2942 = vpop.f32.mrb[0].mxu0
    %v2943 = vadd.f32 %v329, %v2942
    %v2944 = vpop.f32.mrb[0].mxu0
    %v2945 = vadd.f32 %v333, %v2944
    %2946 = vmatprep.mubr.bf16.mxu0 %v1474
    %2947 = vmatmul.mubr.bf16.gmra.mrb[0].mxu0 %v458
    %v2948 = vpop.f32.mrb[0].mxu0
    %v2949 = vadd.f32 %v329, %v2948
    %v2950 = vpop.f32.mrb[0].mxu0
    %v2951 = vadd.f32 %v333, %v2950
    %v2952 = vpop.f32.mrb[0].mxu0
    %v2953 = vadd.f32 %v329, %v2952
    %v2954 = vpop.f32.mrb[0].mxu0
    %v2955 = vadd.f32 %v333, %v2954
    %2956 = vmatprep.mubr.bf16.mxu0 %v1477
    %2957 = vmatmul.mubr.bf16.gmra.mrb[0].mxu0 %v460
    %v2958 = vpop.f32.mrb[0].mxu0
    %v2959 = vadd.f32 %v329, %v2958
    %v2960 = vpop.f32.mrb[0].mxu0
    %v2961 = vadd.f32 %v333, %v2960
    %v2962 = vpop.f32.mrb[0].mxu0
    %v2963 = vadd.f32 %v329, %v2962
    %v2964 = vpop.f32.mrb[0].mxu0
    %v2965 = vadd.f32 %v333, %v2964
    %2966 = vmatprep.mubr.bf16.mxu0 %v1480
    %2967 = vmatmul.mubr.bf16.gmra.mrb[0].mxu0 %v462
    %v2968 = vpop.f32.mrb[0].mxu0
    %v2969 = vadd.f32 %v329, %v2968
    %v2970 = vpop.f32.mrb[0].mxu0
    %v2971 = vadd.f32 %v333, %v2970
    %v2972 = vpop.f32.mrb[0].mxu0
    %v2973 = vadd.f32 %v329, %v2972
    %v2974 = vpop.f32.mrb[0].mxu0
    %v2975 = vadd.f32 %v333, %v2974
    %2976 = vmatprep.mubr.bf16.mxu0 %v1483
    %2977 = vmatmul.mubr.bf16.gmra.mrb[0].mxu0 %v464
    %v2978 = vpop.f32.mrb[0].mxu0
    %v2979 = vadd.f32 %v329, %v2978
    %v2980 = vpop.f32.mrb[0].mxu0
    %v2981 = vadd.f32 %v333, %v2980
    %v2982 = vpop.f32.mrb[0].mxu0
    %v2983 = vadd.f32 %v329, %v2982
    %v2984 = vpop.f32.mrb[0].mxu0
    %v2985 = vadd.f32 %v333, %v2984
    %2986 = vmatprep.mubr.bf16.mxu0 %v1486
    %2987 = vmatmul.mubr.bf16.gmra.mrb[0].mxu0 %v466
    %v2988 = vpop.f32.mrb[0].mxu0
    %v2989 = vadd.f32 %v329, %v2988
    %v2990 = vpop.f32.mrb[0].mxu0
    %v2991 = vadd.f32 %v333, %v2990
    %v2992 = vpop.f32.mrb[0].mxu0
    %v2993 = vadd.f32 %v329, %v2992
    %v2994 = vpop.f32.mrb[0].mxu0
    %v2995 = vadd.f32 %v333, %v2994
    %2996 = vmatprep.mubr.bf16.mxu0 %v1489
    %2997 = vmatmul.mubr.bf16.gmra.mrb[0].mxu0 %v468
    %v2998 = vpop.f32.mrb[0].mxu0
    %v2999 = vadd.f32 %v329, %v2998
    %v3000 = vpop.f32.mrb[0].mxu0
    %v3001 = vadd.f32 %v333, %v3000
    %v3002 = vpop.f32.mrb[0].mxu0
    %v3003 = vadd.f32 %v329, %v3002
    %v3004 = vpop.f32.mrb[0].mxu0
    %v3005 = vadd.f32 %v333, %v3004
    %3006 = vmatprep.mubr.bf16.mxu0 %v1492
    %3007 = vmatmul.mubr.bf16.gmra.mrb[0].mxu0 %v470
    %v3008 = vpop.f32.mrb[0].mxu0
    %v3009 = vadd.f32 %v329, %v3008
    %v3010 = vpop.f32.mrb[0].mxu0
    %v3011 = vadd.f32 %v333, %v3010
    %v3012 = vpop.f32.mrb[0].mxu0
    %v3013 = vadd.f32 %v329, %v3012
    %v3014 = vpop.f32.mrb[0].mxu0
    %v3015 = vadd.f32 %v333, %v3014
    %3016 = vmatprep.mubr.bf16.mxu0 %v1495
    %3017 = vmatmul.mubr.bf16.gmra.mrb[0].mxu0 %v472
    %v3018 = vpop.f32.mrb[0].mxu0
    %v3019 = vadd.f32 %v329, %v3018
    %v3020 = vpop.f32.mrb[0].mxu0
    %v3021 = vadd.f32 %v333, %v3020
    %v3022 = vpop.f32.mrb[0].mxu0
    %v3023 = vadd.f32 %v329, %v3022
    %v3024 = vpop.f32.mrb[0].mxu0
    %v3025 = vadd.f32 %v333, %v3024
    %3026 = vmatprep.mubr.bf16.mxu0 %v1498
    %3027 = vmatmul.mubr.bf16.gmra.mrb[0].mxu0 %v474
    %v3028 = vpop.f32.mrb[0].mxu0
    %v3029 = vadd.f32 %v329, %v3028
    %v3030 = vpop.f32.mrb[0].mxu0
    %v3031 = vadd.f32 %v333, %v3030
    %v3032 = vpop.f32.mrb[0].mxu0
    %v3033 = vadd.f32 %v329, %v3032
    %v3034 = vpop.f32.mrb[0].mxu0
    %v3035 = vadd.f32 %v333, %v3034
    %3036 = vmatprep.mubr.bf16.mxu0 %v1501
    %3037 = vmatmul.mubr.bf16.gmra.mrb[0].mxu0 %v476
    %v3038 = vpop.f32.mrb[0].mxu0
    %v3039 = vadd.f32 %v329, %v3038
    %v3040 = vpop.f32.mrb[0].mxu0
    %v3041 = vadd.f32 %v333, %v3040
    %v3042 = vpop.f32.mrb[0].mxu0
    %v3043 = vadd.f32 %v329, %v3042
    %v3044 = vpop.f32.mrb[0].mxu0
    %v3045 = vadd.f32 %v333, %v3044
    %3046 = vdwg.mxu0
    %3047 = vst [vmem:[#allocation7] sm:$0xff] %v1538
    %3048 = vst [vmem:[#allocation7 + $0x8] sm:$0xff] %v1540
    %3049 = vst [vmem:[#allocation7 + $0x10] sm:$0xff] %v1731
    %3050 = vst [vmem:[#allocation7 + $0x18] sm:$0xff] %v1733
    %3051 = vst [vmem:[#allocation7 + $0x20] sm:$0xff] %v1924
    %3052 = vst [vmem:[#allocation7 + $0x28] sm:$0xff] %v1926
    %3053 = vst [vmem:[#allocation7 + $0x30] sm:$0xff] %v2117
    %3054 = vst [vmem:[#allocation7 + $0x38] sm:$0xff] %v2119
    %3055 = vst [vmem:[#allocation7 + $0x40] sm:$0xff] %v2310
    %3056 = vst [vmem:[#allocation7 + $0x48] sm:$0xff] %v2312
    %3057 = vst [vmem:[#allocation7 + $0x50] sm:$0xff] %v2503
    %3058 = vst [vmem:[#allocation7 + $0x58] sm:$0xff] %v2505
    %3059 = vst [vmem:[#allocation7 + $0x60] sm:$0xff] %v2696
    %3060 = vst [vmem:[#allocation7 + $0x68] sm:$0xff] %v2698
    %3061 = vst [vmem:[#allocation7 + $0x70] sm:$0xff] %v2889
    %3062 = vst [vmem:[#allocation7 + $0x78] sm:$0xff] %v2891
    %3063 = vst [vmem:[#allocation7 + $0x80] sm:$0xff] %v1542
    %3064 = vst [vmem:[#allocation7 + $0x88] sm:$0xff] %v1544
    %3065 = vst [vmem:[#allocation7 + $0x90] sm:$0xff] %v1735
    %3066 = vst [vmem:[#allocation7 + $0x98] sm:$0xff] %v1737
    %3067 = vst [vmem:[#allocation7 + $0xa0] sm:$0xff] %v1928
    %3068 = vst [vmem:[#allocation7 + $0xa8] sm:$0xff] %v1930
    %3069 = vst [vmem:[#allocation7 + $0xb0] sm:$0xff] %v2121
    %3070 = vst [vmem:[#allocation7 + $0xb8] sm:$0xff] %v2123
    %3071 = vst [vmem:[#allocation7 + $0xc0] sm:$0xff] %v2314
    %3072 = vst [vmem:[#allocation7 + $0xc8] sm:$0xff] %v2316
    %3073 = vst [vmem:[#allocation7 + $0xd0] sm:$0xff] %v2507
    %3074 = vst [vmem:[#allocation7 + $0xd8] sm:$0xff] %v2509
    %3075 = vst [vmem:[#allocation7 + $0xe0] sm:$0xff] %v2700
    %3076 = vst [vmem:[#allocation7 + $0xe8] sm:$0xff] %v2702
    %3077 = vst [vmem:[#allocation7 + $0xf0] sm:$0xff] %v2893
    %3078 = vst [vmem:[#allocation7 + $0xf8] sm:$0xff] %v2895
    %3079 = vst [vmem:[#allocation7 + $0x100] sm:$0xff] %v1548
    %3080 = vst [vmem:[#allocation7 + $0x108] sm:$0xff] %v1550
    %3081 = vst [vmem:[#allocation7 + $0x110] sm:$0xff] %v1741
    %3082 = vst [vmem:[#allocation7 + $0x118] sm:$0xff] %v1743
    %3083 = vst [vmem:[#allocation7 + $0x120] sm:$0xff] %v1934
    %3084 = vst [vmem:[#allocation7 + $0x128] sm:$0xff] %v1936
    %3085 = vst [vmem:[#allocation7 + $0x130] sm:$0xff] %v2127
    %3086 = vst [vmem:[#allocation7 + $0x138] sm:$0xff] %v2129
    %3087 = vst [vmem:[#allocation7 + $0x140] sm:$0xff] %v2320
    %3088 = vst [vmem:[#allocation7 + $0x148] sm:$0xff] %v2322
    %3089 = vst [vmem:[#allocation7 + $0x150] sm:$0xff] %v2513
    %3090 = vst [vmem:[#allocation7 + $0x158] sm:$0xff] %v2515
    %3091 = vst [vmem:[#allocation7 + $0x160] sm:$0xff] %v2706
    %3092 = vst [vmem:[#allocation7 + $0x168] sm:$0xff] %v2708
    %3093 = vst [vmem:[#allocation7 + $0x170] sm:$0xff] %v2899
    %3094 = vst [vmem:[#allocation7 + $0x178] sm:$0xff] %v2901
    %3095 = vst [vmem:[#allocation7 + $0x180] sm:$0xff] %v1552
    %3096 = vst [vmem:[#allocation7 + $0x188] sm:$0xff] %v1554
    %3097 = vst [vmem:[#allocation7 + $0x190] sm:$0xff] %v1745
    %3098 = vst [vmem:[#allocation7 + $0x198] sm:$0xff] %v1747
    %3099 = vst [vmem:[#allocation7 + $0x1a0] sm:$0xff] %v1938
    %3100 = vst [vmem:[#allocation7 + $0x1a8] sm:$0xff] %v1940
    %3101 = vst [vmem:[#allocation7 + $0x1b0] sm:$0xff] %v2131
    %3102 = vst [vmem:[#allocation7 + $0x1b8] sm:$0xff] %v2133
    %3103 = vst [vmem:[#allocation7 + $0x1c0] sm:$0xff] %v2324
    %3104 = vst [vmem:[#allocation7 + $0x1c8] sm:$0xff] %v2326
    %3105 = vst [vmem:[#allocation7 + $0x1d0] sm:$0xff] %v2517
    %3106 = vst [vmem:[#allocation7 + $0x1d8] sm:$0xff] %v2519
    %3107 = vst [vmem:[#allocation7 + $0x1e0] sm:$0xff] %v2710
    %3108 = vst [vmem:[#allocation7 + $0x1e8] sm:$0xff] %v2712
    %3109 = vst [vmem:[#allocation7 + $0x1f0] sm:$0xff] %v2903
    %3110 = vst [vmem:[#allocation7 + $0x1f8] sm:$0xff] %v2905
    %3111 = vst [vmem:[#allocation7 + $0x200] sm:$0xff] %v1558
    %3112 = vst [vmem:[#allocation7 + $0x208] sm:$0xff] %v1560
    %3113 = vst [vmem:[#allocation7 + $0x210] sm:$0xff] %v1751
    %3114 = vst [vmem:[#allocation7 + $0x218] sm:$0xff] %v1753
    %3115 = vst [vmem:[#allocation7 + $0x220] sm:$0xff] %v1944
    %3116 = vst [vmem:[#allocation7 + $0x228] sm:$0xff] %v1946
    %3117 = vst [vmem:[#allocation7 + $0x230] sm:$0xff] %v2137
    %3118 = vst [vmem:[#allocation7 + $0x238] sm:$0xff] %v2139
    %3119 = vst [vmem:[#allocation7 + $0x240] sm:$0xff] %v2330
    %3120 = vst [vmem:[#allocation7 + $0x248] sm:$0xff] %v2332
    %3121 = vst [vmem:[#allocation7 + $0x250] sm:$0xff] %v2523
    %3122 = vst [vmem:[#allocation7 + $0x258] sm:$0xff] %v2525
    %3123 = vst [vmem:[#allocation7 + $0x260] sm:$0xff] %v2716
    %3124 = vst [vmem:[#allocation7 + $0x268] sm:$0xff] %v2718
    %3125 = vst [vmem:[#allocation7 + $0x270] sm:$0xff] %v2909
    %3126 = vst [vmem:[#allocation7 + $0x278] sm:$0xff] %v2911
    %3127 = vst [vmem:[#allocation7 + $0x280] sm:$0xff] %v1562
    %3128 = vst [vmem:[#allocation7 + $0x288] sm:$0xff] %v1564
    %3129 = vst [vmem:[#allocation7 + $0x290] sm:$0xff] %v1755
    %3130 = vst [vmem:[#allocation7 + $0x298] sm:$0xff] %v1757
    %3131 = vst [vmem:[#allocation7 + $0x2a0] sm:$0xff] %v1948
    %3132 = vst [vmem:[#allocation7 + $0x2a8] sm:$0xff] %v1950
    %3133 = vst [vmem:[#allocation7 + $0x2b0] sm:$0xff] %v2141
    %3134 = vst [vmem:[#allocation7 + $0x2b8] sm:$0xff] %v2143
    %3135 = vst [vmem:[#allocation7 + $0x2c0] sm:$0xff] %v2334
    %3136 = vst [vmem:[#allocation7 + $0x2c8] sm:$0xff] %v2336
    %3137 = vst [vmem:[#allocation7 + $0x2d0] sm:$0xff] %v2527
    %3138 = vst [vmem:[#allocation7 + $0x2d8] sm:$0xff] %v2529
    %3139 = vst [vmem:[#allocation7 + $0x2e0] sm:$0xff] %v2720
    %3140 = vst [vmem:[#allocation7 + $0x2e8] sm:$0xff] %v2722
    %3141 = vst [vmem:[#allocation7 + $0x2f0] sm:$0xff] %v2913
    %3142 = vst [vmem:[#allocation7 + $0x2f8] sm:$0xff] %v2915
    %3143 = vst [vmem:[#allocation7 + $0x300] sm:$0xff] %v1568
    %3144 = vst [vmem:[#allocation7 + $0x308] sm:$0xff] %v1570
    %3145 = vst [vmem:[#allocation7 + $0x310] sm:$0xff] %v1761
    %3146 = vst [vmem:[#allocation7 + $0x318] sm:$0xff] %v1763
    %3147 = vst [vmem:[#allocation7 + $0x320] sm:$0xff] %v1954
    %3148 = vst [vmem:[#allocation7 + $0x328] sm:$0xff] %v1956
    %3149 = vst [vmem:[#allocation7 + $0x330] sm:$0xff] %v2147
    %3150 = vst [vmem:[#allocation7 + $0x338] sm:$0xff] %v2149
    %3151 = vst [vmem:[#allocation7 + $0x340] sm:$0xff] %v2340
    %3152 = vst [vmem:[#allocation7 + $0x348] sm:$0xff] %v2342
    %3153 = vst [vmem:[#allocation7 + $0x350] sm:$0xff] %v2533
    %3154 = vst [vmem:[#allocation7 + $0x358] sm:$0xff] %v2535
    %3155 = vst [vmem:[#allocation7 + $0x360] sm:$0xff] %v2726
    %3156 = vst [vmem:[#allocation7 + $0x368] sm:$0xff] %v2728
    %3157 = vst [vmem:[#allocation7 + $0x370] sm:$0xff] %v2919
    %3158 = vst [vmem:[#allocation7 + $0x378] sm:$0xff] %v2921
    %3159 = vst [vmem:[#allocation7 + $0x380] sm:$0xff] %v1572
    %3160 = vst [vmem:[#allocation7 + $0x388] sm:$0xff] %v1574
    %3161 = vst [vmem:[#allocation7 + $0x390] sm:$0xff] %v1765
    %3162 = vst [vmem:[#allocation7 + $0x398] sm:$0xff] %v1767
    %3163 = vst [vmem:[#allocation7 + $0x3a0] sm:$0xff] %v1958
    %3164 = vst [vmem:[#allocation7 + $0x3a8] sm:$0xff] %v1960
    %3165 = vst [vmem:[#allocation7 + $0x3b0] sm:$0xff] %v2151
    %3166 = vst [vmem:[#allocation7 + $0x3b8] sm:$0xff] %v2153
    %3167 = vst [vmem:[#allocation7 + $0x3c0] sm:$0xff] %v2344
    %3168 = vst [vmem:[#allocation7 + $0x3c8] sm:$0xff] %v2346
    %3169 = vst [vmem:[#allocation7 + $0x3d0] sm:$0xff] %v2537
    %3170 = vst [vmem:[#allocation7 + $0x3d8] sm:$0xff] %v2539
    %3171 = vst [vmem:[#allocation7 + $0x3e0] sm:$0xff] %v2730
    %3172 = vst [vmem:[#allocation7 + $0x3e8] sm:$0xff] %v2732
    %3173 = vst [vmem:[#allocation7 + $0x3f0] sm:$0xff] %v2923
    %3174 = vst [vmem:[#allocation7 + $0x3f8] sm:$0xff] %v2925
    %3175 = vst [vmem:[#allocation7 + $0x400] sm:$0xff] %v1578
    %3176 = vst [vmem:[#allocation7 + $0x408] sm:$0xff] %v1580
    %3177 = vst [vmem:[#allocation7 + $0x410] sm:$0xff] %v1771
    %3178 = vst [vmem:[#allocation7 + $0x418] sm:$0xff] %v1773
    %3179 = vst [vmem:[#allocation7 + $0x420] sm:$0xff] %v1964
    %3180 = vst [vmem:[#allocation7 + $0x428] sm:$0xff] %v1966
    %3181 = vst [vmem:[#allocation7 + $0x430] sm:$0xff] %v2157
    %3182 = vst [vmem:[#allocation7 + $0x438] sm:$0xff] %v2159
    %3183 = vst [vmem:[#allocation7 + $0x440] sm:$0xff] %v2350
    %3184 = vst [vmem:[#allocation7 + $0x448] sm:$0xff] %v2352
    %3185 = vst [vmem:[#allocation7 + $0x450] sm:$0xff] %v2543
    %3186 = vst [vmem:[#allocation7 + $0x458] sm:$0xff] %v2545
    %3187 = vst [vmem:[#allocation7 + $0x460] sm:$0xff] %v2736
    %3188 = vst [vmem:[#allocation7 + $0x468] sm:$0xff] %v2738
    %3189 = vst [vmem:[#allocation7 + $0x470] sm:$0xff] %v2929
    %3190 = vst [vmem:[#allocation7 + $0x478] sm:$0xff] %v2931
    %3191 = vst [vmem:[#allocation7 + $0x480] sm:$0xff] %v1582
    %3192 = vst [vmem:[#allocation7 + $0x488] sm:$0xff] %v1584
    %3193 = vst [vmem:[#allocation7 + $0x490] sm:$0xff] %v1775
    %3194 = vst [vmem:[#allocation7 + $0x498] sm:$0xff] %v1777
    %3195 = vst [vmem:[#allocation7 + $0x4a0] sm:$0xff] %v1968
    %3196 = vst [vmem:[#allocation7 + $0x4a8] sm:$0xff] %v1970
    %3197 = vst [vmem:[#allocation7 + $0x4b0] sm:$0xff] %v2161
    %3198 = vst [vmem:[#allocation7 + $0x4b8] sm:$0xff] %v2163
    %3199 = vst [vmem:[#allocation7 + $0x4c0] sm:$0xff] %v2354
    %3200 = vst [vmem:[#allocation7 + $0x4c8] sm:$0xff] %v2356
    %3201 = vst [vmem:[#allocation7 + $0x4d0] sm:$0xff] %v2547
    %3202 = vst [vmem:[#allocation7 + $0x4d8] sm:$0xff] %v2549
    %3203 = vst [vmem:[#allocation7 + $0x4e0] sm:$0xff] %v2740
    %3204 = vst [vmem:[#allocation7 + $0x4e8] sm:$0xff] %v2742
    %3205 = vst [vmem:[#allocation7 + $0x4f0] sm:$0xff] %v2933
    %3206 = vst [vmem:[#allocation7 + $0x4f8] sm:$0xff] %v2935
    %3207 = vst [vmem:[#allocation7 + $0x500] sm:$0xff] %v1588
    %3208 = vst [vmem:[#allocation7 + $0x508] sm:$0xff] %v1590
    %3209 = vst [vmem:[#allocation7 + $0x510] sm:$0xff] %v1781
    %3210 = vst [vmem:[#allocation7 + $0x518] sm:$0xff] %v1783
    %3211 = vst [vmem:[#allocation7 + $0x520] sm:$0xff] %v1974
    %3212 = vst [vmem:[#allocation7 + $0x528] sm:$0xff] %v1976
    %3213 = vst [vmem:[#allocation7 + $0x530] sm:$0xff] %v2167
    %3214 = vst [vmem:[#allocation7 + $0x538] sm:$0xff] %v2169
    %3215 = vst [vmem:[#allocation7 + $0x540] sm:$0xff] %v2360
    %3216 = vst [vmem:[#allocation7 + $0x548] sm:$0xff] %v2362
    %3217 = vst [vmem:[#allocation7 + $0x550] sm:$0xff] %v2553
    %3218 = vst [vmem:[#allocation7 + $0x558] sm:$0xff] %v2555
    %3219 = vst [vmem:[#allocation7 + $0x560] sm:$0xff] %v2746
    %3220 = vst [vmem:[#allocation7 + $0x568] sm:$0xff] %v2748
    %3221 = vst [vmem:[#allocation7 + $0x570] sm:$0xff] %v2939
    %3222 = vst [vmem:[#allocation7 + $0x578] sm:$0xff] %v2941
    %3223 = vst [vmem:[#allocation7 + $0x580] sm:$0xff] %v1592
    %3224 = vst [vmem:[#allocation7 + $0x588] sm:$0xff] %v1594
    %3225 = vst [vmem:[#allocation7 + $0x590] sm:$0xff] %v1785
    %3226 = vst [vmem:[#allocation7 + $0x598] sm:$0xff] %v1787
    %3227 = vst [vmem:[#allocation7 + $0x5a0] sm:$0xff] %v1978
    %3228 = vst [vmem:[#allocation7 + $0x5a8] sm:$0xff] %v1980
    %3229 = vst [vmem:[#allocation7 + $0x5b0] sm:$0xff] %v2171
    %3230 = vst [vmem:[#allocation7 + $0x5b8] sm:$0xff] %v2173
    %3231 = vst [vmem:[#allocation7 + $0x5c0] sm:$0xff] %v2364
    %3232 = vst [vmem:[#allocation7 + $0x5c8] sm:$0xff] %v2366
    %3233 = vst [vmem:[#allocation7 + $0x5d0] sm:$0xff] %v2557
    %3234 = vst [vmem:[#allocation7 + $0x5d8] sm:$0xff] %v2559
    %3235 = vst [vmem:[#allocation7 + $0x5e0] sm:$0xff] %v2750
    %3236 = vst [vmem:[#allocation7 + $0x5e8] sm:$0xff] %v2752
    %3237 = vst [vmem:[#allocation7 + $0x5f0] sm:$0xff] %v2943
    %3238 = vst [vmem:[#allocation7 + $0x5f8] sm:$0xff] %v2945
    %3239 = vst [vmem:[#allocation7 + $0x600] sm:$0xff] %v1598
    %3240 = vst [vmem:[#allocation7 + $0x608] sm:$0xff] %v1600
    %3241 = vst [vmem:[#allocation7 + $0x610] sm:$0xff] %v1791
    %3242 = vst [vmem:[#allocation7 + $0x618] sm:$0xff] %v1793
    %3243 = vst [vmem:[#allocation7 + $0x620] sm:$0xff] %v1984
    %3244 = vst [vmem:[#allocation7 + $0x628] sm:$0xff] %v1986
    %3245 = vst [vmem:[#allocation7 + $0x630] sm:$0xff] %v2177
    %3246 = vst [vmem:[#allocation7 + $0x638] sm:$0xff] %v2179
    %3247 = vst [vmem:[#allocation7 + $0x640] sm:$0xff] %v2370
    %3248 = vst [vmem:[#allocation7 + $0x648] sm:$0xff] %v2372
    %3249 = vst [vmem:[#allocation7 + $0x650] sm:$0xff] %v2563
    %3250 = vst [vmem:[#allocation7 + $0x658] sm:$0xff] %v2565
    %3251 = vst [vmem:[#allocation7 + $0x660] sm:$0xff] %v2756
    %3252 = vst [vmem:[#allocation7 + $0x668] sm:$0xff] %v2758
    %3253 = vst [vmem:[#allocation7 + $0x670] sm:$0xff] %v2949
    %3254 = vst [vmem:[#allocation7 + $0x678] sm:$0xff] %v2951
    %3255 = vst [vmem:[#allocation7 + $0x680] sm:$0xff] %v1602
    %3256 = vst [vmem:[#allocation7 + $0x688] sm:$0xff] %v1604
    %3257 = vst [vmem:[#allocation7 + $0x690] sm:$0xff] %v1795
    %3258 = vst [vmem:[#allocation7 + $0x698] sm:$0xff] %v1797
    %3259 = vst [vmem:[#allocation7 + $0x6a0] sm:$0xff] %v1988
    %3260 = vst [vmem:[#allocation7 + $0x6a8] sm:$0xff] %v1990
    %3261 = vst [vmem:[#allocation7 + $0x6b0] sm:$0xff] %v2181
    %3262 = vst [vmem:[#allocation7 + $0x6b8] sm:$0xff] %v2183
    %3263 = vst [vmem:[#allocation7 + $0x6c0] sm:$0xff] %v2374
    %3264 = vst [vmem:[#allocation7 + $0x6c8] sm:$0xff] %v2376
    %3265 = vst [vmem:[#allocation7 + $0x6d0] sm:$0xff] %v2567
    %3266 = vst [vmem:[#allocation7 + $0x6d8] sm:$0xff] %v2569
    %3267 = vst [vmem:[#allocation7 + $0x6e0] sm:$0xff] %v2760
    %3268 = vst [vmem:[#allocation7 + $0x6e8] sm:$0xff] %v2762
    %3269 = vst [vmem:[#allocation7 + $0x6f0] sm:$0xff] %v2953
    %3270 = vst [vmem:[#allocation7 + $0x6f8] sm:$0xff] %v2955
    %3271 = vst [vmem:[#allocation7 + $0x700] sm:$0xff] %v1608
    %3272 = vst [vmem:[#allocation7 + $0x708] sm:$0xff] %v1610
    %3273 = vst [vmem:[#allocation7 + $0x710] sm:$0xff] %v1801
    %3274 = vst [vmem:[#allocation7 + $0x718] sm:$0xff] %v1803
    %3275 = vst [vmem:[#allocation7 + $0x720] sm:$0xff] %v1994
    %3276 = vst [vmem:[#allocation7 + $0x728] sm:$0xff] %v1996
    %3277 = vst [vmem:[#allocation7 + $0x730] sm:$0xff] %v2187
    %3278 = vst [vmem:[#allocation7 + $0x738] sm:$0xff] %v2189
    %3279 = vst [vmem:[#allocation7 + $0x740] sm:$0xff] %v2380
    %3280 = vst [vmem:[#allocation7 + $0x748] sm:$0xff] %v2382
    %3281 = vst [vmem:[#allocation7 + $0x750] sm:$0xff] %v2573
    %3282 = vst [vmem:[#allocation7 + $0x758] sm:$0xff] %v2575
    %3283 = vst [vmem:[#allocation7 + $0x760] sm:$0xff] %v2766
    %3284 = vst [vmem:[#allocation7 + $0x768] sm:$0xff] %v2768
    %3285 = vst [vmem:[#allocation7 + $0x770] sm:$0xff] %v2959
    %3286 = vst [vmem:[#allocation7 + $0x778] sm:$0xff] %v2961
    %3287 = vst [vmem:[#allocation7 + $0x780] sm:$0xff] %v1612
    %3288 = vst [vmem:[#allocation7 + $0x788] sm:$0xff] %v1614
    %3289 = vst [vmem:[#allocation7 + $0x790] sm:$0xff] %v1805
    %3290 = vst [vmem:[#allocation7 + $0x798] sm:$0xff] %v1807
    %3291 = vst [vmem:[#allocation7 + $0x7a0] sm:$0xff] %v1998
    %3292 = vst [vmem:[#allocation7 + $0x7a8] sm:$0xff] %v2000
    %3293 = vst [vmem:[#allocation7 + $0x7b0] sm:$0xff] %v2191
    %3294 = vst [vmem:[#allocation7 + $0x7b8] sm:$0xff] %v2193
    %3295 = vst [vmem:[#allocation7 + $0x7c0] sm:$0xff] %v2384
    %3296 = vst [vmem:[#allocation7 + $0x7c8] sm:$0xff] %v2386
    %3297 = vst [vmem:[#allocation7 + $0x7d0] sm:$0xff] %v2577
    %3298 = vst [vmem:[#allocation7 + $0x7d8] sm:$0xff] %v2579
    %3299 = vst [vmem:[#allocation7 + $0x7e0] sm:$0xff] %v2770
    %3300 = vst [vmem:[#allocation7 + $0x7e8] sm:$0xff] %v2772
    %3301 = vst [vmem:[#allocation7 + $0x7f0] sm:$0xff] %v2963
    %3302 = vst [vmem:[#allocation7 + $0x7f8] sm:$0xff] %v2965
    %3303 = vst [vmem:[#allocation7 + $0x800] sm:$0xff] %v1618
    %3304 = vst [vmem:[#allocation7 + $0x808] sm:$0xff] %v1620
    %3305 = vst [vmem:[#allocation7 + $0x810] sm:$0xff] %v1811
    %3306 = vst [vmem:[#allocation7 + $0x818] sm:$0xff] %v1813
    %3307 = vst [vmem:[#allocation7 + $0x820] sm:$0xff] %v2004
    %3308 = vst [vmem:[#allocation7 + $0x828] sm:$0xff] %v2006
    %3309 = vst [vmem:[#allocation7 + $0x830] sm:$0xff] %v2197
    %3310 = vst [vmem:[#allocation7 + $0x838] sm:$0xff] %v2199
    %3311 = vst [vmem:[#allocation7 + $0x840] sm:$0xff] %v2390
    %3312 = vst [vmem:[#allocation7 + $0x848] sm:$0xff] %v2392
    %3313 = vst [vmem:[#allocation7 + $0x850] sm:$0xff] %v2583
    %3314 = vst [vmem:[#allocation7 + $0x858] sm:$0xff] %v2585
    %3315 = vst [vmem:[#allocation7 + $0x860] sm:$0xff] %v2776
    %3316 = vst [vmem:[#allocation7 + $0x868] sm:$0xff] %v2778
    %3317 = vst [vmem:[#allocation7 + $0x870] sm:$0xff] %v2969
    %3318 = vst [vmem:[#allocation7 + $0x878] sm:$0xff] %v2971
    %3319 = vst [vmem:[#allocation7 + $0x880] sm:$0xff] %v1622
    %3320 = vst [vmem:[#allocation7 + $0x888] sm:$0xff] %v1624
    %3321 = vst [vmem:[#allocation7 + $0x890] sm:$0xff] %v1815
    %3322 = vst [vmem:[#allocation7 + $0x898] sm:$0xff] %v1817
    %3323 = vst [vmem:[#allocation7 + $0x8a0] sm:$0xff] %v2008
    %3324 = vst [vmem:[#allocation7 + $0x8a8] sm:$0xff] %v2010
    %3325 = vst [vmem:[#allocation7 + $0x8b0] sm:$0xff] %v2201
    %3326 = vst [vmem:[#allocation7 + $0x8b8] sm:$0xff] %v2203
    %3327 = vst [vmem:[#allocation7 + $0x8c0] sm:$0xff] %v2394
    %3328 = vst [vmem:[#allocation7 + $0x8c8] sm:$0xff] %v2396
    %3329 = vst [vmem:[#allocation7 + $0x8d0] sm:$0xff] %v2587
    %3330 = vst [vmem:[#allocation7 + $0x8d8] sm:$0xff] %v2589
    %3331 = vst [vmem:[#allocation7 + $0x8e0] sm:$0xff] %v2780
    %3332 = vst [vmem:[#allocation7 + $0x8e8] sm:$0xff] %v2782
    %3333 = vst [vmem:[#allocation7 + $0x8f0] sm:$0xff] %v2973
    %3334 = vst [vmem:[#allocation7 + $0x8f8] sm:$0xff] %v2975
    %3335 = vst [vmem:[#allocation7 + $0x900] sm:$0xff] %v1628
    %3336 = vst [vmem:[#allocation7 + $0x908] sm:$0xff] %v1630
    %3337 = vst [vmem:[#allocation7 + $0x910] sm:$0xff] %v1821
    %3338 = vst [vmem:[#allocation7 + $0x918] sm:$0xff] %v1823
    %3339 = vst [vmem:[#allocation7 + $0x920] sm:$0xff] %v2014
    %3340 = vst [vmem:[#allocation7 + $0x928] sm:$0xff] %v2016
    %3341 = vst [vmem:[#allocation7 + $0x930] sm:$0xff] %v2207
    %3342 = vst [vmem:[#allocation7 + $0x938] sm:$0xff] %v2209
    %3343 = vst [vmem:[#allocation7 + $0x940] sm:$0xff] %v2400
    %3344 = vst [vmem:[#allocation7 + $0x948] sm:$0xff] %v2402
    %3345 = vst [vmem:[#allocation7 + $0x950] sm:$0xff] %v2593
    %3346 = vst [vmem:[#allocation7 + $0x958] sm:$0xff] %v2595
    %3347 = vst [vmem:[#allocation7 + $0x960] sm:$0xff] %v2786
    %3348 = vst [vmem:[#allocation7 + $0x968] sm:$0xff] %v2788
    %3349 = vst [vmem:[#allocation7 + $0x970] sm:$0xff] %v2979
    %3350 = vst [vmem:[#allocation7 + $0x978] sm:$0xff] %v2981
    %3351 = vst [vmem:[#allocation7 + $0x980] sm:$0xff] %v1632
    %3352 = vst [vmem:[#allocation7 + $0x988] sm:$0xff] %v1634
    %3353 = vst [vmem:[#allocation7 + $0x990] sm:$0xff] %v1825
    %3354 = vst [vmem:[#allocation7 + $0x998] sm:$0xff] %v1827
    %3355 = vst [vmem:[#allocation7 + $0x9a0] sm:$0xff] %v2018
    %3356 = vst [vmem:[#allocation7 + $0x9a8] sm:$0xff] %v2020
    %3357 = vst [vmem:[#allocation7 + $0x9b0] sm:$0xff] %v2211
    %3358 = vst [vmem:[#allocation7 + $0x9b8] sm:$0xff] %v2213
    %3359 = vst [vmem:[#allocation7 + $0x9c0] sm:$0xff] %v2404
    %3360 = vst [vmem:[#allocation7 + $0x9c8] sm:$0xff] %v2406
    %3361 = vst [vmem:[#allocation7 + $0x9d0] sm:$0xff] %v2597
    %3362 = vst [vmem:[#allocation7 + $0x9d8] sm:$0xff] %v2599
    %3363 = vst [vmem:[#allocation7 + $0x9e0] sm:$0xff] %v2790
    %3364 = vst [vmem:[#allocation7 + $0x9e8] sm:$0xff] %v2792
    %3365 = vst [vmem:[#allocation7 + $0x9f0] sm:$0xff] %v2983
    %3366 = vst [vmem:[#allocation7 + $0x9f8] sm:$0xff] %v2985
    %3367 = vst [vmem:[#allocation7 + $0xa00] sm:$0xff] %v1638
    %3368 = vst [vmem:[#allocation7 + $0xa08] sm:$0xff] %v1640
    %3369 = vst [vmem:[#allocation7 + $0xa10] sm:$0xff] %v1831
    %3370 = vst [vmem:[#allocation7 + $0xa18] sm:$0xff] %v1833
    %3371 = vst [vmem:[#allocation7 + $0xa20] sm:$0xff] %v2024
    %3372 = vst [vmem:[#allocation7 + $0xa28] sm:$0xff] %v2026
    %3373 = vst [vmem:[#allocation7 + $0xa30] sm:$0xff] %v2217
    %3374 = vst [vmem:[#allocation7 + $0xa38] sm:$0xff] %v2219
    %3375 = vst [vmem:[#allocation7 + $0xa40] sm:$0xff] %v2410
    %3376 = vst [vmem:[#allocation7 + $0xa48] sm:$0xff] %v2412
    %3377 = vst [vmem:[#allocation7 + $0xa50] sm:$0xff] %v2603
    %3378 = vst [vmem:[#allocation7 + $0xa58] sm:$0xff] %v2605
    %3379 = vst [vmem:[#allocation7 + $0xa60] sm:$0xff] %v2796
    %3380 = vst [vmem:[#allocation7 + $0xa68] sm:$0xff] %v2798
    %3381 = vst [vmem:[#allocation7 + $0xa70] sm:$0xff] %v2989
    %3382 = vst [vmem:[#allocation7 + $0xa78] sm:$0xff] %v2991
    %3383 = vst [vmem:[#allocation7 + $0xa80] sm:$0xff] %v1642
    %3384 = vst [vmem:[#allocation7 + $0xa88] sm:$0xff] %v1644
    %3385 = vst [vmem:[#allocation7 + $0xa90] sm:$0xff] %v1835
    %3386 = vst [vmem:[#allocation7 + $0xa98] sm:$0xff] %v1837
    %3387 = vst [vmem:[#allocation7 + $0xaa0] sm:$0xff] %v2028
    %3388 = vst [vmem:[#allocation7 + $0xaa8] sm:$0xff] %v2030
    %3389 = vst [vmem:[#allocation7 + $0xab0] sm:$0xff] %v2221
    %3390 = vst [vmem:[#allocation7 + $0xab8] sm:$0xff] %v2223
    %3391 = vst [vmem:[#allocation7 + $0xac0] sm:$0xff] %v2414
    %3392 = vst [vmem:[#allocation7 + $0xac8] sm:$0xff] %v2416
    %3393 = vst [vmem:[#allocation7 + $0xad0] sm:$0xff] %v2607
    %3394 = vst [vmem:[#allocation7 + $0xad8] sm:$0xff] %v2609
    %3395 = vst [vmem:[#allocation7 + $0xae0] sm:$0xff] %v2800
    %3396 = vst [vmem:[#allocation7 + $0xae8] sm:$0xff] %v2802
    %3397 = vst [vmem:[#allocation7 + $0xaf0] sm:$0xff] %v2993
    %3398 = vst [vmem:[#allocation7 + $0xaf8] sm:$0xff] %v2995
    %3399 = vst [vmem:[#allocation7 + $0xb00] sm:$0xff] %v1648
    %3400 = vst [vmem:[#allocation7 + $0xb08] sm:$0xff] %v1650
    %3401 = vst [vmem:[#allocation7 + $0xb10] sm:$0xff] %v1841
    %3402 = vst [vmem:[#allocation7 + $0xb18] sm:$0xff] %v1843
    %3403 = vst [vmem:[#allocation7 + $0xb20] sm:$0xff] %v2034
    %3404 = vst [vmem:[#allocation7 + $0xb28] sm:$0xff] %v2036
    %3405 = vst [vmem:[#allocation7 + $0xb30] sm:$0xff] %v2227
    %3406 = vst [vmem:[#allocation7 + $0xb38] sm:$0xff] %v2229
    %3407 = vst [vmem:[#allocation7 + $0xb40] sm:$0xff] %v2420
    %3408 = vst [vmem:[#allocation7 + $0xb48] sm:$0xff] %v2422
    %3409 = vst [vmem:[#allocation7 + $0xb50] sm:$0xff] %v2613
    %3410 = vst [vmem:[#allocation7 + $0xb58] sm:$0xff] %v2615
    %3411 = vst [vmem:[#allocation7 + $0xb60] sm:$0xff] %v2806
    %3412 = vst [vmem:[#allocation7 + $0xb68] sm:$0xff] %v2808
    %3413 = vst [vmem:[#allocation7 + $0xb70] sm:$0xff] %v2999
    %3414 = vst [vmem:[#allocation7 + $0xb78] sm:$0xff] %v3001
    %3415 = vst [vmem:[#allocation7 + $0xb80] sm:$0xff] %v1652
    %3416 = vst [vmem:[#allocation7 + $0xb88] sm:$0xff] %v1654
    %3417 = vst [vmem:[#allocation7 + $0xb90] sm:$0xff] %v1845
    %3418 = vst [vmem:[#allocation7 + $0xb98] sm:$0xff] %v1847
    %3419 = vst [vmem:[#allocation7 + $0xba0] sm:$0xff] %v2038
    %3420 = vst [vmem:[#allocation7 + $0xba8] sm:$0xff] %v2040
    %3421 = vst [vmem:[#allocation7 + $0xbb0] sm:$0xff] %v2231
    %3422 = vst [vmem:[#allocation7 + $0xbb8] sm:$0xff] %v2233
    %3423 = vst [vmem:[#allocation7 + $0xbc0] sm:$0xff] %v2424
    %3424 = vst [vmem:[#allocation7 + $0xbc8] sm:$0xff] %v2426
    %3425 = vst [vmem:[#allocation7 + $0xbd0] sm:$0xff] %v2617
    %3426 = vst [vmem:[#allocation7 + $0xbd8] sm:$0xff] %v2619
    %3427 = vst [vmem:[#allocation7 + $0xbe0] sm:$0xff] %v2810
    %3428 = vst [vmem:[#allocation7 + $0xbe8] sm:$0xff] %v2812
    %3429 = vst [vmem:[#allocation7 + $0xbf0] sm:$0xff] %v3003
    %3430 = vst [vmem:[#allocation7 + $0xbf8] sm:$0xff] %v3005
    %3431 = vst [vmem:[#allocation7 + $0xc00] sm:$0xff] %v1658
    %3432 = vst [vmem:[#allocation7 + $0xc08] sm:$0xff] %v1660
    %3433 = vst [vmem:[#allocation7 + $0xc10] sm:$0xff] %v1851
    %3434 = vst [vmem:[#allocation7 + $0xc18] sm:$0xff] %v1853
    %3435 = vst [vmem:[#allocation7 + $0xc20] sm:$0xff] %v2044
    %3436 = vst [vmem:[#allocation7 + $0xc28] sm:$0xff] %v2046
    %3437 = vst [vmem:[#allocation7 + $0xc30] sm:$0xff] %v2237
    %3438 = vst [vmem:[#allocation7 + $0xc38] sm:$0xff] %v2239
    %3439 = vst [vmem:[#allocation7 + $0xc40] sm:$0xff] %v2430
    %3440 = vst [vmem:[#allocation7 + $0xc48] sm:$0xff] %v2432
    %3441 = vst [vmem:[#allocation7 + $0xc50] sm:$0xff] %v2623
    %3442 = vst [vmem:[#allocation7 + $0xc58] sm:$0xff] %v2625
    %3443 = vst [vmem:[#allocation7 + $0xc60] sm:$0xff] %v2816
    %3444 = vst [vmem:[#allocation7 + $0xc68] sm:$0xff] %v2818
    %3445 = vst [vmem:[#allocation7 + $0xc70] sm:$0xff] %v3009
    %3446 = vst [vmem:[#allocation7 + $0xc78] sm:$0xff] %v3011
    %3447 = vst [vmem:[#allocation7 + $0xc80] sm:$0xff] %v1662
    %3448 = vst [vmem:[#allocation7 + $0xc88] sm:$0xff] %v1664
    %3449 = vst [vmem:[#allocation7 + $0xc90] sm:$0xff] %v1855
    %3450 = vst [vmem:[#allocation7 + $0xc98] sm:$0xff] %v1857
    %3451 = vst [vmem:[#allocation7 + $0xca0] sm:$0xff] %v2048
    %3452 = vst [vmem:[#allocation7 + $0xca8] sm:$0xff] %v2050
    %3453 = vst [vmem:[#allocation7 + $0xcb0] sm:$0xff] %v2241
    %3454 = vst [vmem:[#allocation7 + $0xcb8] sm:$0xff] %v2243
    %3455 = vst [vmem:[#allocation7 + $0xcc0] sm:$0xff] %v2434
    %3456 = vst [vmem:[#allocation7 + $0xcc8] sm:$0xff] %v2436
    %3457 = vst [vmem:[#allocation7 + $0xcd0] sm:$0xff] %v2627
    %3458 = vst [vmem:[#allocation7 + $0xcd8] sm:$0xff] %v2629
    %3459 = vst [vmem:[#allocation7 + $0xce0] sm:$0xff] %v2820
    %3460 = vst [vmem:[#allocation7 + $0xce8] sm:$0xff] %v2822
    %3461 = vst [vmem:[#allocation7 + $0xcf0] sm:$0xff] %v3013
    %3462 = vst [vmem:[#allocation7 + $0xcf8] sm:$0xff] %v3015
    %3463 = vst [vmem:[#allocation7 + $0xd00] sm:$0xff] %v1668
    %3464 = vst [vmem:[#allocation7 + $0xd08] sm:$0xff] %v1670
    %3465 = vst [vmem:[#allocation7 + $0xd10] sm:$0xff] %v1861
    %3466 = vst [vmem:[#allocation7 + $0xd18] sm:$0xff] %v1863
    %3467 = vst [vmem:[#allocation7 + $0xd20] sm:$0xff] %v2054
    %3468 = vst [vmem:[#allocation7 + $0xd28] sm:$0xff] %v2056
    %3469 = vst [vmem:[#allocation7 + $0xd30] sm:$0xff] %v2247
    %3470 = vst [vmem:[#allocation7 + $0xd38] sm:$0xff] %v2249
    %3471 = vst [vmem:[#allocation7 + $0xd40] sm:$0xff] %v2440
    %3472 = vst [vmem:[#allocation7 + $0xd48] sm:$0xff] %v2442
    %3473 = vst [vmem:[#allocation7 + $0xd50] sm:$0xff] %v2633
    %3474 = vst [vmem:[#allocation7 + $0xd58] sm:$0xff] %v2635
    %3475 = vst [vmem:[#allocation7 + $0xd60] sm:$0xff] %v2826
    %3476 = vst [vmem:[#allocation7 + $0xd68] sm:$0xff] %v2828
    %3477 = vst [vmem:[#allocation7 + $0xd70] sm:$0xff] %v3019
    %3478 = vst [vmem:[#allocation7 + $0xd78] sm:$0xff] %v3021
    %3479 = vst [vmem:[#allocation7 + $0xd80] sm:$0xff] %v1672
    %3480 = vst [vmem:[#allocation7 + $0xd88] sm:$0xff] %v1674
    %3481 = vst [vmem:[#allocation7 + $0xd90] sm:$0xff] %v1865
    %3482 = vst [vmem:[#allocation7 + $0xd98] sm:$0xff] %v1867
    %3483 = vst [vmem:[#allocation7 + $0xda0] sm:$0xff] %v2058
    %3484 = vst [vmem:[#allocation7 + $0xda8] sm:$0xff] %v2060
    %3485 = vst [vmem:[#allocation7 + $0xdb0] sm:$0xff] %v2251
    %3486 = vst [vmem:[#allocation7 + $0xdb8] sm:$0xff] %v2253
    %3487 = vst [vmem:[#allocation7 + $0xdc0] sm:$0xff] %v2444
    %3488 = vst [vmem:[#allocation7 + $0xdc8] sm:$0xff] %v2446
    %3489 = vst [vmem:[#allocation7 + $0xdd0] sm:$0xff] %v2637
    %3490 = vst [vmem:[#allocation7 + $0xdd8] sm:$0xff] %v2639
    %3491 = vst [vmem:[#allocation7 + $0xde0] sm:$0xff] %v2830
    %3492 = vst [vmem:[#allocation7 + $0xde8] sm:$0xff] %v2832
    %3493 = vst [vmem:[#allocation7 + $0xdf0] sm:$0xff] %v3023
    %3494 = vst [vmem:[#allocation7 + $0xdf8] sm:$0xff] %v3025
    %3495 = vst [vmem:[#allocation7 + $0xe00] sm:$0xff] %v1678
    %3496 = vst [vmem:[#allocation7 + $0xe08] sm:$0xff] %v1680
    %3497 = vst [vmem:[#allocation7 + $0xe10] sm:$0xff] %v1871
    %3498 = vst [vmem:[#allocation7 + $0xe18] sm:$0xff] %v1873
    %3499 = vst [vmem:[#allocation7 + $0xe20] sm:$0xff] %v2064
    %3500 = vst [vmem:[#allocation7 + $0xe28] sm:$0xff] %v2066
    %3501 = vst [vmem:[#allocation7 + $0xe30] sm:$0xff] %v2257
    %3502 = vst [vmem:[#allocation7 + $0xe38] sm:$0xff] %v2259
    %3503 = vst [vmem:[#allocation7 + $0xe40] sm:$0xff] %v2450
    %3504 = vst [vmem:[#allocation7 + $0xe48] sm:$0xff] %v2452
    %3505 = vst [vmem:[#allocation7 + $0xe50] sm:$0xff] %v2643
    %3506 = vst [vmem:[#allocation7 + $0xe58] sm:$0xff] %v2645
    %3507 = vst [vmem:[#allocation7 + $0xe60] sm:$0xff] %v2836
    %3508 = vst [vmem:[#allocation7 + $0xe68] sm:$0xff] %v2838
    %3509 = vst [vmem:[#allocation7 + $0xe70] sm:$0xff] %v3029
    %3510 = vst [vmem:[#allocation7 + $0xe78] sm:$0xff] %v3031
    %3511 = vst [vmem:[#allocation7 + $0xe80] sm:$0xff] %v1682
    %3512 = vst [vmem:[#allocation7 + $0xe88] sm:$0xff] %v1684
    %3513 = vst [vmem:[#allocation7 + $0xe90] sm:$0xff] %v1875
    %3514 = vst [vmem:[#allocation7 + $0xe98] sm:$0xff] %v1877
    %3515 = vst [vmem:[#allocation7 + $0xea0] sm:$0xff] %v2068
    %3516 = vst [vmem:[#allocation7 + $0xea8] sm:$0xff] %v2070
    %3517 = vst [vmem:[#allocation7 + $0xeb0] sm:$0xff] %v2261
    %3518 = vst [vmem:[#allocation7 + $0xeb8] sm:$0xff] %v2263
    %3519 = vst [vmem:[#allocation7 + $0xec0] sm:$0xff] %v2454
    %3520 = vst [vmem:[#allocation7 + $0xec8] sm:$0xff] %v2456
    %3521 = vst [vmem:[#allocation7 + $0xed0] sm:$0xff] %v2647
    %3522 = vst [vmem:[#allocation7 + $0xed8] sm:$0xff] %v2649
    %3523 = vst [vmem:[#allocation7 + $0xee0] sm:$0xff] %v2840
    %3524 = vst [vmem:[#allocation7 + $0xee8] sm:$0xff] %v2842
    %3525 = vst [vmem:[#allocation7 + $0xef0] sm:$0xff] %v3033
    %3526 = vst [vmem:[#allocation7 + $0xef8] sm:$0xff] %v3035
    %3527 = vst [vmem:[#allocation7 + $0xf00] sm:$0xff] %v1688
    %3528 = vst [vmem:[#allocation7 + $0xf08] sm:$0xff] %v1690
    %3529 = vst [vmem:[#allocation7 + $0xf10] sm:$0xff] %v1881
    %3530 = vst [vmem:[#allocation7 + $0xf18] sm:$0xff] %v1883
    %3531 = vst [vmem:[#allocation7 + $0xf20] sm:$0xff] %v2074
    %3532 = vst [vmem:[#allocation7 + $0xf28] sm:$0xff] %v2076
    %3533 = vst [vmem:[#allocation7 + $0xf30] sm:$0xff] %v2267
    %3534 = vst [vmem:[#allocation7 + $0xf38] sm:$0xff] %v2269
    %3535 = vst [vmem:[#allocation7 + $0xf40] sm:$0xff] %v2460
    %3536 = vst [vmem:[#allocation7 + $0xf48] sm:$0xff] %v2462
    %3537 = vst [vmem:[#allocation7 + $0xf50] sm:$0xff] %v2653
    %3538 = vst [vmem:[#allocation7 + $0xf58] sm:$0xff] %v2655
    %3539 = vst [vmem:[#allocation7 + $0xf60] sm:$0xff] %v2846
    %3540 = vst [vmem:[#allocation7 + $0xf68] sm:$0xff] %v2848
    %3541 = vst [vmem:[#allocation7 + $0xf70] sm:$0xff] %v3039
    %3542 = vst [vmem:[#allocation7 + $0xf78] sm:$0xff] %v3041
    %3543 = vst [vmem:[#allocation7 + $0xf80] sm:$0xff] %v1692
    %3544 = vst [vmem:[#allocation7 + $0xf88] sm:$0xff] %v1694
    %3545 = vst [vmem:[#allocation7 + $0xf90] sm:$0xff] %v1885
    %3546 = vst [vmem:[#allocation7 + $0xf98] sm:$0xff] %v1887
    %3547 = vst [vmem:[#allocation7 + $0xfa0] sm:$0xff] %v2078
    %3548 = vst [vmem:[#allocation7 + $0xfa8] sm:$0xff] %v2080
    %3549 = vst [vmem:[#allocation7 + $0xfb0] sm:$0xff] %v2271
    %3550 = vst [vmem:[#allocation7 + $0xfb8] sm:$0xff] %v2273
    %3551 = vst [vmem:[#allocation7 + $0xfc0] sm:$0xff] %v2464
    %3552 = vst [vmem:[#allocation7 + $0xfc8] sm:$0xff] %v2466
    %3553 = vst [vmem:[#allocation7 + $0xfd0] sm:$0xff] %v2657
    %3554 = vst [vmem:[#allocation7 + $0xfd8] sm:$0xff] %v2659
    %3555 = vst [vmem:[#allocation7 + $0xfe0] sm:$0xff] %v2850
    %3556 = vst [vmem:[#allocation7 + $0xfe8] sm:$0xff] %v2852
    %3557 = vst [vmem:[#allocation7 + $0xff0] sm:$0xff] %v3043
    %3558 = vst [vmem:[#allocation7 + $0xff8] sm:$0xff] %v3045
    // Predicated region
    $region22: #{tpu_custom_call.1} parent=1 // pred_check
      _
    $region23: #{tpu_custom_call.1} parent=1 // pred_check_branch
      %3560 = sbr.rel (0) target = $region25
    $region24: #{tpu_custom_call.1} parent=1 // pred_region
      %s3562 = ssub.s32 65536, 65536
      %3563 = vsyncadd [#allocation4], %s3562
      %s3564 = sshll.u32 [#allocation7], 4
      %s3565 = int_to_ptr.vmem [resolvable:$true] %s3564
      %3570 = dma.vmem_to_hbm [thread:$0]  %s3565, 65536, %s3, [#allocation4], 2048, 2048, 128
    $region25: #{tpu_custom_call.1} parent=1 // pred_fallthru
      _
    // Predicated region
    $region26: #{tpu_custom_call.1} parent=1 // pred_check
      _
    $region27: #{tpu_custom_call.1} parent=1 // pred_check_branch
      %3572 = sbr.rel (0) target = $region29
    $region28: #{tpu_custom_call.1} parent=1 // pred_region
      %3573 = dma.done [#allocation4], 65536
    $region29: #{tpu_custom_call.1} parent=1 // pred_fallthru
      _
    %3574 = vsyncpa [#allocation3], 1
    %3575 = vsyncpa [#allocation6], 1
    %3576 = vsyncpa [#allocation4], 1

</llo_original>
